<compile_context>
chip_gen: v5e
topology: v5e:2x2
jax: 0.10.0
libtpu: 0.0.40
codegen_flags: <defaults>
</compile_context>

<pallas_src>
import numpy as np

import jax
import jax.numpy as jnp
from jax.experimental import pallas as pl
from jax.experimental.pallas import tpu as pltpu

K = 5  # conv kernel size


# ---------------------------------------------------------------------------
# Host-side, one-time parameter packing
# ---------------------------------------------------------------------------
def _pool_right(n):
    """(n, n//2) matrix with 0.5 at [2q, q] and [2q+1, q]; right-multiply = 1-D avg pool."""
    m = n // 2
    p = np.zeros((n, m), np.float32)
    p[2 * np.arange(m), np.arange(m)] = 0.5
    p[2 * np.arange(m) + 1, np.arange(m)] = 0.5
    return p


def prepare_params(params):
    f32 = np.float32
    w1 = np.asarray(params["c1_w"], f32)   # (6, 1, 5, 5)
    w2 = np.asarray(params["c2_w"], f32)   # (16, 6, 5, 5)
    w3 = np.asarray(params["c3_w"], f32)   # (120, 16, 5, 5)
    b1 = np.asarray(params["c1_b"], f32)
    b2 = np.asarray(params["c2_b"], f32)
    b3 = np.asarray(params["c3_b"], f32)
    wf1 = np.asarray(params["f1_w"], f32)  # (84, 120)
    bf1 = np.asarray(params["f1_b"], f32)
    wf2 = np.asarray(params["f2_w"], f32)  # (10, 84)
    bf2 = np.asarray(params["f2_b"], f32)

    # Folded conv weights: out[c*Ho+ho, wo] = sum_j (A_j @ act[:, j:j+Wo])[c*Ho+ho, wo]
    # with act rows indexed by cin*H + h and lanes by w.
    A1 = np.zeros((K, 6 * 28, 32), f32)            # conv1: (32,32) -> (168,28)
    for j in range(K):
        for i in range(K):
            for ho in range(28):
                A1[j, ho::28, ho + i] = w1[:, 0, i, j]

    A2 = np.zeros((K, 16 * 10, 6 * 14), f32)       # conv2: (84,14) -> (160,10)
    for j in range(K):
        for i in range(K):
            for ho in range(10):
                A2[j, ho::10, ho + i::14] = w2[:, :, i, j]

    A3 = np.zeros((K, 120, 16 * 5), f32)           # conv3: (80,5) -> (120,1)
    for j in range(K):
        A3[j] = w3[:, :, :, j].reshape(120, 80)    # column index = cin*5 + i

    # Separable 2x2 average pooling: left acts on C*H rows, right on W lanes.
    P1L = np.kron(np.eye(6, dtype=f32), _pool_right(28).T).astype(f32)   # (84, 168)
    P1R = _pool_right(28)                                                # (28, 14)
    P2L = np.kron(np.eye(16, dtype=f32), _pool_right(10).T).astype(f32)  # (80, 160)
    P2R = _pool_right(10)                                                # (10, 5)

    bf = jnp.bfloat16
    return {
        "A1": jnp.asarray(A1, bf), "A2": jnp.asarray(A2, bf), "A3": jnp.asarray(A3, bf),
        "P1L": jnp.asarray(P1L, bf), "P1R": jnp.asarray(P1R, bf),
        "P2L": jnp.asarray(P2L, bf), "P2R": jnp.asarray(P2R, bf),
        "WF1": jnp.asarray(wf1, bf), "WF2": jnp.asarray(wf2, bf),
        "B1": jnp.asarray(np.repeat(b1, 28)[:, None], jnp.float32),  # (168, 1)
        "B2": jnp.asarray(np.repeat(b2, 10)[:, None], jnp.float32),  # (160, 1)
        "B3": jnp.asarray(b3[:, None], jnp.float32),                 # (120, 1)
        "B4": jnp.asarray(bf1[:, None], jnp.float32),                # (84, 1)
        "B5": jnp.asarray(bf2[:, None], jnp.float32),                # (10, 1)
    }


# ---------------------------------------------------------------------------
# The fused Pallas kernel (one image per grid step)
# ---------------------------------------------------------------------------
def _lenet5_kernel(x_ref, a1_ref, a2_ref, a3_ref, p1l_ref, p1r_ref,
                   p2l_ref, p2r_ref, wf1_ref, wf2_ref,
                   b1_ref, b2_ref, b3_ref, b4_ref, b5_ref, out_ref):
    f32, bf16 = jnp.float32, jnp.bfloat16

    def mm(a, b):
        # MXU matmul: bf16 operands, f32 accumulation.
        return jnp.dot(a.astype(bf16), b.astype(bf16), preferred_element_type=f32)

    def conv(act, w_ref, bias, wo):
        # act: (Cin*H, W) f32.  One matmul per kernel column j; each matmul
        # contracts over the full Cin*5 "packed K" dim (channels + kernel rows).
        z = mm(w_ref[0], act[:, 0:wo])
        for j in range(1, K):
            z = z + mm(w_ref[j], act[:, j:j + wo])
        return jnp.tanh(z + bias)

    def pool(act, left_ref, right_ref):
        # Separable 2x2 average pooling as two small constant matmuls, then tanh.
        return jnp.tanh(mm(mm(left_ref[...], act), right_ref[...]))

    img = x_ref[0]                                     # (32, 32) f32
    a = conv(img, a1_ref, b1_ref[...], 28)             # C1 + tanh   (168, 28)
    a = pool(a, p1l_ref, p1r_ref)                      # S2 + tanh   (84, 14)
    a = conv(a, a2_ref, b2_ref[...], 10)               # C3 + tanh   (160, 10)
    a = pool(a, p2l_ref, p2r_ref)                      # S4 + tanh   (80, 5)
    a = conv(a, a3_ref, b3_ref[...], 1)                # C5 + tanh   (120, 1)
    a = jnp.tanh(mm(wf1_ref[...], a) + b4_ref[...])    # F6 + tanh   (84, 1)
    out_ref[0] = mm(wf2_ref[...], a) + b5_ref[...]     # logits      (10, 1)


# ---------------------------------------------------------------------------
# Forward wrapper
# ---------------------------------------------------------------------------
def lenet5_forward(x, prep):
    """x: (B, 1, 32, 32) float32 -> logits (B, 10) float32."""
    B = x.shape[0]
    assert x.shape[1:] == (1, 32, 32), x.shape
    x2 = x[:, 0]                                       # (B, 32, 32) raw image

    args = (x2, prep["A1"], prep["A2"], prep["A3"], prep["P1L"], prep["P1R"],
            prep["P2L"], prep["P2R"], prep["WF1"], prep["WF2"],
            prep["B1"], prep["B2"], prep["B3"], prep["B4"], prep["B5"])

    def const_spec(a):
        n = a.ndim
        return pl.BlockSpec(a.shape, lambda b: (0,) * n)   # resident across grid

    in_specs = [pl.BlockSpec((1, 32, 32), lambda b: (b, 0, 0))]
    in_specs += [const_spec(a) for a in args[1:]]

    out = pl.pallas_call(
        _lenet5_kernel,
        grid=(B,),
        out_shape=jax.ShapeDtypeStruct((B, 10, 1), jnp.float32),
        in_specs=in_specs,
        out_specs=pl.BlockSpec((1, 10, 1), lambda b: (b, 0, 0)),
        compiler_params=pltpu.CompilerParams(
            dimension_semantics=("parallel",)),
    )(*args)
    return out[:, :, 0]


# ---------------------------------------------------------------------------
# Parameter init (PyTorch-style layouts, uniform 1/sqrt(fan_in))
# ---------------------------------------------------------------------------
def init_params(key):
    shapes = {
        "c1_w": (6, 1, 5, 5),    "c1_b": (6,),
        "c2_w": (16, 6, 5, 5),   "c2_b": (16,),
        "c3_w": (120, 16, 5, 5), "c3_b": (120,),
        "f1_w": (84, 120),       "f1_b": (84,),
        "f2_w": (10, 84),        "f2_b": (10,),
    }
    fan_in = {"c1": 25, "c2": 150, "c3": 400, "f1": 120, "f2": 84}
    params = {}
    keys = jax.random.split(key, len(shapes))
    for (name, shape), k in zip(shapes.items(), keys):
        bound = 1.0 / np.sqrt(float(fan_in[name.split("_")[0]]))
        params[name] = jax.random.uniform(
            k, shape, dtype=jnp.float32, minval=-bound, maxval=bound)
    return params


# ---------------------------------------------------------------------------
# Pure-numpy reference (matches the PyTorch module semantics, all f32)
# ---------------------------------------------------------------------------
def _reference_forward(x, params):
    f32 = np.float32
    x = np.asarray(x, f32)
    p = {k: np.asarray(v, f32) for k, v in params.items()}

    def conv(a, w, b):
        Bn, Cin, H, W = a.shape
        Ho, Wo = H - 4, W - 4
        out = np.zeros((Bn, w.shape[0], Ho, Wo), f32)
        for i in range(5):
            for j in range(5):
                out += np.einsum("bchw,oc->bohw",
                                 a[:, :, i:i + Ho, j:j + Wo], w[:, :, i, j])
        return out + b[None, :, None, None]

    def pool(a):
        return 0.25 * (a[:, :, 0::2, 0::2] + a[:, :, 0::2, 1::2]
                       + a[:, :, 1::2, 0::2] + a[:, :, 1::2, 1::2])

    t = np.tanh
    a = t(conv(x, p["c1_w"], p["c1_b"])); a = t(pool(a))
    a = t(conv(a, p["c2_w"], p["c2_b"])); a = t(pool(a))
    a = t(conv(a, p["c3_w"], p["c3_b"]))
    a = a.reshape(a.shape[0], -1)
    a = t(a @ p["f1_w"].T + p["f1_b"])
    return a @ p["f2_w"].T + p["f2_b"]


if __name__ == "__main__":
    key = jax.random.PRNGKey(0)
    pkey, xkey = jax.random.split(key)

    params = init_params(pkey)
    prep = prepare_params(params)          # one-time host-side weight folding

    # LeNet-5 requires 32x32 single-channel input.
    x = jax.random.normal(xkey, (2, 1, 32, 32), dtype=jnp.float32)

    fwd = jax.jit(lenet5_forward)
    out = jax.block_until_ready(fwd(x, prep))
    assert out.shape == (2, 10), out.shape
    assert bool(jnp.all(jnp.isfinite(out)))

    # Numerical sanity check vs. an all-f32 reference (bf16 MXU operands =>
    # ~1e-2 level differences are expected and acceptable).
    ref = _reference_forward(np.asarray(x), params)
    assert float(np.max(np.abs(np.asarray(out) - ref))) < 0.1
    print("KERNEL_OK")
</pallas_src>

<mosaic_0001>
module attributes {stable_mosaic.version = 11 : i64} {
  func.func @_lenet5_kernel(%arg0: i32, %arg1: memref<1x32x32xf32, #tpu.memory_space<vmem>>, %arg2: memref<5x168x32xbf16, #tpu.memory_space<vmem>>, %arg3: memref<5x160x84xbf16, #tpu.memory_space<vmem>>, %arg4: memref<5x120x80xbf16, #tpu.memory_space<vmem>>, %arg5: memref<84x168xbf16, #tpu.memory_space<vmem>>, %arg6: memref<28x14xbf16, #tpu.memory_space<vmem>>, %arg7: memref<80x160xbf16, #tpu.memory_space<vmem>>, %arg8: memref<10x5xbf16, #tpu.memory_space<vmem>>, %arg9: memref<84x120xbf16, #tpu.memory_space<vmem>>, %arg10: memref<10x84xbf16, #tpu.memory_space<vmem>>, %arg11: memref<168x1xf32, #tpu.memory_space<vmem>>, %arg12: memref<160x1xf32, #tpu.memory_space<vmem>>, %arg13: memref<120x1xf32, #tpu.memory_space<vmem>>, %arg14: memref<84x1xf32, #tpu.memory_space<vmem>>, %arg15: memref<10x1xf32, #tpu.memory_space<vmem>>, %arg16: memref<1x10x1xf32, #tpu.memory_space<vmem>>) attributes {dimension_semantics = [#tpu.dimension_semantics<parallel>], iteration_bounds = array<i64: 2>, scalar_prefetch = 0 : i64, scratch_operands = 0 : i64, tpu.core_type = #tpu.core_type<tc>, window_params = [{transform_indices = @transform_0, window_bounds = array<i64: 1, 32, 32>}, {pipeline_mode = #tpu.pipeline_mode<synchronous>, transform_indices = @transform_1, window_bounds = array<i64: 5, 168, 32>}, {pipeline_mode = #tpu.pipeline_mode<synchronous>, transform_indices = @transform_2, window_bounds = array<i64: 5, 160, 84>}, {pipeline_mode = #tpu.pipeline_mode<synchronous>, transform_indices = @transform_3, window_bounds = array<i64: 5, 120, 80>}, {pipeline_mode = #tpu.pipeline_mode<synchronous>, transform_indices = @transform_4, window_bounds = array<i64: 84, 168>}, {pipeline_mode = #tpu.pipeline_mode<synchronous>, transform_indices = @transform_5, window_bounds = array<i64: 28, 14>}, {pipeline_mode = #tpu.pipeline_mode<synchronous>, transform_indices = @transform_6, window_bounds = array<i64: 80, 160>}, {pipeline_mode = #tpu.pipeline_mode<synchronous>, transform_indices = @transform_7, window_bounds = array<i64: 10, 5>}, {pipeline_mode = #tpu.pipeline_mode<synchronous>, transform_indices = @transform_8, window_bounds = array<i64: 84, 120>}, {pipeline_mode = #tpu.pipeline_mode<synchronous>, transform_indices = @transform_9, window_bounds = array<i64: 10, 84>}, {pipeline_mode = #tpu.pipeline_mode<synchronous>, transform_indices = @transform_10, window_bounds = array<i64: 168, 1>}, {pipeline_mode = #tpu.pipeline_mode<synchronous>, transform_indices = @transform_11, window_bounds = array<i64: 160, 1>}, {pipeline_mode = #tpu.pipeline_mode<synchronous>, transform_indices = @transform_12, window_bounds = array<i64: 120, 1>}, {pipeline_mode = #tpu.pipeline_mode<synchronous>, transform_indices = @transform_13, window_bounds = array<i64: 84, 1>}, {pipeline_mode = #tpu.pipeline_mode<synchronous>, transform_indices = @transform_14, window_bounds = array<i64: 10, 1>}, {transform_indices = @transform_15, window_bounds = array<i64: 1, 10, 1>}]} {
    %c0 = arith.constant 0 : index
    %c0_0 = arith.constant 0 : index
    %c0_1 = arith.constant 0 : index
    %0 = vector.load %arg1[%c0, %c0_0, %c0_1] : memref<1x32x32xf32, #tpu.memory_space<vmem>>, vector<1x32x32xf32>
    %1 = vector.shape_cast %0 : vector<1x32x32xf32> to vector<32x32xf32>
    %c0_2 = arith.constant 0 : index
    %c0_3 = arith.constant 0 : index
    %2 = vector.load %arg11[%c0_2, %c0_3] : memref<168x1xf32, #tpu.memory_space<vmem>>, vector<168x1xf32>
    %c0_4 = arith.constant 0 : index
    %c0_5 = arith.constant 0 : index
    %c0_6 = arith.constant 0 : index
    %3 = vector.load %arg2[%c0_4, %c0_5, %c0_6] : memref<5x168x32xbf16, #tpu.memory_space<vmem>>, vector<1x168x32xbf16>
    %4 = vector.shape_cast %3 : vector<1x168x32xbf16> to vector<168x32xbf16>
    %5 = vector.extract_strided_slice %1 {offsets = [0, 0], sizes = [32, 28], strides = [1, 1]} : vector<32x32xf32> to vector<32x28xf32>
    %6 = arith.truncf %5 : vector<32x28xf32> to vector<32x28xbf16>
    %cst = arith.constant dense<0.000000e+00> : vector<168x28xf32>
    %7 = tpu.matmul %4, %6, %cst {dimension_numbers = #tpu.dot_dimension_numbers<[1], [0], [0], [1], [0, 0, 1, 1], [], []>} : vector<168x32xbf16>, vector<32x28xbf16>, vector<168x28xf32> -> vector<168x28xf32>
    %c1 = arith.constant 1 : index
    %c0_7 = arith.constant 0 : index
    %c0_8 = arith.constant 0 : index
    %8 = vector.load %arg2[%c1, %c0_7, %c0_8] : memref<5x168x32xbf16, #tpu.memory_space<vmem>>, vector<1x168x32xbf16>
    %9 = vector.shape_cast %8 : vector<1x168x32xbf16> to vector<168x32xbf16>
    %10 = vector.extract_strided_slice %1 {offsets = [0, 1], sizes = [32, 28], strides = [1, 1]} : vector<32x32xf32> to vector<32x28xf32>
    %11 = arith.truncf %10 : vector<32x28xf32> to vector<32x28xbf16>
    %cst_9 = arith.constant dense<0.000000e+00> : vector<168x28xf32>
    %12 = tpu.matmul %9, %11, %cst_9 {dimension_numbers = #tpu.dot_dimension_numbers<[1], [0], [0], [1], [0, 0, 1, 1], [], []>} : vector<168x32xbf16>, vector<32x28xbf16>, vector<168x28xf32> -> vector<168x28xf32>
    %13 = arith.addf %7, %12 : vector<168x28xf32>
    %c2 = arith.constant 2 : index
    %c0_10 = arith.constant 0 : index
    %c0_11 = arith.constant 0 : index
    %14 = vector.load %arg2[%c2, %c0_10, %c0_11] : memref<5x168x32xbf16, #tpu.memory_space<vmem>>, vector<1x168x32xbf16>
    %15 = vector.shape_cast %14 : vector<1x168x32xbf16> to vector<168x32xbf16>
    %16 = vector.extract_strided_slice %1 {offsets = [0, 2], sizes = [32, 28], strides = [1, 1]} : vector<32x32xf32> to vector<32x28xf32>
    %17 = arith.truncf %16 : vector<32x28xf32> to vector<32x28xbf16>
    %cst_12 = arith.constant dense<0.000000e+00> : vector<168x28xf32>
    %18 = tpu.matmul %15, %17, %cst_12 {dimension_numbers = #tpu.dot_dimension_numbers<[1], [0], [0], [1], [0, 0, 1, 1], [], []>} : vector<168x32xbf16>, vector<32x28xbf16>, vector<168x28xf32> -> vector<168x28xf32>
    %19 = arith.addf %13, %18 : vector<168x28xf32>
    %c3 = arith.constant 3 : index
    %c0_13 = arith.constant 0 : index
    %c0_14 = arith.constant 0 : index
    %20 = vector.load %arg2[%c3, %c0_13, %c0_14] : memref<5x168x32xbf16, #tpu.memory_space<vmem>>, vector<1x168x32xbf16>
    %21 = vector.shape_cast %20 : vector<1x168x32xbf16> to vector<168x32xbf16>
    %22 = vector.extract_strided_slice %1 {offsets = [0, 3], sizes = [32, 28], strides = [1, 1]} : vector<32x32xf32> to vector<32x28xf32>
    %23 = arith.truncf %22 : vector<32x28xf32> to vector<32x28xbf16>
    %cst_15 = arith.constant dense<0.000000e+00> : vector<168x28xf32>
    %24 = tpu.matmul %21, %23, %cst_15 {dimension_numbers = #tpu.dot_dimension_numbers<[1], [0], [0], [1], [0, 0, 1, 1], [], []>} : vector<168x32xbf16>, vector<32x28xbf16>, vector<168x28xf32> -> vector<168x28xf32>
    %25 = arith.addf %19, %24 : vector<168x28xf32>
    %c4 = arith.constant 4 : index
    %c0_16 = arith.constant 0 : index
    %c0_17 = arith.constant 0 : index
    %26 = vector.load %arg2[%c4, %c0_16, %c0_17] : memref<5x168x32xbf16, #tpu.memory_space<vmem>>, vector<1x168x32xbf16>
    %27 = vector.shape_cast %26 : vector<1x168x32xbf16> to vector<168x32xbf16>
    %28 = vector.extract_strided_slice %1 {offsets = [0, 4], sizes = [32, 28], strides = [1, 1]} : vector<32x32xf32> to vector<32x28xf32>
    %29 = arith.truncf %28 : vector<32x28xf32> to vector<32x28xbf16>
    %cst_18 = arith.constant dense<0.000000e+00> : vector<168x28xf32>
    %30 = tpu.matmul %27, %29, %cst_18 {dimension_numbers = #tpu.dot_dimension_numbers<[1], [0], [0], [1], [0, 0, 1, 1], [], []>} : vector<168x32xbf16>, vector<32x28xbf16>, vector<168x28xf32> -> vector<168x28xf32>
    %31 = arith.addf %25, %30 : vector<168x28xf32>
    %32 = vector.broadcast %2 : vector<168x1xf32> to vector<168x28xf32>
    %33 = arith.addf %31, %32 : vector<168x28xf32>
    %34 = math.tanh %33 : vector<168x28xf32>
    %c0_19 = arith.constant 0 : index
    %c0_20 = arith.constant 0 : index
    %35 = vector.load %arg5[%c0_19, %c0_20] : memref<84x168xbf16, #tpu.memory_space<vmem>>, vector<84x168xbf16>
    %36 = arith.truncf %34 : vector<168x28xf32> to vector<168x28xbf16>
    %cst_21 = arith.constant dense<0.000000e+00> : vector<84x28xf32>
    %37 = tpu.matmul %35, %36, %cst_21 {dimension_numbers = #tpu.dot_dimension_numbers<[1], [0], [0], [1], [0, 0, 1, 1], [], []>} : vector<84x168xbf16>, vector<168x28xbf16>, vector<84x28xf32> -> vector<84x28xf32>
    %c0_22 = arith.constant 0 : index
    %c0_23 = arith.constant 0 : index
    %38 = vector.load %arg6[%c0_22, %c0_23] : memref<28x14xbf16, #tpu.memory_space<vmem>>, vector<28x14xbf16>
    %39 = arith.truncf %37 : vector<84x28xf32> to vector<84x28xbf16>
    %cst_24 = arith.constant dense<0.000000e+00> : vector<84x14xf32>
    %40 = tpu.matmul %39, %38, %cst_24 {dimension_numbers = #tpu.dot_dimension_numbers<[1], [0], [0], [1], [0, 0, 1, 1], [], []>} : vector<84x28xbf16>, vector<28x14xbf16>, vector<84x14xf32> -> vector<84x14xf32>
    %41 = math.tanh %40 : vector<84x14xf32>
    %c0_25 = arith.constant 0 : index
    %c0_26 = arith.constant 0 : index
    %42 = vector.load %arg12[%c0_25, %c0_26] : memref<160x1xf32, #tpu.memory_space<vmem>>, vector<160x1xf32>
    %c0_27 = arith.constant 0 : index
    %c0_28 = arith.constant 0 : index
    %c0_29 = arith.constant 0 : index
    %43 = vector.load %arg3[%c0_27, %c0_28, %c0_29] : memref<5x160x84xbf16, #tpu.memory_space<vmem>>, vector<1x160x84xbf16>
    %44 = vector.shape_cast %43 : vector<1x160x84xbf16> to vector<160x84xbf16>
    %45 = vector.extract_strided_slice %41 {offsets = [0, 0], sizes = [84, 10], strides = [1, 1]} : vector<84x14xf32> to vector<84x10xf32>
    %46 = arith.truncf %45 : vector<84x10xf32> to vector<84x10xbf16>
    %cst_30 = arith.constant dense<0.000000e+00> : vector<160x10xf32>
    %47 = tpu.matmul %44, %46, %cst_30 {dimension_numbers = #tpu.dot_dimension_numbers<[1], [0], [0], [1], [0, 0, 1, 1], [], []>} : vector<160x84xbf16>, vector<84x10xbf16>, vector<160x10xf32> -> vector<160x10xf32>
    %c1_31 = arith.constant 1 : index
    %c0_32 = arith.constant 0 : index
    %c0_33 = arith.constant 0 : index
    %48 = vector.load %arg3[%c1_31, %c0_32, %c0_33] : memref<5x160x84xbf16, #tpu.memory_space<vmem>>, vector<1x160x84xbf16>
    %49 = vector.shape_cast %48 : vector<1x160x84xbf16> to vector<160x84xbf16>
    %50 = vector.extract_strided_slice %41 {offsets = [0, 1], sizes = [84, 10], strides = [1, 1]} : vector<84x14xf32> to vector<84x10xf32>
    %51 = arith.truncf %50 : vector<84x10xf32> to vector<84x10xbf16>
    %cst_34 = arith.constant dense<0.000000e+00> : vector<160x10xf32>
    %52 = tpu.matmul %49, %51, %cst_34 {dimension_numbers = #tpu.dot_dimension_numbers<[1], [0], [0], [1], [0, 0, 1, 1], [], []>} : vector<160x84xbf16>, vector<84x10xbf16>, vector<160x10xf32> -> vector<160x10xf32>
    %53 = arith.addf %47, %52 : vector<160x10xf32>
    %c2_35 = arith.constant 2 : index
    %c0_36 = arith.constant 0 : index
    %c0_37 = arith.constant 0 : index
    %54 = vector.load %arg3[%c2_35, %c0_36, %c0_37] : memref<5x160x84xbf16, #tpu.memory_space<vmem>>, vector<1x160x84xbf16>
    %55 = vector.shape_cast %54 : vector<1x160x84xbf16> to vector<160x84xbf16>
    %56 = vector.extract_strided_slice %41 {offsets = [0, 2], sizes = [84, 10], strides = [1, 1]} : vector<84x14xf32> to vector<84x10xf32>
    %57 = arith.truncf %56 : vector<84x10xf32> to vector<84x10xbf16>
    %cst_38 = arith.constant dense<0.000000e+00> : vector<160x10xf32>
    %58 = tpu.matmul %55, %57, %cst_38 {dimension_numbers = #tpu.dot_dimension_numbers<[1], [0], [0], [1], [0, 0, 1, 1], [], []>} : vector<160x84xbf16>, vector<84x10xbf16>, vector<160x10xf32> -> vector<160x10xf32>
    %59 = arith.addf %53, %58 : vector<160x10xf32>
    %c3_39 = arith.constant 3 : index
    %c0_40 = arith.constant 0 : index
    %c0_41 = arith.constant 0 : index
    %60 = vector.load %arg3[%c3_39, %c0_40, %c0_41] : memref<5x160x84xbf16, #tpu.memory_space<vmem>>, vector<1x160x84xbf16>
    %61 = vector.shape_cast %60 : vector<1x160x84xbf16> to vector<160x84xbf16>
    %62 = vector.extract_strided_slice %41 {offsets = [0, 3], sizes = [84, 10], strides = [1, 1]} : vector<84x14xf32> to vector<84x10xf32>
    %63 = arith.truncf %62 : vector<84x10xf32> to vector<84x10xbf16>
    %cst_42 = arith.constant dense<0.000000e+00> : vector<160x10xf32>
    %64 = tpu.matmul %61, %63, %cst_42 {dimension_numbers = #tpu.dot_dimension_numbers<[1], [0], [0], [1], [0, 0, 1, 1], [], []>} : vector<160x84xbf16>, vector<84x10xbf16>, vector<160x10xf32> -> vector<160x10xf32>
    %65 = arith.addf %59, %64 : vector<160x10xf32>
    %c4_43 = arith.constant 4 : index
    %c0_44 = arith.constant 0 : index
    %c0_45 = arith.constant 0 : index
    %66 = vector.load %arg3[%c4_43, %c0_44, %c0_45] : memref<5x160x84xbf16, #tpu.memory_space<vmem>>, vector<1x160x84xbf16>
    %67 = vector.shape_cast %66 : vector<1x160x84xbf16> to vector<160x84xbf16>
    %68 = vector.extract_strided_slice %41 {offsets = [0, 4], sizes = [84, 10], strides = [1, 1]} : vector<84x14xf32> to vector<84x10xf32>
    %69 = arith.truncf %68 : vector<84x10xf32> to vector<84x10xbf16>
    %cst_46 = arith.constant dense<0.000000e+00> : vector<160x10xf32>
    %70 = tpu.matmul %67, %69, %cst_46 {dimension_numbers = #tpu.dot_dimension_numbers<[1], [0], [0], [1], [0, 0, 1, 1], [], []>} : vector<160x84xbf16>, vector<84x10xbf16>, vector<160x10xf32> -> vector<160x10xf32>
    %71 = arith.addf %65, %70 : vector<160x10xf32>
    %72 = vector.broadcast %42 : vector<160x1xf32> to vector<160x10xf32>
    %73 = arith.addf %71, %72 : vector<160x10xf32>
    %74 = math.tanh %73 : vector<160x10xf32>
    %c0_47 = arith.constant 0 : index
    %c0_48 = arith.constant 0 : index
    %75 = vector.load %arg7[%c0_47, %c0_48] : memref<80x160xbf16, #tpu.memory_space<vmem>>, vector<80x160xbf16>
    %76 = arith.truncf %74 : vector<160x10xf32> to vector<160x10xbf16>
    %cst_49 = arith.constant dense<0.000000e+00> : vector<80x10xf32>
    %77 = tpu.matmul %75, %76, %cst_49 {dimension_numbers = #tpu.dot_dimension_numbers<[1], [0], [0], [1], [0, 0, 1, 1], [], []>} : vector<80x160xbf16>, vector<160x10xbf16>, vector<80x10xf32> -> vector<80x10xf32>
    %c0_50 = arith.constant 0 : index
    %c0_51 = arith.constant 0 : index
    %78 = vector.load %arg8[%c0_50, %c0_51] : memref<10x5xbf16, #tpu.memory_space<vmem>>, vector<10x5xbf16>
    %79 = arith.truncf %77 : vector<80x10xf32> to vector<80x10xbf16>
    %cst_52 = arith.constant dense<0.000000e+00> : vector<80x5xf32>
    %80 = tpu.matmul %79, %78, %cst_52 {dimension_numbers = #tpu.dot_dimension_numbers<[1], [0], [0], [1], [0, 0, 1, 1], [], []>} : vector<80x10xbf16>, vector<10x5xbf16>, vector<80x5xf32> -> vector<80x5xf32>
    %81 = math.tanh %80 : vector<80x5xf32>
    %c0_53 = arith.constant 0 : index
    %c0_54 = arith.constant 0 : index
    %82 = vector.load %arg13[%c0_53, %c0_54] : memref<120x1xf32, #tpu.memory_space<vmem>>, vector<120x1xf32>
    %c0_55 = arith.constant 0 : index
    %c0_56 = arith.constant 0 : index
    %c0_57 = arith.constant 0 : index
    %83 = vector.load %arg4[%c0_55, %c0_56, %c0_57] : memref<5x120x80xbf16, #tpu.memory_space<vmem>>, vector<1x120x80xbf16>
    %84 = vector.shape_cast %83 : vector<1x120x80xbf16> to vector<120x80xbf16>
    %85 = vector.extract_strided_slice %81 {offsets = [0, 0], sizes = [80, 1], strides = [1, 1]} : vector<80x5xf32> to vector<80x1xf32>
    %86 = arith.truncf %85 : vector<80x1xf32> to vector<80x1xbf16>
    %cst_58 = arith.constant dense<0.000000e+00> : vector<120x1xf32>
    %87 = tpu.matmul %84, %86, %cst_58 {dimension_numbers = #tpu.dot_dimension_numbers<[1], [0], [0], [1], [0, 0, 1, 1], [], []>} : vector<120x80xbf16>, vector<80x1xbf16>, vector<120x1xf32> -> vector<120x1xf32>
    %c1_59 = arith.constant 1 : index
    %c0_60 = arith.constant 0 : index
    %c0_61 = arith.constant 0 : index
    %88 = vector.load %arg4[%c1_59, %c0_60, %c0_61] : memref<5x120x80xbf16, #tpu.memory_space<vmem>>, vector<1x120x80xbf16>
    %89 = vector.shape_cast %88 : vector<1x120x80xbf16> to vector<120x80xbf16>
    %90 = vector.extract_strided_slice %81 {offsets = [0, 1], sizes = [80, 1], strides = [1, 1]} : vector<80x5xf32> to vector<80x1xf32>
    %91 = arith.truncf %90 : vector<80x1xf32> to vector<80x1xbf16>
    %cst_62 = arith.constant dense<0.000000e+00> : vector<120x1xf32>
    %92 = tpu.matmul %89, %91, %cst_62 {dimension_numbers = #tpu.dot_dimension_numbers<[1], [0], [0], [1], [0, 0, 1, 1], [], []>} : vector<120x80xbf16>, vector<80x1xbf16>, vector<120x1xf32> -> vector<120x1xf32>
    %93 = arith.addf %87, %92 : vector<120x1xf32>
    %c2_63 = arith.constant 2 : index
    %c0_64 = arith.constant 0 : index
    %c0_65 = arith.constant 0 : index
    %94 = vector.load %arg4[%c2_63, %c0_64, %c0_65] : memref<5x120x80xbf16, #tpu.memory_space<vmem>>, vector<1x120x80xbf16>
    %95 = vector.shape_cast %94 : vector<1x120x80xbf16> to vector<120x80xbf16>
    %96 = vector.extract_strided_slice %81 {offsets = [0, 2], sizes = [80, 1], strides = [1, 1]} : vector<80x5xf32> to vector<80x1xf32>
    %97 = arith.truncf %96 : vector<80x1xf32> to vector<80x1xbf16>
    %cst_66 = arith.constant dense<0.000000e+00> : vector<120x1xf32>
    %98 = tpu.matmul %95, %97, %cst_66 {dimension_numbers = #tpu.dot_dimension_numbers<[1], [0], [0], [1], [0, 0, 1, 1], [], []>} : vector<120x80xbf16>, vector<80x1xbf16>, vector<120x1xf32> -> vector<120x1xf32>
    %99 = arith.addf %93, %98 : vector<120x1xf32>
    %c3_67 = arith.constant 3 : index
    %c0_68 = arith.constant 0 : index
    %c0_69 = arith.constant 0 : index
    %100 = vector.load %arg4[%c3_67, %c0_68, %c0_69] : memref<5x120x80xbf16, #tpu.memory_space<vmem>>, vector<1x120x80xbf16>
    %101 = vector.shape_cast %100 : vector<1x120x80xbf16> to vector<120x80xbf16>
    %102 = vector.extract_strided_slice %81 {offsets = [0, 3], sizes = [80, 1], strides = [1, 1]} : vector<80x5xf32> to vector<80x1xf32>
    %103 = arith.truncf %102 : vector<80x1xf32> to vector<80x1xbf16>
    %cst_70 = arith.constant dense<0.000000e+00> : vector<120x1xf32>
    %104 = tpu.matmul %101, %103, %cst_70 {dimension_numbers = #tpu.dot_dimension_numbers<[1], [0], [0], [1], [0, 0, 1, 1], [], []>} : vector<120x80xbf16>, vector<80x1xbf16>, vector<120x1xf32> -> vector<120x1xf32>
    %105 = arith.addf %99, %104 : vector<120x1xf32>
    %c4_71 = arith.constant 4 : index
    %c0_72 = arith.constant 0 : index
    %c0_73 = arith.constant 0 : index
    %106 = vector.load %arg4[%c4_71, %c0_72, %c0_73] : memref<5x120x80xbf16, #tpu.memory_space<vmem>>, vector<1x120x80xbf16>
    %107 = vector.shape_cast %106 : vector<1x120x80xbf16> to vector<120x80xbf16>
    %108 = vector.extract_strided_slice %81 {offsets = [0, 4], sizes = [80, 1], strides = [1, 1]} : vector<80x5xf32> to vector<80x1xf32>
    %109 = arith.truncf %108 : vector<80x1xf32> to vector<80x1xbf16>
    %cst_74 = arith.constant dense<0.000000e+00> : vector<120x1xf32>
    %110 = tpu.matmul %107, %109, %cst_74 {dimension_numbers = #tpu.dot_dimension_numbers<[1], [0], [0], [1], [0, 0, 1, 1], [], []>} : vector<120x80xbf16>, vector<80x1xbf16>, vector<120x1xf32> -> vector<120x1xf32>
    %111 = arith.addf %105, %110 : vector<120x1xf32>
    %112 = arith.addf %111, %82 : vector<120x1xf32>
    %113 = math.tanh %112 : vector<120x1xf32>
    %c0_75 = arith.constant 0 : index
    %c0_76 = arith.constant 0 : index
    %114 = vector.load %arg9[%c0_75, %c0_76] : memref<84x120xbf16, #tpu.memory_space<vmem>>, vector<84x120xbf16>
    %115 = arith.truncf %113 : vector<120x1xf32> to vector<120x1xbf16>
    %cst_77 = arith.constant dense<0.000000e+00> : vector<84x1xf32>
    %116 = tpu.matmul %114, %115, %cst_77 {dimension_numbers = #tpu.dot_dimension_numbers<[1], [0], [0], [1], [0, 0, 1, 1], [], []>} : vector<84x120xbf16>, vector<120x1xbf16>, vector<84x1xf32> -> vector<84x1xf32>
    %c0_78 = arith.constant 0 : index
    %c0_79 = arith.constant 0 : index
    %117 = vector.load %arg14[%c0_78, %c0_79] : memref<84x1xf32, #tpu.memory_space<vmem>>, vector<84x1xf32>
    %118 = arith.addf %116, %117 : vector<84x1xf32>
    %119 = math.tanh %118 : vector<84x1xf32>
    %c0_80 = arith.constant 0 : index
    %c0_81 = arith.constant 0 : index
    %120 = vector.load %arg10[%c0_80, %c0_81] : memref<10x84xbf16, #tpu.memory_space<vmem>>, vector<10x84xbf16>
    %121 = arith.truncf %119 : vector<84x1xf32> to vector<84x1xbf16>
    %cst_82 = arith.constant dense<0.000000e+00> : vector<10x1xf32>
    %122 = tpu.matmul %120, %121, %cst_82 {dimension_numbers = #tpu.dot_dimension_numbers<[1], [0], [0], [1], [0, 0, 1, 1], [], []>} : vector<10x84xbf16>, vector<84x1xbf16>, vector<10x1xf32> -> vector<10x1xf32>
    %c0_83 = arith.constant 0 : index
    %c0_84 = arith.constant 0 : index
    %123 = vector.load %arg15[%c0_83, %c0_84] : memref<10x1xf32, #tpu.memory_space<vmem>>, vector<10x1xf32>
    %124 = arith.addf %122, %123 : vector<10x1xf32>
    %c0_85 = arith.constant 0 : index
    %c0_86 = arith.constant 0 : index
    %c0_87 = arith.constant 0 : index
    %125 = vector.load %arg16[%c0_85, %c0_86, %c0_87] : memref<1x10x1xf32, #tpu.memory_space<vmem>>, vector<1x10x1xf32>
    %126 = vector.shape_cast %125 : vector<1x10x1xf32> to vector<10x1xf32>
    %127 = vector.shape_cast %124 : vector<10x1xf32> to vector<1x10x1xf32>
    tpu.vector_store %arg16[%c0_85, %c0_86, %c0_87], %127 {strides = array<i32>} : memref<1x10x1xf32, #tpu.memory_space<vmem>>, vector<1x10x1xf32>,
    return
  }
  func.func @transform_0(%arg0: i32) -> (i32, i32, i32) {
    %c0_i32 = arith.constant 0 : i32
    %c0_i32_0 = arith.constant 0 : i32
    %c0_i32_1 = arith.constant 0 : i32
    return %arg0, %c0_i32, %c0_i32_0 : i32, i32, i32
  }
  func.func @transform_1(%arg0: i32) -> (i32, i32, i32) {
    %c0_i32 = arith.constant 0 : i32
    %c0_i32_0 = arith.constant 0 : i32
    %c0_i32_1 = arith.constant 0 : i32
    %c0_i32_2 = arith.constant 0 : i32
    return %c0_i32, %c0_i32_0, %c0_i32_1 : i32, i32, i32
  }
  func.func @transform_2(%arg0: i32) -> (i32, i32, i32) {
    %c0_i32 = arith.constant 0 : i32
    %c0_i32_0 = arith.constant 0 : i32
    %c0_i32_1 = arith.constant 0 : i32
    %c0_i32_2 = arith.constant 0 : i32
    return %c0_i32, %c0_i32_0, %c0_i32_1 : i32, i32, i32
  }
  func.func @transform_3(%arg0: i32) -> (i32, i32, i32) {
    %c0_i32 = arith.constant 0 : i32
    %c0_i32_0 = arith.constant 0 : i32
    %c0_i32_1 = arith.constant 0 : i32
    %c0_i32_2 = arith.constant 0 : i32
    return %c0_i32, %c0_i32_0, %c0_i32_1 : i32, i32, i32
  }
  func.func @transform_4(%arg0: i32) -> (i32, i32) {
    %c0_i32 = arith.constant 0 : i32
    %c0_i32_0 = arith.constant 0 : i32
    %c0_i32_1 = arith.constant 0 : i32
    return %c0_i32, %c0_i32_0 : i32, i32
  }
  func.func @transform_5(%arg0: i32) -> (i32, i32) {
    %c0_i32 = arith.constant 0 : i32
    %c0_i32_0 = arith.constant 0 : i32
    %c0_i32_1 = arith.constant 0 : i32
    return %c0_i32, %c0_i32_0 : i32, i32
  }
  func.func @transform_6(%arg0: i32) -> (i32, i32) {
    %c0_i32 = arith.constant 0 : i32
    %c0_i32_0 = arith.constant 0 : i32
    %c0_i32_1 = arith.constant 0 : i32
    return %c0_i32, %c0_i32_0 : i32, i32
  }
  func.func @transform_7(%arg0: i32) -> (i32, i32) {
    %c0_i32 = arith.constant 0 : i32
    %c0_i32_0 = arith.constant 0 : i32
    %c0_i32_1 = arith.constant 0 : i32
    return %c0_i32, %c0_i32_0 : i32, i32
  }
  func.func @transform_8(%arg0: i32) -> (i32, i32) {
    %c0_i32 = arith.constant 0 : i32
    %c0_i32_0 = arith.constant 0 : i32
    %c0_i32_1 = arith.constant 0 : i32
    return %c0_i32, %c0_i32_0 : i32, i32
  }
  func.func @transform_9(%arg0: i32) -> (i32, i32) {
    %c0_i32 = arith.constant 0 : i32
    %c0_i32_0 = arith.constant 0 : i32
    %c0_i32_1 = arith.constant 0 : i32
    return %c0_i32, %c0_i32_0 : i32, i32
  }
  func.func @transform_10(%arg0: i32) -> (i32, i32) {
    %c0_i32 = arith.constant 0 : i32
    %c0_i32_0 = arith.constant 0 : i32
    %c0_i32_1 = arith.constant 0 : i32
    return %c0_i32, %c0_i32_0 : i32, i32
  }
  func.func @transform_11(%arg0: i32) -> (i32, i32) {
    %c0_i32 = arith.constant 0 : i32
    %c0_i32_0 = arith.constant 0 : i32
    %c0_i32_1 = arith.constant 0 : i32
    return %c0_i32, %c0_i32_0 : i32, i32
  }
  func.func @transform_12(%arg0: i32) -> (i32, i32) {
    %c0_i32 = arith.constant 0 : i32
    %c0_i32_0 = arith.constant 0 : i32
    %c0_i32_1 = arith.constant 0 : i32
    return %c0_i32, %c0_i32_0 : i32, i32
  }
  func.func @transform_13(%arg0: i32) -> (i32, i32) {
    %c0_i32 = arith.constant 0 : i32
    %c0_i32_0 = arith.constant 0 : i32
    %c0_i32_1 = arith.constant 0 : i32
    return %c0_i32, %c0_i32_0 : i32, i32
  }
  func.func @transform_14(%arg0: i32) -> (i32, i32) {
    %c0_i32 = arith.constant 0 : i32
    %c0_i32_0 = arith.constant 0 : i32
    %c0_i32_1 = arith.constant 0 : i32
    return %c0_i32, %c0_i32_0 : i32, i32
  }
  func.func @transform_15(%arg0: i32) -> (i32, i32, i32) {
    %c0_i32 = arith.constant 0 : i32
    %c0_i32_0 = arith.constant 0 : i32
    %c0_i32_1 = arith.constant 0 : i32
    return %arg0, %c0_i32, %c0_i32_0 : i32, i32, i32
  }
}

</mosaic_0001>

<llo_original>
// kernel: lenet5_forward.1
$region0: #{lenet5_forward.1}
  #allocation0 [shape = 'u32[]', space=smem, size = 0x4, offset = 0x4, fixed_abs, tag = 'smem constant byte address 0x4 - core index']
  #allocation1 [shape = 'u32[72,128]{1,0:T(1,128)}', space=vmem, size = 0x9000, scoped, tag = 'internal scratch']
  %s0 = inlined_call_operand.vmem [shape: f32[2,32,32], index: 0, kind: input, shape index: {}]
  %s1 = inlined_call_operand.vmem [shape: bf16[5,168,32], index: 1, kind: input, shape index: {}]
  %s2 = inlined_call_operand.vmem [shape: bf16[5,160,84], index: 2, kind: input, shape index: {}]
  %s3 = inlined_call_operand.vmem [shape: bf16[5,120,80], index: 3, kind: input, shape index: {}]
  %s4 = inlined_call_operand.vmem [shape: bf16[84,168], index: 4, kind: input, shape index: {}]
  %s5 = inlined_call_operand.vmem [shape: bf16[28,14], index: 5, kind: input, shape index: {}]
  %s6 = inlined_call_operand.vmem [shape: bf16[80,160], index: 6, kind: input, shape index: {}]
  %s7 = inlined_call_operand.vmem [shape: bf16[10,5], index: 7, kind: input, shape index: {}]
  %s8 = inlined_call_operand.vmem [shape: bf16[84,120], index: 8, kind: input, shape index: {}]
  %s9 = inlined_call_operand.vmem [shape: bf16[10,84], index: 9, kind: input, shape index: {}]
  %s10 = inlined_call_operand.vmem [shape: f32[168,1], index: 10, kind: input, shape index: {}]
  %s11 = inlined_call_operand.vmem [shape: f32[160,1], index: 11, kind: input, shape index: {}]
  %s12 = inlined_call_operand.vmem [shape: f32[120,1], index: 12, kind: input, shape index: {}]
  %s13 = inlined_call_operand.vmem [shape: f32[84,1], index: 13, kind: input, shape index: {}]
  %s14 = inlined_call_operand.vmem [shape: f32[10,1], index: 14, kind: input, shape index: {}]
  %s15 = inlined_call_operand.vmem [shape: f32[2,10,1], index: 15, kind: output, shape index: {}]
  %s16 = sld [smem:[#allocation0]]
  $region93: #{lenet5_forward.1} parent=0
    _
  %s18 = ssub.s32 1, %s16
  %s19 = scalar_select 0, %s18, %s16
  loop: start=0, step=1, limit=4
  $region2: #{lenet5_forward.1} parent=0 // loop_pre_header
    _
  $region3: #{lenet5_forward.1} parent=0 // loop_header
    %s21 = sphi 0, %s25
    %p22 = scmp.ge.s32.totalorder %s21, 4
    %s31 = sphi 0, %s33
    %s34 = sphi 0, %s31
    %s35 = sphi 0, %s34
    %s51 = sphi 0, %s35
    %s55 = sphi 0, %s55
    %s57 = sphi 0, %s55
    %s58 = sphi 0, %s57
    %s72 = sphi 0, %s58
    %s76 = sphi 0, %s76
    %s78 = sphi 0, %s76
    %s79 = sphi 0, %s78
    %s93 = sphi 0, %s79
    %s97 = sphi 0, %s97
    %s99 = sphi 0, %s97
    %s100 = sphi 0, %s99
    %s114 = sphi 0, %s100
    %s118 = sphi 0, %s118
    %s120 = sphi 0, %s118
    %s121 = sphi 0, %s120
    %s135 = sphi 0, %s121
    %s139 = sphi 0, %s139
    %s141 = sphi 0, %s139
    %s142 = sphi 0, %s141
    %s156 = sphi 0, %s142
    %s160 = sphi 0, %s160
    %s162 = sphi 0, %s160
    %s163 = sphi 0, %s162
    %s177 = sphi 0, %s163
    %s181 = sphi 0, %s181
    %s183 = sphi 0, %s181
    %s184 = sphi 0, %s183
    %s198 = sphi 0, %s184
    %s202 = sphi 0, %s202
    %s204 = sphi 0, %s202
    %s205 = sphi 0, %s204
    %s219 = sphi 0, %s205
    %s223 = sphi 0, %s223
    %s225 = sphi 0, %s223
    %s226 = sphi 0, %s225
    %s240 = sphi 0, %s226
    %s244 = sphi 0, %s244
    %s246 = sphi 0, %s244
    %s247 = sphi 0, %s246
    %s261 = sphi 0, %s247
    %s265 = sphi 0, %s265
    %s267 = sphi 0, %s265
    %s268 = sphi 0, %s267
    %s282 = sphi 0, %s268
    %s286 = sphi 0, %s286
    %s288 = sphi 0, %s286
    %s289 = sphi 0, %s288
    %s303 = sphi 0, %s289
    %s307 = sphi 0, %s307
    %s309 = sphi 0, %s307
    %s310 = sphi 0, %s309
    %s324 = sphi 0, %s310
    %s328 = sphi 0, %s328
    %s330 = sphi 0, %s328
    %s331 = sphi 0, %s330
    %s345 = sphi 0, %s331
    %s351 = sphi 0, %s353
    %s354 = sphi 0, %s351
    %s355 = sphi 0, %s354
    %s371 = sphi 0, %s355
  $region4: #{lenet5_forward.1} parent=0 // loop_header_branch
    %24 = sbr.rel (%p22) target = $region8
  $region5: #{lenet5_forward.1} parent=0 // loop_body
    %s26 = ssub.s32 %s21, 1
    %s27 = ssub.s32 %s21, 2
    %s28 = sadd.s32 %s21, 1
    %s29 = ssub.s32 %s21, %s28
    %p30 = scmp.eq.s32.totalorder %s29, 0
    %s32 = sadd.s32 %s31, 1
    %s33 = scalar_select %p30, %s31, %s32
    %p36 = pneg %p30
    %p37 = scmp.eq.s32.totalorder %s21, 1
    %p38 = por %p36, %p37
    %p39 = scmp.ne.s32.totalorder %s31, %s34
    %p40 = scmp.eq.s32.totalorder %s21, 0
    %p41 = por %p39, %p40
    %p42 = scmp.ne.s32.totalorder %s31, %s34
    %p43 = scmp.eq.s32.totalorder %s26, 1
    %p44 = por %p42, %p43
    %p45 = scmp.ne.s32.totalorder %s34, %s35
    %p46 = scmp.eq.s32.totalorder %s26, 0
    %p47 = por %p45, %p46
    %p48 = scmp.ne.s32.totalorder %s34, %s35
    %p49 = scmp.eq.s32.totalorder %s27, 1
    %p50 = por %p48, %p49
    %p52 = scmp.ne.s32.totalorder %s35, %s51
    %p53 = scmp.eq.s32.totalorder %s27, 0
    %p54 = por %p52, %p53
    %s56 = sadd.s32 %s55, 1
    %p59 = scmp.eq.s32.totalorder %s21, 1
    %p60 = scmp.ne.s32.totalorder %s55, %s57
    %p61 = scmp.eq.s32.totalorder %s21, 0
    %p62 = por %p60, %p61
    %p63 = scmp.ne.s32.totalorder %s55, %s57
    %p64 = scmp.eq.s32.totalorder %s26, 1
    %p65 = por %p63, %p64
    %p66 = scmp.ne.s32.totalorder %s57, %s58
    %p67 = scmp.eq.s32.totalorder %s26, 0
    %p68 = por %p66, %p67
    %p69 = scmp.ne.s32.totalorder %s57, %s58
    %p70 = scmp.eq.s32.totalorder %s27, 1
    %p71 = por %p69, %p70
    %p73 = scmp.ne.s32.totalorder %s58, %s72
    %p74 = scmp.eq.s32.totalorder %s27, 0
    %p75 = por %p73, %p74
    %s77 = sadd.s32 %s76, 1
    %p80 = scmp.eq.s32.totalorder %s21, 1
    %p81 = scmp.ne.s32.totalorder %s76, %s78
    %p82 = scmp.eq.s32.totalorder %s21, 0
    %p83 = por %p81, %p82
    %p84 = scmp.ne.s32.totalorder %s76, %s78
    %p85 = scmp.eq.s32.totalorder %s26, 1
    %p86 = por %p84, %p85
    %p87 = scmp.ne.s32.totalorder %s78, %s79
    %p88 = scmp.eq.s32.totalorder %s26, 0
    %p89 = por %p87, %p88
    %p90 = scmp.ne.s32.totalorder %s78, %s79
    %p91 = scmp.eq.s32.totalorder %s27, 1
    %p92 = por %p90, %p91
    %p94 = scmp.ne.s32.totalorder %s79, %s93
    %p95 = scmp.eq.s32.totalorder %s27, 0
    %p96 = por %p94, %p95
    %s98 = sadd.s32 %s97, 1
    %p101 = scmp.eq.s32.totalorder %s21, 1
    %p102 = scmp.ne.s32.totalorder %s97, %s99
    %p103 = scmp.eq.s32.totalorder %s21, 0
    %p104 = por %p102, %p103
    %p105 = scmp.ne.s32.totalorder %s97, %s99
    %p106 = scmp.eq.s32.totalorder %s26, 1
    %p107 = por %p105, %p106
    %p108 = scmp.ne.s32.totalorder %s99, %s100
    %p109 = scmp.eq.s32.totalorder %s26, 0
    %p110 = por %p108, %p109
    %p111 = scmp.ne.s32.totalorder %s99, %s100
    %p112 = scmp.eq.s32.totalorder %s27, 1
    %p113 = por %p111, %p112
    %p115 = scmp.ne.s32.totalorder %s100, %s114
    %p116 = scmp.eq.s32.totalorder %s27, 0
    %p117 = por %p115, %p116
    %s119 = sadd.s32 %s118, 1
    %p122 = scmp.eq.s32.totalorder %s21, 1
    %p123 = scmp.ne.s32.totalorder %s118, %s120
    %p124 = scmp.eq.s32.totalorder %s21, 0
    %p125 = por %p123, %p124
    %p126 = scmp.ne.s32.totalorder %s118, %s120
    %p127 = scmp.eq.s32.totalorder %s26, 1
    %p128 = por %p126, %p127
    %p129 = scmp.ne.s32.totalorder %s120, %s121
    %p130 = scmp.eq.s32.totalorder %s26, 0
    %p131 = por %p129, %p130
    %p132 = scmp.ne.s32.totalorder %s120, %s121
    %p133 = scmp.eq.s32.totalorder %s27, 1
    %p134 = por %p132, %p133
    %p136 = scmp.ne.s32.totalorder %s121, %s135
    %p137 = scmp.eq.s32.totalorder %s27, 0
    %p138 = por %p136, %p137
    %s140 = sadd.s32 %s139, 1
    %p143 = scmp.eq.s32.totalorder %s21, 1
    %p144 = scmp.ne.s32.totalorder %s139, %s141
    %p145 = scmp.eq.s32.totalorder %s21, 0
    %p146 = por %p144, %p145
    %p147 = scmp.ne.s32.totalorder %s139, %s141
    %p148 = scmp.eq.s32.totalorder %s26, 1
    %p149 = por %p147, %p148
    %p150 = scmp.ne.s32.totalorder %s141, %s142
    %p151 = scmp.eq.s32.totalorder %s26, 0
    %p152 = por %p150, %p151
    %p153 = scmp.ne.s32.totalorder %s141, %s142
    %p154 = scmp.eq.s32.totalorder %s27, 1
    %p155 = por %p153, %p154
    %p157 = scmp.ne.s32.totalorder %s142, %s156
    %p158 = scmp.eq.s32.totalorder %s27, 0
    %p159 = por %p157, %p158
    %s161 = sadd.s32 %s160, 1
    %p164 = scmp.eq.s32.totalorder %s21, 1
    %p165 = scmp.ne.s32.totalorder %s160, %s162
    %p166 = scmp.eq.s32.totalorder %s21, 0
    %p167 = por %p165, %p166
    %p168 = scmp.ne.s32.totalorder %s160, %s162
    %p169 = scmp.eq.s32.totalorder %s26, 1
    %p170 = por %p168, %p169
    %p171 = scmp.ne.s32.totalorder %s162, %s163
    %p172 = scmp.eq.s32.totalorder %s26, 0
    %p173 = por %p171, %p172
    %p174 = scmp.ne.s32.totalorder %s162, %s163
    %p175 = scmp.eq.s32.totalorder %s27, 1
    %p176 = por %p174, %p175
    %p178 = scmp.ne.s32.totalorder %s163, %s177
    %p179 = scmp.eq.s32.totalorder %s27, 0
    %p180 = por %p178, %p179
    %s182 = sadd.s32 %s181, 1
    %p185 = scmp.eq.s32.totalorder %s21, 1
    %p186 = scmp.ne.s32.totalorder %s181, %s183
    %p187 = scmp.eq.s32.totalorder %s21, 0
    %p188 = por %p186, %p187
    %p189 = scmp.ne.s32.totalorder %s181, %s183
    %p190 = scmp.eq.s32.totalorder %s26, 1
    %p191 = por %p189, %p190
    %p192 = scmp.ne.s32.totalorder %s183, %s184
    %p193 = scmp.eq.s32.totalorder %s26, 0
    %p194 = por %p192, %p193
    %p195 = scmp.ne.s32.totalorder %s183, %s184
    %p196 = scmp.eq.s32.totalorder %s27, 1
    %p197 = por %p195, %p196
    %p199 = scmp.ne.s32.totalorder %s184, %s198
    %p200 = scmp.eq.s32.totalorder %s27, 0
    %p201 = por %p199, %p200
    %s203 = sadd.s32 %s202, 1
    %p206 = scmp.eq.s32.totalorder %s21, 1
    %p207 = scmp.ne.s32.totalorder %s202, %s204
    %p208 = scmp.eq.s32.totalorder %s21, 0
    %p209 = por %p207, %p208
    %p210 = scmp.ne.s32.totalorder %s202, %s204
    %p211 = scmp.eq.s32.totalorder %s26, 1
    %p212 = por %p210, %p211
    %p213 = scmp.ne.s32.totalorder %s204, %s205
    %p214 = scmp.eq.s32.totalorder %s26, 0
    %p215 = por %p213, %p214
    %p216 = scmp.ne.s32.totalorder %s204, %s205
    %p217 = scmp.eq.s32.totalorder %s27, 1
    %p218 = por %p216, %p217
    %p220 = scmp.ne.s32.totalorder %s205, %s219
    %p221 = scmp.eq.s32.totalorder %s27, 0
    %p222 = por %p220, %p221
    %s224 = sadd.s32 %s223, 1
    %p227 = scmp.eq.s32.totalorder %s21, 1
    %p228 = scmp.ne.s32.totalorder %s223, %s225
    %p229 = scmp.eq.s32.totalorder %s21, 0
    %p230 = por %p228, %p229
    %p231 = scmp.ne.s32.totalorder %s223, %s225
    %p232 = scmp.eq.s32.totalorder %s26, 1
    %p233 = por %p231, %p232
    %p234 = scmp.ne.s32.totalorder %s225, %s226
    %p235 = scmp.eq.s32.totalorder %s26, 0
    %p236 = por %p234, %p235
    %p237 = scmp.ne.s32.totalorder %s225, %s226
    %p238 = scmp.eq.s32.totalorder %s27, 1
    %p239 = por %p237, %p238
    %p241 = scmp.ne.s32.totalorder %s226, %s240
    %p242 = scmp.eq.s32.totalorder %s27, 0
    %p243 = por %p241, %p242
    %s245 = sadd.s32 %s244, 1
    %p248 = scmp.eq.s32.totalorder %s21, 1
    %p249 = scmp.ne.s32.totalorder %s244, %s246
    %p250 = scmp.eq.s32.totalorder %s21, 0
    %p251 = por %p249, %p250
    %p252 = scmp.ne.s32.totalorder %s244, %s246
    %p253 = scmp.eq.s32.totalorder %s26, 1
    %p254 = por %p252, %p253
    %p255 = scmp.ne.s32.totalorder %s246, %s247
    %p256 = scmp.eq.s32.totalorder %s26, 0
    %p257 = por %p255, %p256
    %p258 = scmp.ne.s32.totalorder %s246, %s247
    %p259 = scmp.eq.s32.totalorder %s27, 1
    %p260 = por %p258, %p259
    %p262 = scmp.ne.s32.totalorder %s247, %s261
    %p263 = scmp.eq.s32.totalorder %s27, 0
    %p264 = por %p262, %p263
    %s266 = sadd.s32 %s265, 1
    %p269 = scmp.eq.s32.totalorder %s21, 1
    %p270 = scmp.ne.s32.totalorder %s265, %s267
    %p271 = scmp.eq.s32.totalorder %s21, 0
    %p272 = por %p270, %p271
    %p273 = scmp.ne.s32.totalorder %s265, %s267
    %p274 = scmp.eq.s32.totalorder %s26, 1
    %p275 = por %p273, %p274
    %p276 = scmp.ne.s32.totalorder %s267, %s268
    %p277 = scmp.eq.s32.totalorder %s26, 0
    %p278 = por %p276, %p277
    %p279 = scmp.ne.s32.totalorder %s267, %s268
    %p280 = scmp.eq.s32.totalorder %s27, 1
    %p281 = por %p279, %p280
    %p283 = scmp.ne.s32.totalorder %s268, %s282
    %p284 = scmp.eq.s32.totalorder %s27, 0
    %p285 = por %p283, %p284
    %s287 = sadd.s32 %s286, 1
    %p290 = scmp.eq.s32.totalorder %s21, 1
    %p291 = scmp.ne.s32.totalorder %s286, %s288
    %p292 = scmp.eq.s32.totalorder %s21, 0
    %p293 = por %p291, %p292
    %p294 = scmp.ne.s32.totalorder %s286, %s288
    %p295 = scmp.eq.s32.totalorder %s26, 1
    %p296 = por %p294, %p295
    %p297 = scmp.ne.s32.totalorder %s288, %s289
    %p298 = scmp.eq.s32.totalorder %s26, 0
    %p299 = por %p297, %p298
    %p300 = scmp.ne.s32.totalorder %s288, %s289
    %p301 = scmp.eq.s32.totalorder %s27, 1
    %p302 = por %p300, %p301
    %p304 = scmp.ne.s32.totalorder %s289, %s303
    %p305 = scmp.eq.s32.totalorder %s27, 0
    %p306 = por %p304, %p305
    %s308 = sadd.s32 %s307, 1
    %p311 = scmp.eq.s32.totalorder %s21, 1
    %p312 = scmp.ne.s32.totalorder %s307, %s309
    %p313 = scmp.eq.s32.totalorder %s21, 0
    %p314 = por %p312, %p313
    %p315 = scmp.ne.s32.totalorder %s307, %s309
    %p316 = scmp.eq.s32.totalorder %s26, 1
    %p317 = por %p315, %p316
    %p318 = scmp.ne.s32.totalorder %s309, %s310
    %p319 = scmp.eq.s32.totalorder %s26, 0
    %p320 = por %p318, %p319
    %p321 = scmp.ne.s32.totalorder %s309, %s310
    %p322 = scmp.eq.s32.totalorder %s27, 1
    %p323 = por %p321, %p322
    %p325 = scmp.ne.s32.totalorder %s310, %s324
    %p326 = scmp.eq.s32.totalorder %s27, 0
    %p327 = por %p325, %p326
    %s329 = sadd.s32 %s328, 1
    %p332 = scmp.eq.s32.totalorder %s21, 1
    %p333 = scmp.ne.s32.totalorder %s328, %s330
    %p334 = scmp.eq.s32.totalorder %s21, 0
    %p335 = por %p333, %p334
    %p336 = scmp.ne.s32.totalorder %s328, %s330
    %p337 = scmp.eq.s32.totalorder %s26, 1
    %p338 = por %p336, %p337
    %p339 = scmp.ne.s32.totalorder %s330, %s331
    %p340 = scmp.eq.s32.totalorder %s26, 0
    %p341 = por %p339, %p340
    %p342 = scmp.ne.s32.totalorder %s330, %s331
    %p343 = scmp.eq.s32.totalorder %s27, 1
    %p344 = por %p342, %p343
    %p346 = scmp.ne.s32.totalorder %s331, %s345
    %p347 = scmp.eq.s32.totalorder %s27, 0
    %p348 = por %p346, %p347
    %s349 = ssub.s32 %s21, %s28
    %p350 = scmp.eq.s32.totalorder %s349, 0
    %s352 = sadd.s32 %s351, 1
    %s353 = scalar_select %p350, %s351, %s352
    %p356 = pneg %p350
    %p357 = scmp.eq.s32.totalorder %s21, 1
    %p358 = por %p356, %p357
    %p359 = scmp.ne.s32.totalorder %s351, %s354
    %p360 = scmp.eq.s32.totalorder %s21, 0
    %p361 = por %p359, %p360
    %p362 = scmp.ne.s32.totalorder %s351, %s354
    %p363 = scmp.eq.s32.totalorder %s26, 1
    %p364 = por %p362, %p363
    %p365 = scmp.ne.s32.totalorder %s354, %s355
    %p366 = scmp.eq.s32.totalorder %s26, 0
    %p367 = por %p365, %p366
    %p368 = scmp.ne.s32.totalorder %s354, %s355
    %p369 = scmp.eq.s32.totalorder %s27, 1
    %p370 = por %p368, %p369
    %p372 = scmp.ne.s32.totalorder %s355, %s371
    %p373 = scmp.eq.s32.totalorder %s27, 0
    %p374 = por %p372, %p373
    %p375 = scmp.le.s32.totalorder 1, %s21
    %p376 = scmp.lt.s32.totalorder %s21, 3
    %p377 = pnand %p375, %p376
    %p378 = pneg %p377
    // Predicated region
    $region9: #{lenet5_forward.1} parent=5 // pred_check
      _
    $region10: #{lenet5_forward.1} parent=5 // pred_check_branch
      %380 = sbr.rel (%p377) target = $region12
    $region11: #{lenet5_forward.1} parent=5 // pred_region
      %s381 = ssub.s32 %s21, 1
      // Predicated region
      $region13: #{lenet5_forward.1} parent=11 // pred_check
        %p382 = pneg %p68
      $region14: #{lenet5_forward.1} parent=11 // pred_check_branch
        %384 = sbr.rel (%p382) target = $region16
      $region15: #{lenet5_forward.1} parent=11 // pred_region
        _
      $region16: #{lenet5_forward.1} parent=11 // pred_fallthru
        _
      // Predicated region
      $region17: #{lenet5_forward.1} parent=11 // pred_check
        %p385 = pneg %p89
      $region18: #{lenet5_forward.1} parent=11 // pred_check_branch
        %387 = sbr.rel (%p385) target = $region20
      $region19: #{lenet5_forward.1} parent=11 // pred_region
        _
      $region20: #{lenet5_forward.1} parent=11 // pred_fallthru
        _
      // Predicated region
      $region21: #{lenet5_forward.1} parent=11 // pred_check
        %p388 = pneg %p110
      $region22: #{lenet5_forward.1} parent=11 // pred_check_branch
        %390 = sbr.rel (%p388) target = $region24
      $region23: #{lenet5_forward.1} parent=11 // pred_region
        _
      $region24: #{lenet5_forward.1} parent=11 // pred_fallthru
        _
      // Predicated region
      $region25: #{lenet5_forward.1} parent=11 // pred_check
        %p391 = pneg %p131
      $region26: #{lenet5_forward.1} parent=11 // pred_check_branch
        %393 = sbr.rel (%p391) target = $region28
      $region27: #{lenet5_forward.1} parent=11 // pred_region
        _
      $region28: #{lenet5_forward.1} parent=11 // pred_fallthru
        _
      // Predicated region
      $region29: #{lenet5_forward.1} parent=11 // pred_check
        %p394 = pneg %p152
      $region30: #{lenet5_forward.1} parent=11 // pred_check_branch
        %396 = sbr.rel (%p394) target = $region32
      $region31: #{lenet5_forward.1} parent=11 // pred_region
        _
      $region32: #{lenet5_forward.1} parent=11 // pred_fallthru
        _
      // Predicated region
      $region33: #{lenet5_forward.1} parent=11 // pred_check
        %p397 = pneg %p173
      $region34: #{lenet5_forward.1} parent=11 // pred_check_branch
        %399 = sbr.rel (%p397) target = $region36
      $region35: #{lenet5_forward.1} parent=11 // pred_region
        _
      $region36: #{lenet5_forward.1} parent=11 // pred_fallthru
        _
      // Predicated region
      $region37: #{lenet5_forward.1} parent=11 // pred_check
        %p400 = pneg %p194
      $region38: #{lenet5_forward.1} parent=11 // pred_check_branch
        %402 = sbr.rel (%p400) target = $region40
      $region39: #{lenet5_forward.1} parent=11 // pred_region
        _
      $region40: #{lenet5_forward.1} parent=11 // pred_fallthru
        _
      // Predicated region
      $region41: #{lenet5_forward.1} parent=11 // pred_check
        %p403 = pneg %p215
      $region42: #{lenet5_forward.1} parent=11 // pred_check_branch
        %405 = sbr.rel (%p403) target = $region44
      $region43: #{lenet5_forward.1} parent=11 // pred_region
        _
      $region44: #{lenet5_forward.1} parent=11 // pred_fallthru
        _
      // Predicated region
      $region45: #{lenet5_forward.1} parent=11 // pred_check
        %p406 = pneg %p236
      $region46: #{lenet5_forward.1} parent=11 // pred_check_branch
        %408 = sbr.rel (%p406) target = $region48
      $region47: #{lenet5_forward.1} parent=11 // pred_region
        _
      $region48: #{lenet5_forward.1} parent=11 // pred_fallthru
        _
      // Predicated region
      $region49: #{lenet5_forward.1} parent=11 // pred_check
        %p409 = pneg %p257
      $region50: #{lenet5_forward.1} parent=11 // pred_check_branch
        %411 = sbr.rel (%p409) target = $region52
      $region51: #{lenet5_forward.1} parent=11 // pred_region
        _
      $region52: #{lenet5_forward.1} parent=11 // pred_fallthru
        _
      // Predicated region
      $region53: #{lenet5_forward.1} parent=11 // pred_check
        %p412 = pneg %p278
      $region54: #{lenet5_forward.1} parent=11 // pred_check_branch
        %414 = sbr.rel (%p412) target = $region56
      $region55: #{lenet5_forward.1} parent=11 // pred_region
        _
      $region56: #{lenet5_forward.1} parent=11 // pred_fallthru
        _
      // Predicated region
      $region57: #{lenet5_forward.1} parent=11 // pred_check
        %p415 = pneg %p299
      $region58: #{lenet5_forward.1} parent=11 // pred_check_branch
        %417 = sbr.rel (%p415) target = $region60
      $region59: #{lenet5_forward.1} parent=11 // pred_region
        _
      $region60: #{lenet5_forward.1} parent=11 // pred_fallthru
        _
      // Predicated region
      $region61: #{lenet5_forward.1} parent=11 // pred_check
        %p418 = pneg %p320
      $region62: #{lenet5_forward.1} parent=11 // pred_check_branch
        %420 = sbr.rel (%p418) target = $region64
      $region63: #{lenet5_forward.1} parent=11 // pred_region
        _
      $region64: #{lenet5_forward.1} parent=11 // pred_fallthru
        _
      // Predicated region
      $region65: #{lenet5_forward.1} parent=11 // pred_check
        %p421 = pneg %p341
      $region66: #{lenet5_forward.1} parent=11 // pred_check_branch
        %423 = sbr.rel (%p421) target = $region68
      $region67: #{lenet5_forward.1} parent=11 // pred_region
        _
      $region68: #{lenet5_forward.1} parent=11 // pred_fallthru
        _
    $region12: #{lenet5_forward.1} parent=5 // pred_fallthru
      _
    %p424 = scmp.lt.s32.totalorder %s21, 2
    // Predicated region
    $region69: #{lenet5_forward.1} parent=5 // pred_check
      %p425 = pneg %p424
    $region70: #{lenet5_forward.1} parent=5 // pred_check_branch
      %427 = sbr.rel (%p425) target = $region72
    $region71: #{lenet5_forward.1} parent=5 // pred_region
      // Predicated region
      $region73: #{lenet5_forward.1} parent=71 // pred_check
        %p428 = pneg %p41
      $region74: #{lenet5_forward.1} parent=71 // pred_check_branch
        %430 = sbr.rel (%p428) target = $region76
      $region75: #{lenet5_forward.1} parent=71 // pred_region
        %p431 = scmp.lt.s32.totalorder %s21, 1
        %s432 = scalar_select %p431, %s21, 1
        %s433 = smul.addr %s432, 4
        %s434 = smul.addr %s433, 8
        %s435 = scalar_lea.vmem %s0, %s434
      $region76: #{lenet5_forward.1} parent=71 // pred_fallthru
        _
    $region72: #{lenet5_forward.1} parent=5 // pred_fallthru
      _
    %p436 = scmp.le.s32.totalorder 1, %s21
    %p437 = scmp.lt.s32.totalorder %s21, 3
    %p438 = pnand %p436, %p437
    %p439 = pneg %p438
    // Predicated region
    $region77: #{lenet5_forward.1} parent=5 // pred_check
      _
    $region78: #{lenet5_forward.1} parent=5 // pred_check_branch
      %441 = sbr.rel (%p438) target = $region80
    $region79: #{lenet5_forward.1} parent=5 // pred_region
      %s442 = ssub.s32 %s21, 1
      %p443 = scmp.lt.s32.totalorder %s26, 1
      %s444 = scalar_select %p443, %s26, 1
      %s445 = smul.addr %s444, 4
      %s446 = smul.addr %s445, 8
      %s447 = scalar_lea.vmem %s0, %s446
      %p448 = pneg %p47
      %p449 = pneg %p44
      %p450 = pneg %p68
      %p451 = pneg %p65
      %p452 = pneg %p89
      %p453 = pneg %p86
      %p454 = pneg %p110
      %p455 = pneg %p107
      %p456 = pneg %p131
      %p457 = pneg %p128
      %p458 = pneg %p152
      %p459 = pneg %p149
      %p460 = pneg %p173
      %p461 = pneg %p170
      %p462 = pneg %p194
      %p463 = pneg %p191
      %p464 = pneg %p215
      %p465 = pneg %p212
      %p466 = pneg %p236
      %p467 = pneg %p233
      %p468 = pneg %p257
      %p469 = pneg %p254
      %p470 = pneg %p278
      %p471 = pneg %p275
      %p472 = pneg %p299
      %p473 = pneg %p296
      %p474 = pneg %p320
      %p475 = pneg %p317
      %p476 = pneg %p341
      %p477 = pneg %p338
      %p478 = pneg %p367
      %p479 = pneg %p364
      %p480 = scmp.lt.s32.totalorder %s26, 1
      %s481 = scalar_select %p480, %s26, 1
      %s482 = smul.addr %s481, 2
      %s483 = smul.addr %s482, 8
      %s484 = scalar_lea.vmem %s15, %s483
      %p485 = scmp.lt.s32.totalorder %s26, 1
      %s486 = scalar_select %p485, %s26, 1
      %s487 = smul.addr %s486, 4
      %s488 = smul.addr %s487, 8
      %s489 = scalar_lea.vmem %s0, %s488
      %p490 = scmp.lt.s32.totalorder %s26, 1
      %s491 = scalar_select %p490, %s26, 1
      %s492 = smul.addr %s491, 2
      %s493 = smul.addr %s492, 8
      %s494 = scalar_lea.vmem %s15, %s493
      %v496 = vld [vmem:[%s489] sm:$0xff]
      %v497 = vld [vmem:[%s489 + $0x8] sm:$0xff]
      %v498 = vld [vmem:[%s489 + $0x10] sm:$0xff]
      %v499 = vld [vmem:[%s489 + $0x18] sm:$0xff]
      %v500 = vld [vmem:[%s10] sm:$0xff]
      %v501 = vld [vmem:[%s10 + $0x8] sm:$0xff]
      %v502 = vld [vmem:[%s10 + $0x10] sm:$0xff]
      %v503 = vld [vmem:[%s10 + $0x18] sm:$0xff]
      %v504 = vld [vmem:[%s10 + $0x20] sm:$0xff]
      %v505 = vld [vmem:[%s10 + $0x28] sm:$0xff]
      %v506 = vld [vmem:[%s10 + $0x30] sm:$0xff]
      %v507 = vld [vmem:[%s10 + $0x38] sm:$0xff]
      %v508 = vld [vmem:[%s10 + $0x40] sm:$0xff]
      %v509 = vld [vmem:[%s10 + $0x48] sm:$0xff]
      %v510 = vld [vmem:[%s10 + $0x50] sm:$0xff]
      %v511 = vld [vmem:[%s10 + $0x58] sm:$0xff]
      %v512 = vld [vmem:[%s10 + $0x60] sm:$0xff]
      %v513 = vld [vmem:[%s10 + $0x68] sm:$0xff]
      %v514 = vld [vmem:[%s10 + $0x70] sm:$0xff]
      %v515 = vld [vmem:[%s10 + $0x78] sm:$0xff]
      %v516 = vld [vmem:[%s10 + $0x80] sm:$0xff]
      %v517 = vld [vmem:[%s10 + $0x88] sm:$0xff]
      %v518 = vld [vmem:[%s10 + $0x90] sm:$0xff]
      %v519 = vld [vmem:[%s10 + $0x98] sm:$0xff]
      %v520 = vld [vmem:[%s10 + $0xa0] sm:$0xff]
      %v521 = vld [vmem:[%s1] sm:$0xf]
      %v522 = vld [vmem:[%s1 + $0x4] sm:$0xf]
      %v523 = vld [vmem:[%s1 + $0x8] sm:$0xf]
      %v524 = vld [vmem:[%s1 + $0xc] sm:$0xf]
      %v525 = vld [vmem:[%s1 + $0x10] sm:$0xf]
      %v526 = vld [vmem:[%s1 + $0x14] sm:$0xf]
      %v527 = vld [vmem:[%s1 + $0x18] sm:$0xf]
      %v528 = vld [vmem:[%s1 + $0x1c] sm:$0xf]
      %v529 = vld [vmem:[%s1 + $0x20] sm:$0xf]
      %v530 = vld [vmem:[%s1 + $0x24] sm:$0xf]
      %v531 = vld [vmem:[%s1 + $0x28] sm:$0xf]
      %v532 = vld [vmem:[%s1 + $0x2c] sm:$0xf]
      %v533 = vld [vmem:[%s1 + $0x30] sm:$0xf]
      %v534 = vld [vmem:[%s1 + $0x34] sm:$0xf]
      %v535 = vld [vmem:[%s1 + $0x38] sm:$0xf]
      %v536 = vld [vmem:[%s1 + $0x3c] sm:$0xf]
      %v537 = vld [vmem:[%s1 + $0x40] sm:$0xf]
      %v538 = vld [vmem:[%s1 + $0x44] sm:$0xf]
      %v539 = vld [vmem:[%s1 + $0x48] sm:$0xf]
      %v540 = vld [vmem:[%s1 + $0x4c] sm:$0xf]
      %v541 = vld [vmem:[%s1 + $0x50] sm:$0xf]
      %v542 = vpack.c.bf16 %v497, %v496
      %v543 = vpack.c.bf16 %v499, %v498
      %s544 = scalar_lea.vmem %s1, 84
      %v545 = vld [vmem:[%s544] sm:$0xf]
      %v546 = vld [vmem:[%s544 + $0x4] sm:$0xf]
      %v547 = vld [vmem:[%s544 + $0x8] sm:$0xf]
      %v548 = vld [vmem:[%s544 + $0xc] sm:$0xf]
      %v549 = vld [vmem:[%s544 + $0x10] sm:$0xf]
      %v550 = vld [vmem:[%s544 + $0x14] sm:$0xf]
      %v551 = vld [vmem:[%s544 + $0x18] sm:$0xf]
      %v552 = vld [vmem:[%s544 + $0x1c] sm:$0xf]
      %v553 = vld [vmem:[%s544 + $0x20] sm:$0xf]
      %v554 = vld [vmem:[%s544 + $0x24] sm:$0xf]
      %v555 = vld [vmem:[%s544 + $0x28] sm:$0xf]
      %v556 = vld [vmem:[%s544 + $0x2c] sm:$0xf]
      %v557 = vld [vmem:[%s544 + $0x30] sm:$0xf]
      %v558 = vld [vmem:[%s544 + $0x34] sm:$0xf]
      %v559 = vld [vmem:[%s544 + $0x38] sm:$0xf]
      %v560 = vld [vmem:[%s544 + $0x3c] sm:$0xf]
      %v561 = vld [vmem:[%s544 + $0x40] sm:$0xf]
      %v562 = vld [vmem:[%s544 + $0x44] sm:$0xf]
      %v563 = vld [vmem:[%s544 + $0x48] sm:$0xf]
      %v564 = vld [vmem:[%s544 + $0x4c] sm:$0xf]
      %v565 = vld [vmem:[%s544 + $0x50] sm:$0xf]
      %v587 = vunpack.c.l.b16 %v545
      %v588 = vunpack.c.l.b16 %v546
      %v589 = vunpack.c.l.b16 %v547
      %v590 = vunpack.c.l.b16 %v548
      %v591 = vunpack.c.l.b16 %v549
      %v592 = vunpack.c.l.b16 %v550
      %v593 = vunpack.c.l.b16 %v551
      %v594 = vunpack.c.l.b16 %v552
      %v595 = vunpack.c.l.b16 %v553
      %v596 = vunpack.c.l.b16 %v554
      %v597 = vunpack.c.l.b16 %v555
      %v598 = vunpack.c.l.b16 %v556
      %v599 = vunpack.c.l.b16 %v557
      %v600 = vunpack.c.l.b16 %v558
      %v601 = vunpack.c.l.b16 %v559
      %v602 = vunpack.c.l.b16 %v560
      %v603 = vunpack.c.l.b16 %v561
      %v604 = vunpack.c.l.b16 %v562
      %v605 = vunpack.c.l.b16 %v563
      %v606 = vunpack.c.l.b16 %v564
      %v607 = vunpack.c.l.b16 %v565
      %v608 = vpack.c.b16 %v588, %v587
      %v609 = vpack.c.b16 %v590, %v589
      %v610 = vpack.c.b16 %v592, %v591
      %v611 = vpack.c.b16 %v594, %v593
      %v612 = vpack.c.b16 %v596, %v595
      %v613 = vpack.c.b16 %v598, %v597
      %v614 = vpack.c.b16 %v600, %v599
      %v615 = vpack.c.b16 %v602, %v601
      %v616 = vpack.c.b16 %v604, %v603
      %v617 = vpack.c.b16 %v606, %v605
      %v618 = vpack.c.b16 %v607, %v607
      %621 = vrot.lane.b32.xlu0 %v542, 127
      %v622 = vpop.permute.xlu0 %621
      %623 = vrot.lane.b32.xlu0 %v543, 127
      %v624 = vpop.permute.xlu0 %623
      %vm627 = vcmask 261120
      %v629 = vsel %vm627, %v608, 0
      %v632 = vsel %vm627, %v609, 0
      %v635 = vsel %vm627, %v610, 0
      %v638 = vsel %vm627, %v611, 0
      %v641 = vsel %vm627, %v612, 0
      %v644 = vsel %vm627, %v613, 0
      %v647 = vsel %vm627, %v614, 0
      %v650 = vsel %vm627, %v615, 0
      %v653 = vsel %vm627, %v616, 0
      %v656 = vsel %vm627, %v617, 0
      %v659 = vsel %vm627, %v618, 0
      %661 = vmatpush.bf16.msra.mxu0 0
      %662 = vmatpush.bf16.msra.mxu0 0
      %663 = vmatpush.bf16.msra.mxu0 0
      %664 = vmatpush.bf16.msra.mxu0 0
      %665 = vmatpush.bf16.msra.mxu0 0
      %666 = vmatpush.bf16.msra.mxu0 0
      %667 = vmatpush.bf16.msra.mxu0 %v624
      %668 = vmatpush.bf16.msra.mxu0 %v622
      %669 = vmatmul.bf16.gmra.mxu0 %v629
      %v670 = vpop.f32.mrf.mxu0
      %v671 = vadd.f32 0.0, %v670
      %v672 = vpop.f32.mrf.mxu0
      %v673 = vadd.f32 0.0, %v672
      %674 = vmatmul.bf16.gmra.mxu0 %v632
      %v675 = vpop.f32.mrf.mxu0
      %v676 = vadd.f32 0.0, %v675
      %v677 = vpop.f32.mrf.mxu0
      %v678 = vadd.f32 0.0, %v677
      %679 = vmatmul.bf16.gmra.mxu0 %v635
      %v680 = vpop.f32.mrf.mxu0
      %v681 = vadd.f32 0.0, %v680
      %v682 = vpop.f32.mrf.mxu0
      %v683 = vadd.f32 0.0, %v682
      %684 = vmatmul.bf16.gmra.mxu0 %v638
      %v685 = vpop.f32.mrf.mxu0
      %v686 = vadd.f32 0.0, %v685
      %v687 = vpop.f32.mrf.mxu0
      %v688 = vadd.f32 0.0, %v687
      %689 = vmatmul.bf16.gmra.mxu0 %v641
      %v690 = vpop.f32.mrf.mxu0
      %v691 = vadd.f32 0.0, %v690
      %v692 = vpop.f32.mrf.mxu0
      %v693 = vadd.f32 0.0, %v692
      %694 = vmatmul.bf16.gmra.mxu0 %v644
      %v695 = vpop.f32.mrf.mxu0
      %v696 = vadd.f32 0.0, %v695
      %v697 = vpop.f32.mrf.mxu0
      %v698 = vadd.f32 0.0, %v697
      %699 = vmatmul.bf16.gmra.mxu0 %v647
      %v700 = vpop.f32.mrf.mxu0
      %v701 = vadd.f32 0.0, %v700
      %v702 = vpop.f32.mrf.mxu0
      %v703 = vadd.f32 0.0, %v702
      %704 = vmatmul.bf16.gmra.mxu0 %v650
      %v705 = vpop.f32.mrf.mxu0
      %v706 = vadd.f32 0.0, %v705
      %v707 = vpop.f32.mrf.mxu0
      %v708 = vadd.f32 0.0, %v707
      %709 = vmatmul.bf16.gmra.mxu0 %v653
      %v710 = vpop.f32.mrf.mxu0
      %v711 = vadd.f32 0.0, %v710
      %v712 = vpop.f32.mrf.mxu0
      %v713 = vadd.f32 0.0, %v712
      %714 = vmatmul.bf16.gmra.mxu0 %v656
      %v715 = vpop.f32.mrf.mxu0
      %v716 = vadd.f32 0.0, %v715
      %v717 = vpop.f32.mrf.mxu0
      %v718 = vadd.f32 0.0, %v717
      %719 = vmatmul.bf16.gmra.mxu0 %v659
      %v720 = vpop.f32.mrf.mxu0
      %v721 = vadd.f32 0.0, %v720
      %v722 = vpop.f32.mrf.mxu0
      %723 = vdwg.mxu0
      %v745 = vunpack.c.l.b16 %v521
      %v746 = vunpack.c.l.b16 %v522
      %v747 = vunpack.c.l.b16 %v523
      %v748 = vunpack.c.l.b16 %v524
      %v749 = vunpack.c.l.b16 %v525
      %v750 = vunpack.c.l.b16 %v526
      %v751 = vunpack.c.l.b16 %v527
      %v752 = vunpack.c.l.b16 %v528
      %v753 = vunpack.c.l.b16 %v529
      %v754 = vunpack.c.l.b16 %v530
      %v755 = vunpack.c.l.b16 %v531
      %v756 = vunpack.c.l.b16 %v532
      %v757 = vunpack.c.l.b16 %v533
      %v758 = vunpack.c.l.b16 %v534
      %v759 = vunpack.c.l.b16 %v535
      %v760 = vunpack.c.l.b16 %v536
      %v761 = vunpack.c.l.b16 %v537
      %v762 = vunpack.c.l.b16 %v538
      %v763 = vunpack.c.l.b16 %v539
      %v764 = vunpack.c.l.b16 %v540
      %v765 = vunpack.c.l.b16 %v541
      %v766 = vpack.c.b16 %v746, %v745
      %v767 = vpack.c.b16 %v748, %v747
      %v768 = vpack.c.b16 %v750, %v749
      %v769 = vpack.c.b16 %v752, %v751
      %v770 = vpack.c.b16 %v754, %v753
      %v771 = vpack.c.b16 %v756, %v755
      %v772 = vpack.c.b16 %v758, %v757
      %v773 = vpack.c.b16 %v760, %v759
      %v774 = vpack.c.b16 %v762, %v761
      %v775 = vpack.c.b16 %v764, %v763
      %v776 = vpack.c.b16 %v765, %v765
      %v778 = vsel %vm627, %v766, 0
      %v781 = vsel %vm627, %v767, 0
      %v784 = vsel %vm627, %v768, 0
      %v787 = vsel %vm627, %v769, 0
      %v790 = vsel %vm627, %v770, 0
      %v793 = vsel %vm627, %v771, 0
      %v796 = vsel %vm627, %v772, 0
      %v799 = vsel %vm627, %v773, 0
      %v802 = vsel %vm627, %v774, 0
      %v805 = vsel %vm627, %v775, 0
      %v808 = vsel %vm627, %v776, 0
      %810 = vmatpush.bf16.msra.mxu0 0
      %811 = vmatpush.bf16.msra.mxu0 0
      %812 = vmatpush.bf16.msra.mxu0 0
      %813 = vmatpush.bf16.msra.mxu0 0
      %814 = vmatpush.bf16.msra.mxu0 0
      %815 = vmatpush.bf16.msra.mxu0 0
      %816 = vmatpush.bf16.msra.mxu0 %v543
      %817 = vmatpush.bf16.msra.mxu0 %v542
      %818 = vmatmul.bf16.gmra.mxu0 %v778
      %v819 = vpop.f32.mrf.mxu0
      %v820 = vadd.f32 %v671, %v819
      %v821 = vpop.f32.mrf.mxu0
      %v822 = vadd.f32 %v673, %v821
      %823 = vmatmul.bf16.gmra.mxu0 %v781
      %v824 = vpop.f32.mrf.mxu0
      %v825 = vadd.f32 %v676, %v824
      %v826 = vpop.f32.mrf.mxu0
      %v827 = vadd.f32 %v678, %v826
      %828 = vmatmul.bf16.gmra.mxu0 %v784
      %v829 = vpop.f32.mrf.mxu0
      %v830 = vadd.f32 %v681, %v829
      %v831 = vpop.f32.mrf.mxu0
      %v832 = vadd.f32 %v683, %v831
      %833 = vmatmul.bf16.gmra.mxu0 %v787
      %v834 = vpop.f32.mrf.mxu0
      %v835 = vadd.f32 %v686, %v834
      %v836 = vpop.f32.mrf.mxu0
      %v837 = vadd.f32 %v688, %v836
      %838 = vmatmul.bf16.gmra.mxu0 %v790
      %v839 = vpop.f32.mrf.mxu0
      %v840 = vadd.f32 %v691, %v839
      %v841 = vpop.f32.mrf.mxu0
      %v842 = vadd.f32 %v693, %v841
      %843 = vmatmul.bf16.gmra.mxu0 %v793
      %v844 = vpop.f32.mrf.mxu0
      %v845 = vadd.f32 %v696, %v844
      %v846 = vpop.f32.mrf.mxu0
      %v847 = vadd.f32 %v698, %v846
      %848 = vmatmul.bf16.gmra.mxu0 %v796
      %v849 = vpop.f32.mrf.mxu0
      %v850 = vadd.f32 %v701, %v849
      %v851 = vpop.f32.mrf.mxu0
      %v852 = vadd.f32 %v703, %v851
      %853 = vmatmul.bf16.gmra.mxu0 %v799
      %v854 = vpop.f32.mrf.mxu0
      %v855 = vadd.f32 %v706, %v854
      %v856 = vpop.f32.mrf.mxu0
      %v857 = vadd.f32 %v708, %v856
      %858 = vmatmul.bf16.gmra.mxu0 %v802
      %v859 = vpop.f32.mrf.mxu0
      %v860 = vadd.f32 %v711, %v859
      %v861 = vpop.f32.mrf.mxu0
      %v862 = vadd.f32 %v713, %v861
      %863 = vmatmul.bf16.gmra.mxu0 %v805
      %v864 = vpop.f32.mrf.mxu0
      %v865 = vadd.f32 %v716, %v864
      %v866 = vpop.f32.mrf.mxu0
      %v867 = vadd.f32 %v718, %v866
      %868 = vmatmul.bf16.gmra.mxu0 %v808
      %v869 = vpop.f32.mrf.mxu0
      %v870 = vadd.f32 %v721, %v869
      %v871 = vpop.f32.mrf.mxu0
      %872 = vdwg.mxu0
      %s873 = scalar_lea.vmem %s1, 168
      %v874 = vld [vmem:[%s873] sm:$0xf]
      %v875 = vld [vmem:[%s873 + $0x4] sm:$0xf]
      %v876 = vld [vmem:[%s873 + $0x8] sm:$0xf]
      %v877 = vld [vmem:[%s873 + $0xc] sm:$0xf]
      %v878 = vld [vmem:[%s873 + $0x10] sm:$0xf]
      %v879 = vld [vmem:[%s873 + $0x14] sm:$0xf]
      %v880 = vld [vmem:[%s873 + $0x18] sm:$0xf]
      %v881 = vld [vmem:[%s873 + $0x1c] sm:$0xf]
      %v882 = vld [vmem:[%s873 + $0x20] sm:$0xf]
      %v883 = vld [vmem:[%s873 + $0x24] sm:$0xf]
      %v884 = vld [vmem:[%s873 + $0x28] sm:$0xf]
      %v885 = vld [vmem:[%s873 + $0x2c] sm:$0xf]
      %v886 = vld [vmem:[%s873 + $0x30] sm:$0xf]
      %v887 = vld [vmem:[%s873 + $0x34] sm:$0xf]
      %v888 = vld [vmem:[%s873 + $0x38] sm:$0xf]
      %v889 = vld [vmem:[%s873 + $0x3c] sm:$0xf]
      %v890 = vld [vmem:[%s873 + $0x40] sm:$0xf]
      %v891 = vld [vmem:[%s873 + $0x44] sm:$0xf]
      %v892 = vld [vmem:[%s873 + $0x48] sm:$0xf]
      %v893 = vld [vmem:[%s873 + $0x4c] sm:$0xf]
      %v894 = vld [vmem:[%s873 + $0x50] sm:$0xf]
      %v916 = vunpack.c.l.b16 %v874
      %v917 = vunpack.c.l.b16 %v875
      %v918 = vunpack.c.l.b16 %v876
      %v919 = vunpack.c.l.b16 %v877
      %v920 = vunpack.c.l.b16 %v878
      %v921 = vunpack.c.l.b16 %v879
      %v922 = vunpack.c.l.b16 %v880
      %v923 = vunpack.c.l.b16 %v881
      %v924 = vunpack.c.l.b16 %v882
      %v925 = vunpack.c.l.b16 %v883
      %v926 = vunpack.c.l.b16 %v884
      %v927 = vunpack.c.l.b16 %v885
      %v928 = vunpack.c.l.b16 %v886
      %v929 = vunpack.c.l.b16 %v887
      %v930 = vunpack.c.l.b16 %v888
      %v931 = vunpack.c.l.b16 %v889
      %v932 = vunpack.c.l.b16 %v890
      %v933 = vunpack.c.l.b16 %v891
      %v934 = vunpack.c.l.b16 %v892
      %v935 = vunpack.c.l.b16 %v893
      %v936 = vunpack.c.l.b16 %v894
      %v937 = vpack.c.b16 %v917, %v916
      %v938 = vpack.c.b16 %v919, %v918
      %v939 = vpack.c.b16 %v921, %v920
      %v940 = vpack.c.b16 %v923, %v922
      %v941 = vpack.c.b16 %v925, %v924
      %v942 = vpack.c.b16 %v927, %v926
      %v943 = vpack.c.b16 %v929, %v928
      %v944 = vpack.c.b16 %v931, %v930
      %v945 = vpack.c.b16 %v933, %v932
      %v946 = vpack.c.b16 %v935, %v934
      %v947 = vpack.c.b16 %v936, %v936
      %948 = vrot.lane.b32.xlu0 %v542, 126
      %v949 = vpop.permute.xlu0 %948
      %950 = vrot.lane.b32.xlu0 %v543, 126
      %v951 = vpop.permute.xlu0 %950
      %v955 = vsel %vm627, %v937, 0
      %v958 = vsel %vm627, %v938, 0
      %v961 = vsel %vm627, %v939, 0
      %v964 = vsel %vm627, %v940, 0
      %v967 = vsel %vm627, %v941, 0
      %v970 = vsel %vm627, %v942, 0
      %v973 = vsel %vm627, %v943, 0
      %v976 = vsel %vm627, %v944, 0
      %v979 = vsel %vm627, %v945, 0
      %v982 = vsel %vm627, %v946, 0
      %v985 = vsel %vm627, %v947, 0
      %987 = vmatpush.bf16.msra.mxu0 0
      %988 = vmatpush.bf16.msra.mxu0 0
      %989 = vmatpush.bf16.msra.mxu0 0
      %990 = vmatpush.bf16.msra.mxu0 0
      %991 = vmatpush.bf16.msra.mxu0 0
      %992 = vmatpush.bf16.msra.mxu0 0
      %993 = vmatpush.bf16.msra.mxu0 %v951
      %994 = vmatpush.bf16.msra.mxu0 %v949
      %995 = vmatmul.bf16.gmra.mxu0 %v955
      %v996 = vpop.f32.mrf.mxu0
      %v997 = vadd.f32 0.0, %v996
      %v998 = vpop.f32.mrf.mxu0
      %v999 = vadd.f32 0.0, %v998
      %1000 = vmatmul.bf16.gmra.mxu0 %v958
      %v1001 = vpop.f32.mrf.mxu0
      %v1002 = vadd.f32 0.0, %v1001
      %v1003 = vpop.f32.mrf.mxu0
      %v1004 = vadd.f32 0.0, %v1003
      %1005 = vmatmul.bf16.gmra.mxu0 %v961
      %v1006 = vpop.f32.mrf.mxu0
      %v1007 = vadd.f32 0.0, %v1006
      %v1008 = vpop.f32.mrf.mxu0
      %v1009 = vadd.f32 0.0, %v1008
      %1010 = vmatmul.bf16.gmra.mxu0 %v964
      %v1011 = vpop.f32.mrf.mxu0
      %v1012 = vadd.f32 0.0, %v1011
      %v1013 = vpop.f32.mrf.mxu0
      %v1014 = vadd.f32 0.0, %v1013
      %1015 = vmatmul.bf16.gmra.mxu0 %v967
      %v1016 = vpop.f32.mrf.mxu0
      %v1017 = vadd.f32 0.0, %v1016
      %v1018 = vpop.f32.mrf.mxu0
      %v1019 = vadd.f32 0.0, %v1018
      %1020 = vmatmul.bf16.gmra.mxu0 %v970
      %v1021 = vpop.f32.mrf.mxu0
      %v1022 = vadd.f32 0.0, %v1021
      %v1023 = vpop.f32.mrf.mxu0
      %v1024 = vadd.f32 0.0, %v1023
      %1025 = vmatmul.bf16.gmra.mxu0 %v973
      %v1026 = vpop.f32.mrf.mxu0
      %v1027 = vadd.f32 0.0, %v1026
      %v1028 = vpop.f32.mrf.mxu0
      %v1029 = vadd.f32 0.0, %v1028
      %1030 = vmatmul.bf16.gmra.mxu0 %v976
      %v1031 = vpop.f32.mrf.mxu0
      %v1032 = vadd.f32 0.0, %v1031
      %v1033 = vpop.f32.mrf.mxu0
      %v1034 = vadd.f32 0.0, %v1033
      %1035 = vmatmul.bf16.gmra.mxu0 %v979
      %v1036 = vpop.f32.mrf.mxu0
      %v1037 = vadd.f32 0.0, %v1036
      %v1038 = vpop.f32.mrf.mxu0
      %v1039 = vadd.f32 0.0, %v1038
      %1040 = vmatmul.bf16.gmra.mxu0 %v982
      %v1041 = vpop.f32.mrf.mxu0
      %v1042 = vadd.f32 0.0, %v1041
      %v1043 = vpop.f32.mrf.mxu0
      %v1044 = vadd.f32 0.0, %v1043
      %1045 = vmatmul.bf16.gmra.mxu0 %v985
      %v1046 = vpop.f32.mrf.mxu0
      %v1047 = vadd.f32 0.0, %v1046
      %v1048 = vpop.f32.mrf.mxu0
      %1049 = vdwg.mxu0
      %v1050 = vadd.f32 %v820, %v997
      %v1051 = vadd.f32 %v822, %v999
      %v1052 = vadd.f32 %v825, %v1002
      %v1053 = vadd.f32 %v827, %v1004
      %v1054 = vadd.f32 %v830, %v1007
      %v1055 = vadd.f32 %v832, %v1009
      %v1056 = vadd.f32 %v835, %v1012
      %v1057 = vadd.f32 %v837, %v1014
      %v1058 = vadd.f32 %v840, %v1017
      %v1059 = vadd.f32 %v842, %v1019
      %v1060 = vadd.f32 %v845, %v1022
      %v1061 = vadd.f32 %v847, %v1024
      %v1062 = vadd.f32 %v850, %v1027
      %v1063 = vadd.f32 %v852, %v1029
      %v1064 = vadd.f32 %v855, %v1032
      %v1065 = vadd.f32 %v857, %v1034
      %v1066 = vadd.f32 %v860, %v1037
      %v1067 = vadd.f32 %v862, %v1039
      %v1068 = vadd.f32 %v865, %v1042
      %v1069 = vadd.f32 %v867, %v1044
      %v1070 = vadd.f32 %v870, %v1047
      %s1071 = scalar_lea.vmem %s1, 252
      %v1072 = vld [vmem:[%s1071] sm:$0xf]
      %v1073 = vld [vmem:[%s1071 + $0x4] sm:$0xf]
      %v1074 = vld [vmem:[%s1071 + $0x8] sm:$0xf]
      %v1075 = vld [vmem:[%s1071 + $0xc] sm:$0xf]
      %v1076 = vld [vmem:[%s1071 + $0x10] sm:$0xf]
      %v1077 = vld [vmem:[%s1071 + $0x14] sm:$0xf]
      %v1078 = vld [vmem:[%s1071 + $0x18] sm:$0xf]
      %v1079 = vld [vmem:[%s1071 + $0x1c] sm:$0xf]
      %v1080 = vld [vmem:[%s1071 + $0x20] sm:$0xf]
      %v1081 = vld [vmem:[%s1071 + $0x24] sm:$0xf]
      %v1082 = vld [vmem:[%s1071 + $0x28] sm:$0xf]
      %v1083 = vld [vmem:[%s1071 + $0x2c] sm:$0xf]
      %v1084 = vld [vmem:[%s1071 + $0x30] sm:$0xf]
      %v1085 = vld [vmem:[%s1071 + $0x34] sm:$0xf]
      %v1086 = vld [vmem:[%s1071 + $0x38] sm:$0xf]
      %v1087 = vld [vmem:[%s1071 + $0x3c] sm:$0xf]
      %v1088 = vld [vmem:[%s1071 + $0x40] sm:$0xf]
      %v1089 = vld [vmem:[%s1071 + $0x44] sm:$0xf]
      %v1090 = vld [vmem:[%s1071 + $0x48] sm:$0xf]
      %v1091 = vld [vmem:[%s1071 + $0x4c] sm:$0xf]
      %v1092 = vld [vmem:[%s1071 + $0x50] sm:$0xf]
      %v1114 = vunpack.c.l.b16 %v1072
      %v1115 = vunpack.c.l.b16 %v1073
      %v1116 = vunpack.c.l.b16 %v1074
      %v1117 = vunpack.c.l.b16 %v1075
      %v1118 = vunpack.c.l.b16 %v1076
      %v1119 = vunpack.c.l.b16 %v1077
      %v1120 = vunpack.c.l.b16 %v1078
      %v1121 = vunpack.c.l.b16 %v1079
      %v1122 = vunpack.c.l.b16 %v1080
      %v1123 = vunpack.c.l.b16 %v1081
      %v1124 = vunpack.c.l.b16 %v1082
      %v1125 = vunpack.c.l.b16 %v1083
      %v1126 = vunpack.c.l.b16 %v1084
      %v1127 = vunpack.c.l.b16 %v1085
      %v1128 = vunpack.c.l.b16 %v1086
      %v1129 = vunpack.c.l.b16 %v1087
      %v1130 = vunpack.c.l.b16 %v1088
      %v1131 = vunpack.c.l.b16 %v1089
      %v1132 = vunpack.c.l.b16 %v1090
      %v1133 = vunpack.c.l.b16 %v1091
      %v1134 = vunpack.c.l.b16 %v1092
      %v1135 = vpack.c.b16 %v1115, %v1114
      %v1136 = vpack.c.b16 %v1117, %v1116
      %v1137 = vpack.c.b16 %v1119, %v1118
      %v1138 = vpack.c.b16 %v1121, %v1120
      %v1139 = vpack.c.b16 %v1123, %v1122
      %v1140 = vpack.c.b16 %v1125, %v1124
      %v1141 = vpack.c.b16 %v1127, %v1126
      %v1142 = vpack.c.b16 %v1129, %v1128
      %v1143 = vpack.c.b16 %v1131, %v1130
      %v1144 = vpack.c.b16 %v1133, %v1132
      %v1145 = vpack.c.b16 %v1134, %v1134
      %1146 = vrot.lane.b32.xlu0 %v542, 125
      %v1147 = vpop.permute.xlu0 %1146
      %1148 = vrot.lane.b32.xlu0 %v543, 125
      %v1149 = vpop.permute.xlu0 %1148
      %v1153 = vsel %vm627, %v1135, 0
      %v1156 = vsel %vm627, %v1136, 0
      %v1159 = vsel %vm627, %v1137, 0
      %v1162 = vsel %vm627, %v1138, 0
      %v1165 = vsel %vm627, %v1139, 0
      %v1168 = vsel %vm627, %v1140, 0
      %v1171 = vsel %vm627, %v1141, 0
      %v1174 = vsel %vm627, %v1142, 0
      %v1177 = vsel %vm627, %v1143, 0
      %v1180 = vsel %vm627, %v1144, 0
      %v1183 = vsel %vm627, %v1145, 0
      %1185 = vmatpush.bf16.msra.mxu0 0
      %1186 = vmatpush.bf16.msra.mxu0 0
      %1187 = vmatpush.bf16.msra.mxu0 0
      %1188 = vmatpush.bf16.msra.mxu0 0
      %1189 = vmatpush.bf16.msra.mxu0 0
      %1190 = vmatpush.bf16.msra.mxu0 0
      %1191 = vmatpush.bf16.msra.mxu0 %v1149
      %1192 = vmatpush.bf16.msra.mxu0 %v1147
      %1193 = vmatmul.bf16.gmra.mxu0 %v1153
      %v1194 = vpop.f32.mrf.mxu0
      %v1195 = vadd.f32 0.0, %v1194
      %v1196 = vpop.f32.mrf.mxu0
      %v1197 = vadd.f32 0.0, %v1196
      %1198 = vmatmul.bf16.gmra.mxu0 %v1156
      %v1199 = vpop.f32.mrf.mxu0
      %v1200 = vadd.f32 0.0, %v1199
      %v1201 = vpop.f32.mrf.mxu0
      %v1202 = vadd.f32 0.0, %v1201
      %1203 = vmatmul.bf16.gmra.mxu0 %v1159
      %v1204 = vpop.f32.mrf.mxu0
      %v1205 = vadd.f32 0.0, %v1204
      %v1206 = vpop.f32.mrf.mxu0
      %v1207 = vadd.f32 0.0, %v1206
      %1208 = vmatmul.bf16.gmra.mxu0 %v1162
      %v1209 = vpop.f32.mrf.mxu0
      %v1210 = vadd.f32 0.0, %v1209
      %v1211 = vpop.f32.mrf.mxu0
      %v1212 = vadd.f32 0.0, %v1211
      %1213 = vmatmul.bf16.gmra.mxu0 %v1165
      %v1214 = vpop.f32.mrf.mxu0
      %v1215 = vadd.f32 0.0, %v1214
      %v1216 = vpop.f32.mrf.mxu0
      %v1217 = vadd.f32 0.0, %v1216
      %1218 = vmatmul.bf16.gmra.mxu0 %v1168
      %v1219 = vpop.f32.mrf.mxu0
      %v1220 = vadd.f32 0.0, %v1219
      %v1221 = vpop.f32.mrf.mxu0
      %v1222 = vadd.f32 0.0, %v1221
      %1223 = vmatmul.bf16.gmra.mxu0 %v1171
      %v1224 = vpop.f32.mrf.mxu0
      %v1225 = vadd.f32 0.0, %v1224
      %v1226 = vpop.f32.mrf.mxu0
      %v1227 = vadd.f32 0.0, %v1226
      %1228 = vmatmul.bf16.gmra.mxu0 %v1174
      %v1229 = vpop.f32.mrf.mxu0
      %v1230 = vadd.f32 0.0, %v1229
      %v1231 = vpop.f32.mrf.mxu0
      %v1232 = vadd.f32 0.0, %v1231
      %1233 = vmatmul.bf16.gmra.mxu0 %v1177
      %v1234 = vpop.f32.mrf.mxu0
      %v1235 = vadd.f32 0.0, %v1234
      %v1236 = vpop.f32.mrf.mxu0
      %v1237 = vadd.f32 0.0, %v1236
      %1238 = vmatmul.bf16.gmra.mxu0 %v1180
      %v1239 = vpop.f32.mrf.mxu0
      %v1240 = vadd.f32 0.0, %v1239
      %v1241 = vpop.f32.mrf.mxu0
      %v1242 = vadd.f32 0.0, %v1241
      %1243 = vmatmul.bf16.gmra.mxu0 %v1183
      %v1244 = vpop.f32.mrf.mxu0
      %v1245 = vadd.f32 0.0, %v1244
      %v1246 = vpop.f32.mrf.mxu0
      %1247 = vdwg.mxu0
      %v1248 = vadd.f32 %v1050, %v1195
      %v1249 = vadd.f32 %v1051, %v1197
      %v1250 = vadd.f32 %v1052, %v1200
      %v1251 = vadd.f32 %v1053, %v1202
      %v1252 = vadd.f32 %v1054, %v1205
      %v1253 = vadd.f32 %v1055, %v1207
      %v1254 = vadd.f32 %v1056, %v1210
      %v1255 = vadd.f32 %v1057, %v1212
      %v1256 = vadd.f32 %v1058, %v1215
      %v1257 = vadd.f32 %v1059, %v1217
      %v1258 = vadd.f32 %v1060, %v1220
      %v1259 = vadd.f32 %v1061, %v1222
      %v1260 = vadd.f32 %v1062, %v1225
      %v1261 = vadd.f32 %v1063, %v1227
      %v1262 = vadd.f32 %v1064, %v1230
      %v1263 = vadd.f32 %v1065, %v1232
      %v1264 = vadd.f32 %v1066, %v1235
      %v1265 = vadd.f32 %v1067, %v1237
      %v1266 = vadd.f32 %v1068, %v1240
      %v1267 = vadd.f32 %v1069, %v1242
      %v1268 = vadd.f32 %v1070, %v1245
      %s1269 = scalar_lea.vmem %s1, 336
      %v1270 = vld [vmem:[%s1269] sm:$0xf]
      %v1271 = vld [vmem:[%s1269 + $0x4] sm:$0xf]
      %v1272 = vld [vmem:[%s1269 + $0x8] sm:$0xf]
      %v1273 = vld [vmem:[%s1269 + $0xc] sm:$0xf]
      %v1274 = vld [vmem:[%s1269 + $0x10] sm:$0xf]
      %v1275 = vld [vmem:[%s1269 + $0x14] sm:$0xf]
      %v1276 = vld [vmem:[%s1269 + $0x18] sm:$0xf]
      %v1277 = vld [vmem:[%s1269 + $0x1c] sm:$0xf]
      %v1278 = vld [vmem:[%s1269 + $0x20] sm:$0xf]
      %v1279 = vld [vmem:[%s1269 + $0x24] sm:$0xf]
      %v1280 = vld [vmem:[%s1269 + $0x28] sm:$0xf]
      %v1281 = vld [vmem:[%s1269 + $0x2c] sm:$0xf]
      %v1282 = vld [vmem:[%s1269 + $0x30] sm:$0xf]
      %v1283 = vld [vmem:[%s1269 + $0x34] sm:$0xf]
      %v1284 = vld [vmem:[%s1269 + $0x38] sm:$0xf]
      %v1285 = vld [vmem:[%s1269 + $0x3c] sm:$0xf]
      %v1286 = vld [vmem:[%s1269 + $0x40] sm:$0xf]
      %v1287 = vld [vmem:[%s1269 + $0x44] sm:$0xf]
      %v1288 = vld [vmem:[%s1269 + $0x48] sm:$0xf]
      %v1289 = vld [vmem:[%s1269 + $0x4c] sm:$0xf]
      %v1290 = vld [vmem:[%s1269 + $0x50] sm:$0xf]
      %v1312 = vunpack.c.l.b16 %v1270
      %v1313 = vunpack.c.l.b16 %v1271
      %v1314 = vunpack.c.l.b16 %v1272
      %v1315 = vunpack.c.l.b16 %v1273
      %v1316 = vunpack.c.l.b16 %v1274
      %v1317 = vunpack.c.l.b16 %v1275
      %v1318 = vunpack.c.l.b16 %v1276
      %v1319 = vunpack.c.l.b16 %v1277
      %v1320 = vunpack.c.l.b16 %v1278
      %v1321 = vunpack.c.l.b16 %v1279
      %v1322 = vunpack.c.l.b16 %v1280
      %v1323 = vunpack.c.l.b16 %v1281
      %v1324 = vunpack.c.l.b16 %v1282
      %v1325 = vunpack.c.l.b16 %v1283
      %v1326 = vunpack.c.l.b16 %v1284
      %v1327 = vunpack.c.l.b16 %v1285
      %v1328 = vunpack.c.l.b16 %v1286
      %v1329 = vunpack.c.l.b16 %v1287
      %v1330 = vunpack.c.l.b16 %v1288
      %v1331 = vunpack.c.l.b16 %v1289
      %v1332 = vunpack.c.l.b16 %v1290
      %v1333 = vpack.c.b16 %v1313, %v1312
      %v1334 = vpack.c.b16 %v1315, %v1314
      %v1335 = vpack.c.b16 %v1317, %v1316
      %v1336 = vpack.c.b16 %v1319, %v1318
      %v1337 = vpack.c.b16 %v1321, %v1320
      %v1338 = vpack.c.b16 %v1323, %v1322
      %v1339 = vpack.c.b16 %v1325, %v1324
      %v1340 = vpack.c.b16 %v1327, %v1326
      %v1341 = vpack.c.b16 %v1329, %v1328
      %v1342 = vpack.c.b16 %v1331, %v1330
      %v1343 = vpack.c.b16 %v1332, %v1332
      %1344 = vrot.lane.b32.xlu0 %v542, 124
      %v1345 = vpop.permute.xlu0 %1344
      %1346 = vrot.lane.b32.xlu0 %v543, 124
      %v1347 = vpop.permute.xlu0 %1346
      %v1351 = vsel %vm627, %v1333, 0
      %v1354 = vsel %vm627, %v1334, 0
      %v1357 = vsel %vm627, %v1335, 0
      %v1360 = vsel %vm627, %v1336, 0
      %v1363 = vsel %vm627, %v1337, 0
      %v1366 = vsel %vm627, %v1338, 0
      %v1369 = vsel %vm627, %v1339, 0
      %v1372 = vsel %vm627, %v1340, 0
      %v1375 = vsel %vm627, %v1341, 0
      %v1378 = vsel %vm627, %v1342, 0
      %v1381 = vsel %vm627, %v1343, 0
      %1383 = vmatpush.bf16.msra.mxu0 0
      %1384 = vmatpush.bf16.msra.mxu0 0
      %1385 = vmatpush.bf16.msra.mxu0 0
      %1386 = vmatpush.bf16.msra.mxu0 0
      %1387 = vmatpush.bf16.msra.mxu0 0
      %1388 = vmatpush.bf16.msra.mxu0 0
      %1389 = vmatpush.bf16.msra.mxu0 %v1347
      %1390 = vmatpush.bf16.msra.mxu0 %v1345
      %1391 = vmatmul.bf16.gmra.mxu0 %v1351
      %v1392 = vpop.f32.mrf.mxu0
      %v1393 = vadd.f32 0.0, %v1392
      %v1394 = vpop.f32.mrf.mxu0
      %v1395 = vadd.f32 0.0, %v1394
      %1396 = vmatmul.bf16.gmra.mxu0 %v1354
      %v1397 = vpop.f32.mrf.mxu0
      %v1398 = vadd.f32 0.0, %v1397
      %v1399 = vpop.f32.mrf.mxu0
      %v1400 = vadd.f32 0.0, %v1399
      %1401 = vmatmul.bf16.gmra.mxu0 %v1357
      %v1402 = vpop.f32.mrf.mxu0
      %v1403 = vadd.f32 0.0, %v1402
      %v1404 = vpop.f32.mrf.mxu0
      %v1405 = vadd.f32 0.0, %v1404
      %1406 = vmatmul.bf16.gmra.mxu0 %v1360
      %v1407 = vpop.f32.mrf.mxu0
      %v1408 = vadd.f32 0.0, %v1407
      %v1409 = vpop.f32.mrf.mxu0
      %v1410 = vadd.f32 0.0, %v1409
      %1411 = vmatmul.bf16.gmra.mxu0 %v1363
      %v1412 = vpop.f32.mrf.mxu0
      %v1413 = vadd.f32 0.0, %v1412
      %v1414 = vpop.f32.mrf.mxu0
      %v1415 = vadd.f32 0.0, %v1414
      %1416 = vmatmul.bf16.gmra.mxu0 %v1366
      %v1417 = vpop.f32.mrf.mxu0
      %v1418 = vadd.f32 0.0, %v1417
      %v1419 = vpop.f32.mrf.mxu0
      %v1420 = vadd.f32 0.0, %v1419
      %1421 = vmatmul.bf16.gmra.mxu0 %v1369
      %v1422 = vpop.f32.mrf.mxu0
      %v1423 = vadd.f32 0.0, %v1422
      %v1424 = vpop.f32.mrf.mxu0
      %v1425 = vadd.f32 0.0, %v1424
      %1426 = vmatmul.bf16.gmra.mxu0 %v1372
      %v1427 = vpop.f32.mrf.mxu0
      %v1428 = vadd.f32 0.0, %v1427
      %v1429 = vpop.f32.mrf.mxu0
      %v1430 = vadd.f32 0.0, %v1429
      %1431 = vmatmul.bf16.gmra.mxu0 %v1375
      %v1432 = vpop.f32.mrf.mxu0
      %v1433 = vadd.f32 0.0, %v1432
      %v1434 = vpop.f32.mrf.mxu0
      %v1435 = vadd.f32 0.0, %v1434
      %1436 = vmatmul.bf16.gmra.mxu0 %v1378
      %v1437 = vpop.f32.mrf.mxu0
      %v1438 = vadd.f32 0.0, %v1437
      %v1439 = vpop.f32.mrf.mxu0
      %v1440 = vadd.f32 0.0, %v1439
      %1441 = vmatmul.bf16.gmra.mxu0 %v1381
      %v1442 = vpop.f32.mrf.mxu0
      %v1443 = vadd.f32 0.0, %v1442
      %v1444 = vpop.f32.mrf.mxu0
      %1445 = vdwg.mxu0
      %v1446 = vadd.f32 %v1248, %v1393
      %v1447 = vadd.f32 %v1249, %v1395
      %v1448 = vadd.f32 %v1250, %v1398
      %v1449 = vadd.f32 %v1251, %v1400
      %v1450 = vadd.f32 %v1252, %v1403
      %v1451 = vadd.f32 %v1253, %v1405
      %v1452 = vadd.f32 %v1254, %v1408
      %v1453 = vadd.f32 %v1255, %v1410
      %v1454 = vadd.f32 %v1256, %v1413
      %v1455 = vadd.f32 %v1257, %v1415
      %v1456 = vadd.f32 %v1258, %v1418
      %v1457 = vadd.f32 %v1259, %v1420
      %v1458 = vadd.f32 %v1260, %v1423
      %v1459 = vadd.f32 %v1261, %v1425
      %v1460 = vadd.f32 %v1262, %v1428
      %v1461 = vadd.f32 %v1263, %v1430
      %v1462 = vadd.f32 %v1264, %v1433
      %v1463 = vadd.f32 %v1265, %v1435
      %v1464 = vadd.f32 %v1266, %v1438
      %v1465 = vadd.f32 %v1267, %v1440
      %v1466 = vadd.f32 %v1268, %v1443
      %1468 = vset.pattern.permute.xlu0 0
      %1469 = vperm.xlu0 %1468, %v500
      %v1470 = vpop.permute.xlu0 %1469
      %1473 = vset.pattern.permute.xlu0 0
      %1474 = vperm.xlu0 %1473, %v501
      %v1475 = vpop.permute.xlu0 %1474
      %1478 = vset.pattern.permute.xlu0 0
      %1479 = vperm.xlu0 %1478, %v502
      %v1480 = vpop.permute.xlu0 %1479
      %1483 = vset.pattern.permute.xlu0 0
      %1484 = vperm.xlu0 %1483, %v503
      %v1485 = vpop.permute.xlu0 %1484
      %1488 = vset.pattern.permute.xlu0 0
      %1489 = vperm.xlu0 %1488, %v504
      %v1490 = vpop.permute.xlu0 %1489
      %1493 = vset.pattern.permute.xlu0 0
      %1494 = vperm.xlu0 %1493, %v505
      %v1495 = vpop.permute.xlu0 %1494
      %1498 = vset.pattern.permute.xlu0 0
      %1499 = vperm.xlu0 %1498, %v506
      %v1500 = vpop.permute.xlu0 %1499
      %1503 = vset.pattern.permute.xlu0 0
      %1504 = vperm.xlu0 %1503, %v507
      %v1505 = vpop.permute.xlu0 %1504
      %1508 = vset.pattern.permute.xlu0 0
      %1509 = vperm.xlu0 %1508, %v508
      %v1510 = vpop.permute.xlu0 %1509
      %1513 = vset.pattern.permute.xlu0 0
      %1514 = vperm.xlu0 %1513, %v509
      %v1515 = vpop.permute.xlu0 %1514
      %1518 = vset.pattern.permute.xlu0 0
      %1519 = vperm.xlu0 %1518, %v510
      %v1520 = vpop.permute.xlu0 %1519
      %1523 = vset.pattern.permute.xlu0 0
      %1524 = vperm.xlu0 %1523, %v511
      %v1525 = vpop.permute.xlu0 %1524
      %1528 = vset.pattern.permute.xlu0 0
      %1529 = vperm.xlu0 %1528, %v512
      %v1530 = vpop.permute.xlu0 %1529
      %1533 = vset.pattern.permute.xlu0 0
      %1534 = vperm.xlu0 %1533, %v513
      %v1535 = vpop.permute.xlu0 %1534
      %1538 = vset.pattern.permute.xlu0 0
      %1539 = vperm.xlu0 %1538, %v514
      %v1540 = vpop.permute.xlu0 %1539
      %1543 = vset.pattern.permute.xlu0 0
      %1544 = vperm.xlu0 %1543, %v515
      %v1545 = vpop.permute.xlu0 %1544
      %1548 = vset.pattern.permute.xlu0 0
      %1549 = vperm.xlu0 %1548, %v516
      %v1550 = vpop.permute.xlu0 %1549
      %1553 = vset.pattern.permute.xlu0 0
      %1554 = vperm.xlu0 %1553, %v517
      %v1555 = vpop.permute.xlu0 %1554
      %1558 = vset.pattern.permute.xlu0 0
      %1559 = vperm.xlu0 %1558, %v518
      %v1560 = vpop.permute.xlu0 %1559
      %1563 = vset.pattern.permute.xlu0 0
      %1564 = vperm.xlu0 %1563, %v519
      %v1565 = vpop.permute.xlu0 %1564
      %1568 = vset.pattern.permute.xlu0 0
      %1569 = vperm.xlu0 %1568, %v520
      %v1570 = vpop.permute.xlu0 %1569
      %v1572 = vadd.f32 %v1446, %v1470
      %v1573 = vadd.f32 %v1447, %v1475
      %v1574 = vadd.f32 %v1448, %v1480
      %v1575 = vadd.f32 %v1449, %v1485
      %v1576 = vadd.f32 %v1450, %v1490
      %v1577 = vadd.f32 %v1451, %v1495
      %v1578 = vadd.f32 %v1452, %v1500
      %v1579 = vadd.f32 %v1453, %v1505
      %v1580 = vadd.f32 %v1454, %v1510
      %v1581 = vadd.f32 %v1455, %v1515
      %v1582 = vadd.f32 %v1456, %v1520
      %v1583 = vadd.f32 %v1457, %v1525
      %v1584 = vadd.f32 %v1458, %v1530
      %v1585 = vadd.f32 %v1459, %v1535
      %v1586 = vadd.f32 %v1460, %v1540
      %v1587 = vadd.f32 %v1461, %v1545
      %v1588 = vadd.f32 %v1462, %v1550
      %v1589 = vadd.f32 %v1463, %v1555
      %v1590 = vadd.f32 %v1464, %v1560
      %v1591 = vadd.f32 %v1465, %v1565
      %v1592 = vadd.f32 %v1466, %v1570
      %v1593 = vtanh.pop %v1572
      %v1594 = vtanh.pop %v1573
      %v1595 = vtanh.pop %v1574
      %v1596 = vtanh.pop %v1575
      %v1597 = vtanh.pop %v1576
      %v1598 = vtanh.pop %v1577
      %v1599 = vtanh.pop %v1578
      %v1600 = vtanh.pop %v1579
      %v1601 = vtanh.pop %v1580
      %v1602 = vtanh.pop %v1581
      %v1603 = vtanh.pop %v1582
      %v1604 = vtanh.pop %v1583
      %v1605 = vtanh.pop %v1584
      %v1606 = vtanh.pop %v1585
      %v1607 = vtanh.pop %v1586
      %v1608 = vtanh.pop %v1587
      %v1609 = vtanh.pop %v1588
      %v1610 = vtanh.pop %v1589
      %v1611 = vtanh.pop %v1590
      %v1612 = vtanh.pop %v1591
      %v1613 = vtanh.pop %v1592
      %v1614 = vld [vmem:[%s4] sm:$0xff]
      %v1615 = vld [vmem:[%s4 + $0x8] sm:$0xff]
      %v1616 = vld [vmem:[%s4 + $0x10] sm:$0xff]
      %v1617 = vld [vmem:[%s4 + $0x18] sm:$0xff]
      %v1618 = vld [vmem:[%s4 + $0x20] sm:$0xff]
      %v1619 = vld [vmem:[%s4 + $0x28] sm:$0xff]
      %v1620 = vld [vmem:[%s4 + $0x30] sm:$0xff]
      %v1621 = vld [vmem:[%s4 + $0x38] sm:$0xff]
      %v1622 = vld [vmem:[%s4 + $0x40] sm:$0xff]
      %v1623 = vld [vmem:[%s4 + $0x48] sm:$0xff]
      %v1624 = vld [vmem:[%s4 + $0x50] sm:$0x33]
      %v1625 = vpack.c.bf16 %v1594, %v1593
      %v1626 = vpack.c.bf16 %v1596, %v1595
      %v1627 = vpack.c.bf16 %v1598, %v1597
      %v1628 = vpack.c.bf16 %v1600, %v1599
      %v1629 = vpack.c.bf16 %v1602, %v1601
      %v1630 = vpack.c.bf16 %v1604, %v1603
      %v1631 = vpack.c.bf16 %v1606, %v1605
      %v1632 = vpack.c.bf16 %v1608, %v1607
      %v1633 = vpack.c.bf16 %v1610, %v1609
      %v1634 = vpack.c.bf16 %v1612, %v1611
      %v1635 = vpack.c.bf16 %v1613, %v1613
      %v1647 = vunpack.c.l.b16 %v1614
      %v1648 = vunpack.c.h.b16 %v1614
      %v1649 = vunpack.c.l.b16 %v1615
      %v1650 = vunpack.c.h.b16 %v1615
      %v1651 = vunpack.c.l.b16 %v1616
      %v1652 = vunpack.c.h.b16 %v1616
      %v1653 = vunpack.c.l.b16 %v1617
      %v1654 = vunpack.c.h.b16 %v1617
      %v1655 = vunpack.c.l.b16 %v1618
      %v1656 = vunpack.c.h.b16 %v1618
      %v1657 = vunpack.c.l.b16 %v1619
      %v1658 = vunpack.c.h.b16 %v1619
      %v1659 = vunpack.c.l.b16 %v1620
      %v1660 = vunpack.c.h.b16 %v1620
      %v1661 = vunpack.c.l.b16 %v1621
      %v1662 = vunpack.c.h.b16 %v1621
      %v1663 = vunpack.c.l.b16 %v1622
      %v1664 = vunpack.c.h.b16 %v1622
      %v1665 = vunpack.c.l.b16 %v1623
      %v1666 = vunpack.c.h.b16 %v1623
      %v1667 = vunpack.c.l.b16 %v1624
      %v1668 = vunpack.c.h.b16 %v1624
      %v1669 = vpack.c.b16 %v1649, %v1647
      %v1670 = vpack.c.b16 %v1650, %v1648
      %v1671 = vpack.c.b16 %v1653, %v1651
      %v1672 = vpack.c.b16 %v1654, %v1652
      %v1673 = vpack.c.b16 %v1657, %v1655
      %v1674 = vpack.c.b16 %v1658, %v1656
      %v1675 = vpack.c.b16 %v1661, %v1659
      %v1676 = vpack.c.b16 %v1662, %v1660
      %v1677 = vpack.c.b16 %v1665, %v1663
      %v1678 = vpack.c.b16 %v1666, %v1664
      %v1679 = vpack.c.b16 %v1667, %v1667
      %v1680 = vpack.c.b16 %v1668, %v1668
      %vm1687 = vcmask 326656
      %v1689 = vsel %vm1687, %v1670, 0
      %v1692 = vsel %vm1687, %v1672, 0
      %v1695 = vsel %vm1687, %v1674, 0
      %v1698 = vsel %vm1687, %v1676, 0
      %v1701 = vsel %vm1687, %v1678, 0
      %v1704 = vsel %vm1687, %v1680, 0
      %vm1706 = vcmask 1043456
      %v1708 = vsel %vm1706, %v1635, 0
      %1710 = vmatpush.bf16.msra.mxu0 %v1632
      %1711 = vmatpush.bf16.msra.mxu0 %v1631
      %1712 = vmatpush.bf16.msra.mxu0 %v1630
      %1713 = vmatpush.bf16.msra.mxu0 %v1629
      %1714 = vmatpush.bf16.msra.mxu0 %v1628
      %1715 = vmatpush.bf16.msra.mxu0 %v1627
      %1716 = vmatpush.bf16.msra.mxu0 %v1626
      %1717 = vmatpush.bf16.msra.mxu0 %v1625
      %1718 = vmatmul.bf16.gmra.mxu0 %v1669
      %v1719 = vpop.f32.mrf.mxu0
      %v1720 = vadd.f32 0.0, %v1719
      %v1721 = vpop.f32.mrf.mxu0
      %v1722 = vadd.f32 0.0, %v1721
      %1723 = vmatmul.bf16.gmra.mxu0 %v1671
      %v1724 = vpop.f32.mrf.mxu0
      %v1725 = vadd.f32 0.0, %v1724
      %v1726 = vpop.f32.mrf.mxu0
      %v1727 = vadd.f32 0.0, %v1726
      %1728 = vmatmul.bf16.gmra.mxu0 %v1673
      %v1729 = vpop.f32.mrf.mxu0
      %v1730 = vadd.f32 0.0, %v1729
      %v1731 = vpop.f32.mrf.mxu0
      %v1732 = vadd.f32 0.0, %v1731
      %1733 = vmatmul.bf16.gmra.mxu0 %v1675
      %v1734 = vpop.f32.mrf.mxu0
      %v1735 = vadd.f32 0.0, %v1734
      %v1736 = vpop.f32.mrf.mxu0
      %v1737 = vadd.f32 0.0, %v1736
      %1738 = vmatmul.bf16.gmra.mxu0 %v1677
      %v1739 = vpop.f32.mrf.mxu0
      %v1740 = vadd.f32 0.0, %v1739
      %v1741 = vpop.f32.mrf.mxu0
      %v1742 = vadd.f32 0.0, %v1741
      %1743 = vmatmul.bf16.gmra.mxu0 %v1679
      %v1744 = vpop.f32.mrf.mxu0
      %v1745 = vadd.f32 0.0, %v1744
      %v1746 = vpop.f32.mrf.mxu0
      %1747 = vdwg.mxu0
      %1748 = vmatpush.bf16.msra.mxu0 0
      %1749 = vmatpush.bf16.msra.mxu0 0
      %1750 = vmatpush.bf16.msra.mxu0 0
      %1751 = vmatpush.bf16.msra.mxu0 0
      %1752 = vmatpush.bf16.msra.mxu0 0
      %1753 = vmatpush.bf16.msra.mxu0 %v1708
      %1754 = vmatpush.bf16.msra.mxu0 %v1634
      %1755 = vmatpush.bf16.msra.mxu0 %v1633
      %1756 = vmatmul.bf16.gmra.mxu0 %v1689
      %v1757 = vpop.f32.mrf.mxu0
      %v1758 = vadd.f32 %v1720, %v1757
      %v1759 = vpop.f32.mrf.mxu0
      %v1760 = vadd.f32 %v1722, %v1759
      %1761 = vmatmul.bf16.gmra.mxu0 %v1692
      %v1762 = vpop.f32.mrf.mxu0
      %v1763 = vadd.f32 %v1725, %v1762
      %v1764 = vpop.f32.mrf.mxu0
      %v1765 = vadd.f32 %v1727, %v1764
      %1766 = vmatmul.bf16.gmra.mxu0 %v1695
      %v1767 = vpop.f32.mrf.mxu0
      %v1768 = vadd.f32 %v1730, %v1767
      %v1769 = vpop.f32.mrf.mxu0
      %v1770 = vadd.f32 %v1732, %v1769
      %1771 = vmatmul.bf16.gmra.mxu0 %v1698
      %v1772 = vpop.f32.mrf.mxu0
      %v1773 = vadd.f32 %v1735, %v1772
      %v1774 = vpop.f32.mrf.mxu0
      %v1775 = vadd.f32 %v1737, %v1774
      %1776 = vmatmul.bf16.gmra.mxu0 %v1701
      %v1777 = vpop.f32.mrf.mxu0
      %v1778 = vadd.f32 %v1740, %v1777
      %v1779 = vpop.f32.mrf.mxu0
      %v1780 = vadd.f32 %v1742, %v1779
      %1781 = vmatmul.bf16.gmra.mxu0 %v1704
      %v1782 = vpop.f32.mrf.mxu0
      %v1783 = vadd.f32 %v1745, %v1782
      %v1784 = vpop.f32.mrf.mxu0
      %1785 = vdwg.mxu0
      %v1786 = vld [vmem:[%s5] sm:$0xf]
      %v1787 = vld [vmem:[%s5 + $0x4] sm:$0xf]
      %v1788 = vld [vmem:[%s5 + $0x8] sm:$0xf]
      %v1789 = vld [vmem:[%s5 + $0xc] sm:$0x3]
      %v1790 = vpack.c.bf16 %v1760, %v1758
      %v1791 = vpack.c.bf16 %v1765, %v1763
      %v1792 = vpack.c.bf16 %v1770, %v1768
      %v1793 = vpack.c.bf16 %v1775, %v1773
      %v1794 = vpack.c.bf16 %v1780, %v1778
      %v1795 = vpack.c.bf16 %v1783, %v1783
      %v1800 = vunpack.c.l.b16 %v1786
      %v1801 = vunpack.c.l.b16 %v1787
      %v1802 = vunpack.c.l.b16 %v1788
      %v1803 = vunpack.c.l.b16 %v1789
      %v1804 = vpack.c.b16 %v1801, %v1800
      %v1805 = vpack.c.b16 %v1803, %v1802
      %vm1807 = vcmask 228352
      %v1809 = vsel %vm1807, %v1790, 0
      %v1812 = vsel %vm1807, %v1791, 0
      %v1815 = vsel %vm1807, %v1792, 0
      %v1818 = vsel %vm1807, %v1793, 0
      %v1821 = vsel %vm1807, %v1794, 0
      %v1824 = vsel %vm1807, %v1795, 0
      %vm1826 = vcmask 1045504
      %v1828 = vsel %vm1826, %v1805, 0
      %1830 = vmatpush.bf16.msra.mxu0 0
      %1831 = vmatpush.bf16.msra.mxu0 0
      %1832 = vmatpush.bf16.msra.mxu0 0
      %1833 = vmatpush.bf16.msra.mxu0 0
      %1834 = vmatpush.bf16.msra.mxu0 0
      %1835 = vmatpush.bf16.msra.mxu0 0
      %1836 = vmatpush.bf16.msra.mxu0 %v1828
      %1837 = vmatpush.bf16.msra.mxu0 %v1804
      %1838 = vmatmul.bf16.gmra.mxu0 %v1809
      %v1839 = vpop.f32.mrf.mxu0
      %v1840 = vadd.f32 0.0, %v1839
      %v1841 = vpop.f32.mrf.mxu0
      %v1842 = vadd.f32 0.0, %v1841
      %1843 = vmatmul.bf16.gmra.mxu0 %v1812
      %v1844 = vpop.f32.mrf.mxu0
      %v1845 = vadd.f32 0.0, %v1844
      %v1846 = vpop.f32.mrf.mxu0
      %v1847 = vadd.f32 0.0, %v1846
      %1848 = vmatmul.bf16.gmra.mxu0 %v1815
      %v1849 = vpop.f32.mrf.mxu0
      %v1850 = vadd.f32 0.0, %v1849
      %v1851 = vpop.f32.mrf.mxu0
      %v1852 = vadd.f32 0.0, %v1851
      %1853 = vmatmul.bf16.gmra.mxu0 %v1818
      %v1854 = vpop.f32.mrf.mxu0
      %v1855 = vadd.f32 0.0, %v1854
      %v1856 = vpop.f32.mrf.mxu0
      %v1857 = vadd.f32 0.0, %v1856
      %1858 = vmatmul.bf16.gmra.mxu0 %v1821
      %v1859 = vpop.f32.mrf.mxu0
      %v1860 = vadd.f32 0.0, %v1859
      %v1861 = vpop.f32.mrf.mxu0
      %v1862 = vadd.f32 0.0, %v1861
      %1863 = vmatmul.bf16.gmra.mxu0 %v1824
      %v1864 = vpop.f32.mrf.mxu0
      %v1865 = vadd.f32 0.0, %v1864
      %v1866 = vpop.f32.mrf.mxu0
      %1867 = vdwg.mxu0
      %v1868 = vtanh.pop %v1840
      %v1869 = vtanh.pop %v1842
      %v1870 = vtanh.pop %v1845
      %v1871 = vtanh.pop %v1847
      %v1872 = vtanh.pop %v1850
      %v1873 = vtanh.pop %v1852
      %v1874 = vtanh.pop %v1855
      %v1875 = vtanh.pop %v1857
      %v1876 = vtanh.pop %v1860
      %v1877 = vtanh.pop %v1862
      %v1878 = vtanh.pop %v1865
      %v1879 = vld [vmem:[%s11] sm:$0xff]
      %v1880 = vld [vmem:[%s11 + $0x8] sm:$0xff]
      %v1881 = vld [vmem:[%s11 + $0x10] sm:$0xff]
      %v1882 = vld [vmem:[%s11 + $0x18] sm:$0xff]
      %v1883 = vld [vmem:[%s11 + $0x20] sm:$0xff]
      %v1884 = vld [vmem:[%s11 + $0x28] sm:$0xff]
      %v1885 = vld [vmem:[%s11 + $0x30] sm:$0xff]
      %v1886 = vld [vmem:[%s11 + $0x38] sm:$0xff]
      %v1887 = vld [vmem:[%s11 + $0x40] sm:$0xff]
      %v1888 = vld [vmem:[%s11 + $0x48] sm:$0xff]
      %v1889 = vld [vmem:[%s11 + $0x50] sm:$0xff]
      %v1890 = vld [vmem:[%s11 + $0x58] sm:$0xff]
      %v1891 = vld [vmem:[%s11 + $0x60] sm:$0xff]
      %v1892 = vld [vmem:[%s11 + $0x68] sm:$0xff]
      %v1893 = vld [vmem:[%s11 + $0x70] sm:$0xff]
      %v1894 = vld [vmem:[%s11 + $0x78] sm:$0xff]
      %v1895 = vld [vmem:[%s11 + $0x80] sm:$0xff]
      %v1896 = vld [vmem:[%s11 + $0x88] sm:$0xff]
      %v1897 = vld [vmem:[%s11 + $0x90] sm:$0xff]
      %v1898 = vld [vmem:[%s11 + $0x98] sm:$0xff]
      %v1899 = vld [vmem:[%s2] sm:$0xf]
      %v1900 = vld [vmem:[%s2 + $0x4] sm:$0xf]
      %v1901 = vld [vmem:[%s2 + $0x8] sm:$0xf]
      %v1902 = vld [vmem:[%s2 + $0xc] sm:$0xf]
      %v1903 = vld [vmem:[%s2 + $0x10] sm:$0xf]
      %v1904 = vld [vmem:[%s2 + $0x14] sm:$0xf]
      %v1905 = vld [vmem:[%s2 + $0x18] sm:$0xf]
      %v1906 = vld [vmem:[%s2 + $0x1c] sm:$0xf]
      %v1907 = vld [vmem:[%s2 + $0x20] sm:$0xf]
      %v1908 = vld [vmem:[%s2 + $0x24] sm:$0xf]
      %v1909 = vld [vmem:[%s2 + $0x28] sm:$0xf]
      %v1910 = vld [vmem:[%s2 + $0x2c] sm:$0xf]
      %v1911 = vld [vmem:[%s2 + $0x30] sm:$0xf]
      %v1912 = vld [vmem:[%s2 + $0x34] sm:$0xf]
      %v1913 = vld [vmem:[%s2 + $0x38] sm:$0xf]
      %v1914 = vld [vmem:[%s2 + $0x3c] sm:$0xf]
      %v1915 = vld [vmem:[%s2 + $0x40] sm:$0xf]
      %v1916 = vld [vmem:[%s2 + $0x44] sm:$0xf]
      %v1917 = vld [vmem:[%s2 + $0x48] sm:$0xf]
      %v1918 = vld [vmem:[%s2 + $0x4c] sm:$0xf]
      %v1919 = vpack.c.bf16 %v1869, %v1868
      %v1920 = vpack.c.bf16 %v1871, %v1870
      %v1921 = vpack.c.bf16 %v1873, %v1872
      %v1922 = vpack.c.bf16 %v1875, %v1874
      %v1923 = vpack.c.bf16 %v1877, %v1876
      %v1924 = vpack.c.bf16 %v1878, %v1878
      %s1925 = scalar_lea.vmem %s2, 80
      %v1926 = vld [vmem:[%s1925] sm:$0xf]
      %v1927 = vld [vmem:[%s1925 + $0x4] sm:$0xf]
      %v1928 = vld [vmem:[%s1925 + $0x8] sm:$0xf]
      %v1929 = vld [vmem:[%s1925 + $0xc] sm:$0xf]
      %v1930 = vld [vmem:[%s1925 + $0x10] sm:$0xf]
      %v1931 = vld [vmem:[%s1925 + $0x14] sm:$0xf]
      %v1932 = vld [vmem:[%s1925 + $0x18] sm:$0xf]
      %v1933 = vld [vmem:[%s1925 + $0x1c] sm:$0xf]
      %v1934 = vld [vmem:[%s1925 + $0x20] sm:$0xf]
      %v1935 = vld [vmem:[%s1925 + $0x24] sm:$0xf]
      %v1936 = vld [vmem:[%s1925 + $0x28] sm:$0xf]
      %v1937 = vld [vmem:[%s1925 + $0x2c] sm:$0xf]
      %v1938 = vld [vmem:[%s1925 + $0x30] sm:$0xf]
      %v1939 = vld [vmem:[%s1925 + $0x34] sm:$0xf]
      %v1940 = vld [vmem:[%s1925 + $0x38] sm:$0xf]
      %v1941 = vld [vmem:[%s1925 + $0x3c] sm:$0xf]
      %v1942 = vld [vmem:[%s1925 + $0x40] sm:$0xf]
      %v1943 = vld [vmem:[%s1925 + $0x44] sm:$0xf]
      %v1944 = vld [vmem:[%s1925 + $0x48] sm:$0xf]
      %v1945 = vld [vmem:[%s1925 + $0x4c] sm:$0xf]
      %v1966 = vunpack.c.l.b16 %v1926
      %v1967 = vunpack.c.l.b16 %v1927
      %v1968 = vunpack.c.l.b16 %v1928
      %v1969 = vunpack.c.l.b16 %v1929
      %v1970 = vunpack.c.l.b16 %v1930
      %v1971 = vunpack.c.l.b16 %v1931
      %v1972 = vunpack.c.l.b16 %v1932
      %v1973 = vunpack.c.l.b16 %v1933
      %v1974 = vunpack.c.l.b16 %v1934
      %v1975 = vunpack.c.l.b16 %v1935
      %v1976 = vunpack.c.l.b16 %v1936
      %v1977 = vunpack.c.l.b16 %v1937
      %v1978 = vunpack.c.l.b16 %v1938
      %v1979 = vunpack.c.l.b16 %v1939
      %v1980 = vunpack.c.l.b16 %v1940
      %v1981 = vunpack.c.l.b16 %v1941
      %v1982 = vunpack.c.l.b16 %v1942
      %v1983 = vunpack.c.l.b16 %v1943
      %v1984 = vunpack.c.l.b16 %v1944
      %v1985 = vunpack.c.l.b16 %v1945
      %v1986 = vpack.c.b16 %v1967, %v1966
      %v1987 = vpack.c.b16 %v1969, %v1968
      %v1988 = vpack.c.b16 %v1971, %v1970
      %v1989 = vpack.c.b16 %v1973, %v1972
      %v1990 = vpack.c.b16 %v1975, %v1974
      %v1991 = vpack.c.b16 %v1977, %v1976
      %v1992 = vpack.c.b16 %v1979, %v1978
      %v1993 = vpack.c.b16 %v1981, %v1980
      %v1994 = vpack.c.b16 %v1983, %v1982
      %v1995 = vpack.c.b16 %v1985, %v1984
      %2002 = vrot.lane.b32.xlu0 %v1919, 127
      %v2003 = vpop.permute.xlu0 %2002
      %2004 = vrot.lane.b32.xlu0 %v1920, 127
      %v2005 = vpop.permute.xlu0 %2004
      %2006 = vrot.lane.b32.xlu0 %v1921, 127
      %v2007 = vpop.permute.xlu0 %2006
      %2008 = vrot.lane.b32.xlu0 %v1922, 127
      %v2009 = vpop.permute.xlu0 %2008
      %2010 = vrot.lane.b32.xlu0 %v1923, 127
      %v2011 = vpop.permute.xlu0 %2010
      %2012 = vrot.lane.b32.xlu0 %v1924, 127
      %v2013 = vpop.permute.xlu0 %2012
      %vm2019 = vcmask 687104
      %v2021 = vsel %vm2019, %v1986, 0
      %v2024 = vsel %vm2019, %v1987, 0
      %v2027 = vsel %vm2019, %v1988, 0
      %v2030 = vsel %vm2019, %v1989, 0
      %v2033 = vsel %vm2019, %v1990, 0
      %v2036 = vsel %vm2019, %v1991, 0
      %v2039 = vsel %vm2019, %v1992, 0
      %v2042 = vsel %vm2019, %v1993, 0
      %v2045 = vsel %vm2019, %v1994, 0
      %v2048 = vsel %vm2019, %v1995, 0
      %vm2050 = vcmask 1041408
      %v2052 = vsel %vm2050, %v2013, 0
      %2054 = vmatpush.bf16.msra.mxu0 0
      %2055 = vmatpush.bf16.msra.mxu0 0
      %2056 = vmatpush.bf16.msra.mxu0 %v2052
      %2057 = vmatpush.bf16.msra.mxu0 %v2011
      %2058 = vmatpush.bf16.msra.mxu0 %v2009
      %2059 = vmatpush.bf16.msra.mxu0 %v2007
      %2060 = vmatpush.bf16.msra.mxu0 %v2005
      %2061 = vmatpush.bf16.msra.mxu0 %v2003
      %2062 = vmatmul.bf16.gmra.mxu0 %v2021
      %v2063 = vpop.f32.mrf.mxu0
      %v2064 = vadd.f32 0.0, %v2063
      %v2065 = vpop.f32.mrf.mxu0
      %v2066 = vadd.f32 0.0, %v2065
      %2067 = vmatmul.bf16.gmra.mxu0 %v2024
      %v2068 = vpop.f32.mrf.mxu0
      %v2069 = vadd.f32 0.0, %v2068
      %v2070 = vpop.f32.mrf.mxu0
      %v2071 = vadd.f32 0.0, %v2070
      %2072 = vmatmul.bf16.gmra.mxu0 %v2027
      %v2073 = vpop.f32.mrf.mxu0
      %v2074 = vadd.f32 0.0, %v2073
      %v2075 = vpop.f32.mrf.mxu0
      %v2076 = vadd.f32 0.0, %v2075
      %2077 = vmatmul.bf16.gmra.mxu0 %v2030
      %v2078 = vpop.f32.mrf.mxu0
      %v2079 = vadd.f32 0.0, %v2078
      %v2080 = vpop.f32.mrf.mxu0
      %v2081 = vadd.f32 0.0, %v2080
      %2082 = vmatmul.bf16.gmra.mxu0 %v2033
      %v2083 = vpop.f32.mrf.mxu0
      %v2084 = vadd.f32 0.0, %v2083
      %v2085 = vpop.f32.mrf.mxu0
      %v2086 = vadd.f32 0.0, %v2085
      %2087 = vmatmul.bf16.gmra.mxu0 %v2036
      %v2088 = vpop.f32.mrf.mxu0
      %v2089 = vadd.f32 0.0, %v2088
      %v2090 = vpop.f32.mrf.mxu0
      %v2091 = vadd.f32 0.0, %v2090
      %2092 = vmatmul.bf16.gmra.mxu0 %v2039
      %v2093 = vpop.f32.mrf.mxu0
      %v2094 = vadd.f32 0.0, %v2093
      %v2095 = vpop.f32.mrf.mxu0
      %v2096 = vadd.f32 0.0, %v2095
      %2097 = vmatmul.bf16.gmra.mxu0 %v2042
      %v2098 = vpop.f32.mrf.mxu0
      %v2099 = vadd.f32 0.0, %v2098
      %v2100 = vpop.f32.mrf.mxu0
      %v2101 = vadd.f32 0.0, %v2100
      %2102 = vmatmul.bf16.gmra.mxu0 %v2045
      %v2103 = vpop.f32.mrf.mxu0
      %v2104 = vadd.f32 0.0, %v2103
      %v2105 = vpop.f32.mrf.mxu0
      %v2106 = vadd.f32 0.0, %v2105
      %2107 = vmatmul.bf16.gmra.mxu0 %v2048
      %v2108 = vpop.f32.mrf.mxu0
      %v2109 = vadd.f32 0.0, %v2108
      %v2110 = vpop.f32.mrf.mxu0
      %v2111 = vadd.f32 0.0, %v2110
      %2112 = vdwg.mxu0
      %v2133 = vunpack.c.l.b16 %v1899
      %v2134 = vunpack.c.l.b16 %v1900
      %v2135 = vunpack.c.l.b16 %v1901
      %v2136 = vunpack.c.l.b16 %v1902
      %v2137 = vunpack.c.l.b16 %v1903
      %v2138 = vunpack.c.l.b16 %v1904
      %v2139 = vunpack.c.l.b16 %v1905
      %v2140 = vunpack.c.l.b16 %v1906
      %v2141 = vunpack.c.l.b16 %v1907
      %v2142 = vunpack.c.l.b16 %v1908
      %v2143 = vunpack.c.l.b16 %v1909
      %v2144 = vunpack.c.l.b16 %v1910
      %v2145 = vunpack.c.l.b16 %v1911
      %v2146 = vunpack.c.l.b16 %v1912
      %v2147 = vunpack.c.l.b16 %v1913
      %v2148 = vunpack.c.l.b16 %v1914
      %v2149 = vunpack.c.l.b16 %v1915
      %v2150 = vunpack.c.l.b16 %v1916
      %v2151 = vunpack.c.l.b16 %v1917
      %v2152 = vunpack.c.l.b16 %v1918
      %v2153 = vpack.c.b16 %v2134, %v2133
      %v2154 = vpack.c.b16 %v2136, %v2135
      %v2155 = vpack.c.b16 %v2138, %v2137
      %v2156 = vpack.c.b16 %v2140, %v2139
      %v2157 = vpack.c.b16 %v2142, %v2141
      %v2158 = vpack.c.b16 %v2144, %v2143
      %v2159 = vpack.c.b16 %v2146, %v2145
      %v2160 = vpack.c.b16 %v2148, %v2147
      %v2161 = vpack.c.b16 %v2150, %v2149
      %v2162 = vpack.c.b16 %v2152, %v2151
      %v2164 = vsel %vm2019, %v2153, 0
      %v2167 = vsel %vm2019, %v2154, 0
      %v2170 = vsel %vm2019, %v2155, 0
      %v2173 = vsel %vm2019, %v2156, 0
      %v2176 = vsel %vm2019, %v2157, 0
      %v2179 = vsel %vm2019, %v2158, 0
      %v2182 = vsel %vm2019, %v2159, 0
      %v2185 = vsel %vm2019, %v2160, 0
      %v2188 = vsel %vm2019, %v2161, 0
      %v2191 = vsel %vm2019, %v2162, 0
      %v2194 = vsel %vm2050, %v1924, 0
      %2196 = vmatpush.bf16.msra.mxu0 0
      %2197 = vmatpush.bf16.msra.mxu0 0
      %2198 = vmatpush.bf16.msra.mxu0 %v2194
      %2199 = vmatpush.bf16.msra.mxu0 %v1923
      %2200 = vmatpush.bf16.msra.mxu0 %v1922
      %2201 = vmatpush.bf16.msra.mxu0 %v1921
      %2202 = vmatpush.bf16.msra.mxu0 %v1920
      %2203 = vmatpush.bf16.msra.mxu0 %v1919
      %2204 = vmatmul.bf16.gmra.mxu0 %v2164
      %v2205 = vpop.f32.mrf.mxu0
      %v2206 = vadd.f32 %v2064, %v2205
      %v2207 = vpop.f32.mrf.mxu0
      %v2208 = vadd.f32 %v2066, %v2207
      %2209 = vmatmul.bf16.gmra.mxu0 %v2167
      %v2210 = vpop.f32.mrf.mxu0
      %v2211 = vadd.f32 %v2069, %v2210
      %v2212 = vpop.f32.mrf.mxu0
      %v2213 = vadd.f32 %v2071, %v2212
      %2214 = vmatmul.bf16.gmra.mxu0 %v2170
      %v2215 = vpop.f32.mrf.mxu0
      %v2216 = vadd.f32 %v2074, %v2215
      %v2217 = vpop.f32.mrf.mxu0
      %v2218 = vadd.f32 %v2076, %v2217
      %2219 = vmatmul.bf16.gmra.mxu0 %v2173
      %v2220 = vpop.f32.mrf.mxu0
      %v2221 = vadd.f32 %v2079, %v2220
      %v2222 = vpop.f32.mrf.mxu0
      %v2223 = vadd.f32 %v2081, %v2222
      %2224 = vmatmul.bf16.gmra.mxu0 %v2176
      %v2225 = vpop.f32.mrf.mxu0
      %v2226 = vadd.f32 %v2084, %v2225
      %v2227 = vpop.f32.mrf.mxu0
      %v2228 = vadd.f32 %v2086, %v2227
      %2229 = vmatmul.bf16.gmra.mxu0 %v2179
      %v2230 = vpop.f32.mrf.mxu0
      %v2231 = vadd.f32 %v2089, %v2230
      %v2232 = vpop.f32.mrf.mxu0
      %v2233 = vadd.f32 %v2091, %v2232
      %2234 = vmatmul.bf16.gmra.mxu0 %v2182
      %v2235 = vpop.f32.mrf.mxu0
      %v2236 = vadd.f32 %v2094, %v2235
      %v2237 = vpop.f32.mrf.mxu0
      %v2238 = vadd.f32 %v2096, %v2237
      %2239 = vmatmul.bf16.gmra.mxu0 %v2185
      %v2240 = vpop.f32.mrf.mxu0
      %v2241 = vadd.f32 %v2099, %v2240
      %v2242 = vpop.f32.mrf.mxu0
      %v2243 = vadd.f32 %v2101, %v2242
      %2244 = vmatmul.bf16.gmra.mxu0 %v2188
      %v2245 = vpop.f32.mrf.mxu0
      %v2246 = vadd.f32 %v2104, %v2245
      %v2247 = vpop.f32.mrf.mxu0
      %v2248 = vadd.f32 %v2106, %v2247
      %2249 = vmatmul.bf16.gmra.mxu0 %v2191
      %v2250 = vpop.f32.mrf.mxu0
      %v2251 = vadd.f32 %v2109, %v2250
      %v2252 = vpop.f32.mrf.mxu0
      %v2253 = vadd.f32 %v2111, %v2252
      %2254 = vdwg.mxu0
      %s2255 = scalar_lea.vmem %s2, 160
      %v2256 = vld [vmem:[%s2255] sm:$0xf]
      %v2257 = vld [vmem:[%s2255 + $0x4] sm:$0xf]
      %v2258 = vld [vmem:[%s2255 + $0x8] sm:$0xf]
      %v2259 = vld [vmem:[%s2255 + $0xc] sm:$0xf]
      %v2260 = vld [vmem:[%s2255 + $0x10] sm:$0xf]
      %v2261 = vld [vmem:[%s2255 + $0x14] sm:$0xf]
      %v2262 = vld [vmem:[%s2255 + $0x18] sm:$0xf]
      %v2263 = vld [vmem:[%s2255 + $0x1c] sm:$0xf]
      %v2264 = vld [vmem:[%s2255 + $0x20] sm:$0xf]
      %v2265 = vld [vmem:[%s2255 + $0x24] sm:$0xf]
      %v2266 = vld [vmem:[%s2255 + $0x28] sm:$0xf]
      %v2267 = vld [vmem:[%s2255 + $0x2c] sm:$0xf]
      %v2268 = vld [vmem:[%s2255 + $0x30] sm:$0xf]
      %v2269 = vld [vmem:[%s2255 + $0x34] sm:$0xf]
      %v2270 = vld [vmem:[%s2255 + $0x38] sm:$0xf]
      %v2271 = vld [vmem:[%s2255 + $0x3c] sm:$0xf]
      %v2272 = vld [vmem:[%s2255 + $0x40] sm:$0xf]
      %v2273 = vld [vmem:[%s2255 + $0x44] sm:$0xf]
      %v2274 = vld [vmem:[%s2255 + $0x48] sm:$0xf]
      %v2275 = vld [vmem:[%s2255 + $0x4c] sm:$0xf]
      %v2296 = vunpack.c.l.b16 %v2256
      %v2297 = vunpack.c.l.b16 %v2257
      %v2298 = vunpack.c.l.b16 %v2258
      %v2299 = vunpack.c.l.b16 %v2259
      %v2300 = vunpack.c.l.b16 %v2260
      %v2301 = vunpack.c.l.b16 %v2261
      %v2302 = vunpack.c.l.b16 %v2262
      %v2303 = vunpack.c.l.b16 %v2263
      %v2304 = vunpack.c.l.b16 %v2264
      %v2305 = vunpack.c.l.b16 %v2265
      %v2306 = vunpack.c.l.b16 %v2266
      %v2307 = vunpack.c.l.b16 %v2267
      %v2308 = vunpack.c.l.b16 %v2268
      %v2309 = vunpack.c.l.b16 %v2269
      %v2310 = vunpack.c.l.b16 %v2270
      %v2311 = vunpack.c.l.b16 %v2271
      %v2312 = vunpack.c.l.b16 %v2272
      %v2313 = vunpack.c.l.b16 %v2273
      %v2314 = vunpack.c.l.b16 %v2274
      %v2315 = vunpack.c.l.b16 %v2275
      %v2316 = vpack.c.b16 %v2297, %v2296
      %v2317 = vpack.c.b16 %v2299, %v2298
      %v2318 = vpack.c.b16 %v2301, %v2300
      %v2319 = vpack.c.b16 %v2303, %v2302
      %v2320 = vpack.c.b16 %v2305, %v2304
      %v2321 = vpack.c.b16 %v2307, %v2306
      %v2322 = vpack.c.b16 %v2309, %v2308
      %v2323 = vpack.c.b16 %v2311, %v2310
      %v2324 = vpack.c.b16 %v2313, %v2312
      %v2325 = vpack.c.b16 %v2315, %v2314
      %2326 = vrot.lane.b32.xlu0 %v1919, 126
      %v2327 = vpop.permute.xlu0 %2326
      %2328 = vrot.lane.b32.xlu0 %v1920, 126
      %v2329 = vpop.permute.xlu0 %2328
      %2330 = vrot.lane.b32.xlu0 %v1921, 126
      %v2331 = vpop.permute.xlu0 %2330
      %2332 = vrot.lane.b32.xlu0 %v1922, 126
      %v2333 = vpop.permute.xlu0 %2332
      %2334 = vrot.lane.b32.xlu0 %v1923, 126
      %v2335 = vpop.permute.xlu0 %2334
      %2336 = vrot.lane.b32.xlu0 %v1924, 126
      %v2337 = vpop.permute.xlu0 %2336
      %v2344 = vsel %vm2019, %v2316, 0
      %v2347 = vsel %vm2019, %v2317, 0
      %v2350 = vsel %vm2019, %v2318, 0
      %v2353 = vsel %vm2019, %v2319, 0
      %v2356 = vsel %vm2019, %v2320, 0
      %v2359 = vsel %vm2019, %v2321, 0
      %v2362 = vsel %vm2019, %v2322, 0
      %v2365 = vsel %vm2019, %v2323, 0
      %v2368 = vsel %vm2019, %v2324, 0
      %v2371 = vsel %vm2019, %v2325, 0
      %v2374 = vsel %vm2050, %v2337, 0
      %2376 = vmatpush.bf16.msra.mxu0 0
      %2377 = vmatpush.bf16.msra.mxu0 0
      %2378 = vmatpush.bf16.msra.mxu0 %v2374
      %2379 = vmatpush.bf16.msra.mxu0 %v2335
      %2380 = vmatpush.bf16.msra.mxu0 %v2333
      %2381 = vmatpush.bf16.msra.mxu0 %v2331
      %2382 = vmatpush.bf16.msra.mxu0 %v2329
      %2383 = vmatpush.bf16.msra.mxu0 %v2327
      %2384 = vmatmul.bf16.gmra.mxu0 %v2344
      %v2385 = vpop.f32.mrf.mxu0
      %v2386 = vadd.f32 0.0, %v2385
      %v2387 = vpop.f32.mrf.mxu0
      %v2388 = vadd.f32 0.0, %v2387
      %2389 = vmatmul.bf16.gmra.mxu0 %v2347
      %v2390 = vpop.f32.mrf.mxu0
      %v2391 = vadd.f32 0.0, %v2390
      %v2392 = vpop.f32.mrf.mxu0
      %v2393 = vadd.f32 0.0, %v2392
      %2394 = vmatmul.bf16.gmra.mxu0 %v2350
      %v2395 = vpop.f32.mrf.mxu0
      %v2396 = vadd.f32 0.0, %v2395
      %v2397 = vpop.f32.mrf.mxu0
      %v2398 = vadd.f32 0.0, %v2397
      %2399 = vmatmul.bf16.gmra.mxu0 %v2353
      %v2400 = vpop.f32.mrf.mxu0
      %v2401 = vadd.f32 0.0, %v2400
      %v2402 = vpop.f32.mrf.mxu0
      %v2403 = vadd.f32 0.0, %v2402
      %2404 = vmatmul.bf16.gmra.mxu0 %v2356
      %v2405 = vpop.f32.mrf.mxu0
      %v2406 = vadd.f32 0.0, %v2405
      %v2407 = vpop.f32.mrf.mxu0
      %v2408 = vadd.f32 0.0, %v2407
      %2409 = vmatmul.bf16.gmra.mxu0 %v2359
      %v2410 = vpop.f32.mrf.mxu0
      %v2411 = vadd.f32 0.0, %v2410
      %v2412 = vpop.f32.mrf.mxu0
      %v2413 = vadd.f32 0.0, %v2412
      %2414 = vmatmul.bf16.gmra.mxu0 %v2362
      %v2415 = vpop.f32.mrf.mxu0
      %v2416 = vadd.f32 0.0, %v2415
      %v2417 = vpop.f32.mrf.mxu0
      %v2418 = vadd.f32 0.0, %v2417
      %2419 = vmatmul.bf16.gmra.mxu0 %v2365
      %v2420 = vpop.f32.mrf.mxu0
      %v2421 = vadd.f32 0.0, %v2420
      %v2422 = vpop.f32.mrf.mxu0
      %v2423 = vadd.f32 0.0, %v2422
      %2424 = vmatmul.bf16.gmra.mxu0 %v2368
      %v2425 = vpop.f32.mrf.mxu0
      %v2426 = vadd.f32 0.0, %v2425
      %v2427 = vpop.f32.mrf.mxu0
      %v2428 = vadd.f32 0.0, %v2427
      %2429 = vmatmul.bf16.gmra.mxu0 %v2371
      %v2430 = vpop.f32.mrf.mxu0
      %v2431 = vadd.f32 0.0, %v2430
      %v2432 = vpop.f32.mrf.mxu0
      %v2433 = vadd.f32 0.0, %v2432
      %2434 = vdwg.mxu0
      %v2435 = vadd.f32 %v2206, %v2386
      %v2436 = vadd.f32 %v2208, %v2388
      %v2437 = vadd.f32 %v2211, %v2391
      %v2438 = vadd.f32 %v2213, %v2393
      %v2439 = vadd.f32 %v2216, %v2396
      %v2440 = vadd.f32 %v2218, %v2398
      %v2441 = vadd.f32 %v2221, %v2401
      %v2442 = vadd.f32 %v2223, %v2403
      %v2443 = vadd.f32 %v2226, %v2406
      %v2444 = vadd.f32 %v2228, %v2408
      %v2445 = vadd.f32 %v2231, %v2411
      %v2446 = vadd.f32 %v2233, %v2413
      %v2447 = vadd.f32 %v2236, %v2416
      %v2448 = vadd.f32 %v2238, %v2418
      %v2449 = vadd.f32 %v2241, %v2421
      %v2450 = vadd.f32 %v2243, %v2423
      %v2451 = vadd.f32 %v2246, %v2426
      %v2452 = vadd.f32 %v2248, %v2428
      %v2453 = vadd.f32 %v2251, %v2431
      %v2454 = vadd.f32 %v2253, %v2433
      %s2455 = scalar_lea.vmem %s2, 240
      %v2456 = vld [vmem:[%s2455] sm:$0xf]
      %v2457 = vld [vmem:[%s2455 + $0x4] sm:$0xf]
      %v2458 = vld [vmem:[%s2455 + $0x8] sm:$0xf]
      %v2459 = vld [vmem:[%s2455 + $0xc] sm:$0xf]
      %v2460 = vld [vmem:[%s2455 + $0x10] sm:$0xf]
      %v2461 = vld [vmem:[%s2455 + $0x14] sm:$0xf]
      %v2462 = vld [vmem:[%s2455 + $0x18] sm:$0xf]
      %v2463 = vld [vmem:[%s2455 + $0x1c] sm:$0xf]
      %v2464 = vld [vmem:[%s2455 + $0x20] sm:$0xf]
      %v2465 = vld [vmem:[%s2455 + $0x24] sm:$0xf]
      %v2466 = vld [vmem:[%s2455 + $0x28] sm:$0xf]
      %v2467 = vld [vmem:[%s2455 + $0x2c] sm:$0xf]
      %v2468 = vld [vmem:[%s2455 + $0x30] sm:$0xf]
      %v2469 = vld [vmem:[%s2455 + $0x34] sm:$0xf]
      %v2470 = vld [vmem:[%s2455 + $0x38] sm:$0xf]
      %v2471 = vld [vmem:[%s2455 + $0x3c] sm:$0xf]
      %v2472 = vld [vmem:[%s2455 + $0x40] sm:$0xf]
      %v2473 = vld [vmem:[%s2455 + $0x44] sm:$0xf]
      %v2474 = vld [vmem:[%s2455 + $0x48] sm:$0xf]
      %v2475 = vld [vmem:[%s2455 + $0x4c] sm:$0xf]
      %v2496 = vunpack.c.l.b16 %v2456
      %v2497 = vunpack.c.l.b16 %v2457
      %v2498 = vunpack.c.l.b16 %v2458
      %v2499 = vunpack.c.l.b16 %v2459
      %v2500 = vunpack.c.l.b16 %v2460
      %v2501 = vunpack.c.l.b16 %v2461
      %v2502 = vunpack.c.l.b16 %v2462
      %v2503 = vunpack.c.l.b16 %v2463
      %v2504 = vunpack.c.l.b16 %v2464
      %v2505 = vunpack.c.l.b16 %v2465
      %v2506 = vunpack.c.l.b16 %v2466
      %v2507 = vunpack.c.l.b16 %v2467
      %v2508 = vunpack.c.l.b16 %v2468
      %v2509 = vunpack.c.l.b16 %v2469
      %v2510 = vunpack.c.l.b16 %v2470
      %v2511 = vunpack.c.l.b16 %v2471
      %v2512 = vunpack.c.l.b16 %v2472
      %v2513 = vunpack.c.l.b16 %v2473
      %v2514 = vunpack.c.l.b16 %v2474
      %v2515 = vunpack.c.l.b16 %v2475
      %v2516 = vpack.c.b16 %v2497, %v2496
      %v2517 = vpack.c.b16 %v2499, %v2498
      %v2518 = vpack.c.b16 %v2501, %v2500
      %v2519 = vpack.c.b16 %v2503, %v2502
      %v2520 = vpack.c.b16 %v2505, %v2504
      %v2521 = vpack.c.b16 %v2507, %v2506
      %v2522 = vpack.c.b16 %v2509, %v2508
      %v2523 = vpack.c.b16 %v2511, %v2510
      %v2524 = vpack.c.b16 %v2513, %v2512
      %v2525 = vpack.c.b16 %v2515, %v2514
      %2526 = vrot.lane.b32.xlu0 %v1919, 125
      %v2527 = vpop.permute.xlu0 %2526
      %2528 = vrot.lane.b32.xlu0 %v1920, 125
      %v2529 = vpop.permute.xlu0 %2528
      %2530 = vrot.lane.b32.xlu0 %v1921, 125
      %v2531 = vpop.permute.xlu0 %2530
      %2532 = vrot.lane.b32.xlu0 %v1922, 125
      %v2533 = vpop.permute.xlu0 %2532
      %2534 = vrot.lane.b32.xlu0 %v1923, 125
      %v2535 = vpop.permute.xlu0 %2534
      %2536 = vrot.lane.b32.xlu0 %v1924, 125
      %v2537 = vpop.permute.xlu0 %2536
      %v2544 = vsel %vm2019, %v2516, 0
      %v2547 = vsel %vm2019, %v2517, 0
      %v2550 = vsel %vm2019, %v2518, 0
      %v2553 = vsel %vm2019, %v2519, 0
      %v2556 = vsel %vm2019, %v2520, 0
      %v2559 = vsel %vm2019, %v2521, 0
      %v2562 = vsel %vm2019, %v2522, 0
      %v2565 = vsel %vm2019, %v2523, 0
      %v2568 = vsel %vm2019, %v2524, 0
      %v2571 = vsel %vm2019, %v2525, 0
      %v2574 = vsel %vm2050, %v2537, 0
      %2576 = vmatpush.bf16.msra.mxu0 0
      %2577 = vmatpush.bf16.msra.mxu0 0
      %2578 = vmatpush.bf16.msra.mxu0 %v2574
      %2579 = vmatpush.bf16.msra.mxu0 %v2535
      %2580 = vmatpush.bf16.msra.mxu0 %v2533
      %2581 = vmatpush.bf16.msra.mxu0 %v2531
      %2582 = vmatpush.bf16.msra.mxu0 %v2529
      %2583 = vmatpush.bf16.msra.mxu0 %v2527
      %2584 = vmatmul.bf16.gmra.mxu0 %v2544
      %v2585 = vpop.f32.mrf.mxu0
      %v2586 = vadd.f32 0.0, %v2585
      %v2587 = vpop.f32.mrf.mxu0
      %v2588 = vadd.f32 0.0, %v2587
      %2589 = vmatmul.bf16.gmra.mxu0 %v2547
      %v2590 = vpop.f32.mrf.mxu0
      %v2591 = vadd.f32 0.0, %v2590
      %v2592 = vpop.f32.mrf.mxu0
      %v2593 = vadd.f32 0.0, %v2592
      %2594 = vmatmul.bf16.gmra.mxu0 %v2550
      %v2595 = vpop.f32.mrf.mxu0
      %v2596 = vadd.f32 0.0, %v2595
      %v2597 = vpop.f32.mrf.mxu0
      %v2598 = vadd.f32 0.0, %v2597
      %2599 = vmatmul.bf16.gmra.mxu0 %v2553
      %v2600 = vpop.f32.mrf.mxu0
      %v2601 = vadd.f32 0.0, %v2600
      %v2602 = vpop.f32.mrf.mxu0
      %v2603 = vadd.f32 0.0, %v2602
      %2604 = vmatmul.bf16.gmra.mxu0 %v2556
      %v2605 = vpop.f32.mrf.mxu0
      %v2606 = vadd.f32 0.0, %v2605
      %v2607 = vpop.f32.mrf.mxu0
      %v2608 = vadd.f32 0.0, %v2607
      %2609 = vmatmul.bf16.gmra.mxu0 %v2559
      %v2610 = vpop.f32.mrf.mxu0
      %v2611 = vadd.f32 0.0, %v2610
      %v2612 = vpop.f32.mrf.mxu0
      %v2613 = vadd.f32 0.0, %v2612
      %2614 = vmatmul.bf16.gmra.mxu0 %v2562
      %v2615 = vpop.f32.mrf.mxu0
      %v2616 = vadd.f32 0.0, %v2615
      %v2617 = vpop.f32.mrf.mxu0
      %v2618 = vadd.f32 0.0, %v2617
      %2619 = vmatmul.bf16.gmra.mxu0 %v2565
      %v2620 = vpop.f32.mrf.mxu0
      %v2621 = vadd.f32 0.0, %v2620
      %v2622 = vpop.f32.mrf.mxu0
      %v2623 = vadd.f32 0.0, %v2622
      %2624 = vmatmul.bf16.gmra.mxu0 %v2568
      %v2625 = vpop.f32.mrf.mxu0
      %v2626 = vadd.f32 0.0, %v2625
      %v2627 = vpop.f32.mrf.mxu0
      %v2628 = vadd.f32 0.0, %v2627
      %2629 = vmatmul.bf16.gmra.mxu0 %v2571
      %v2630 = vpop.f32.mrf.mxu0
      %v2631 = vadd.f32 0.0, %v2630
      %v2632 = vpop.f32.mrf.mxu0
      %v2633 = vadd.f32 0.0, %v2632
      %2634 = vdwg.mxu0
      %v2635 = vadd.f32 %v2435, %v2586
      %v2636 = vadd.f32 %v2436, %v2588
      %v2637 = vadd.f32 %v2437, %v2591
      %v2638 = vadd.f32 %v2438, %v2593
      %v2639 = vadd.f32 %v2439, %v2596
      %v2640 = vadd.f32 %v2440, %v2598
      %v2641 = vadd.f32 %v2441, %v2601
      %v2642 = vadd.f32 %v2442, %v2603
      %v2643 = vadd.f32 %v2443, %v2606
      %v2644 = vadd.f32 %v2444, %v2608
      %v2645 = vadd.f32 %v2445, %v2611
      %v2646 = vadd.f32 %v2446, %v2613
      %v2647 = vadd.f32 %v2447, %v2616
      %v2648 = vadd.f32 %v2448, %v2618
      %v2649 = vadd.f32 %v2449, %v2621
      %v2650 = vadd.f32 %v2450, %v2623
      %v2651 = vadd.f32 %v2451, %v2626
      %v2652 = vadd.f32 %v2452, %v2628
      %v2653 = vadd.f32 %v2453, %v2631
      %v2654 = vadd.f32 %v2454, %v2633
      %s2655 = scalar_lea.vmem %s2, 320
      %v2656 = vld [vmem:[%s2655] sm:$0xf]
      %v2657 = vld [vmem:[%s2655 + $0x4] sm:$0xf]
      %v2658 = vld [vmem:[%s2655 + $0x8] sm:$0xf]
      %v2659 = vld [vmem:[%s2655 + $0xc] sm:$0xf]
      %v2660 = vld [vmem:[%s2655 + $0x10] sm:$0xf]
      %v2661 = vld [vmem:[%s2655 + $0x14] sm:$0xf]
      %v2662 = vld [vmem:[%s2655 + $0x18] sm:$0xf]
      %v2663 = vld [vmem:[%s2655 + $0x1c] sm:$0xf]
      %v2664 = vld [vmem:[%s2655 + $0x20] sm:$0xf]
      %v2665 = vld [vmem:[%s2655 + $0x24] sm:$0xf]
      %v2666 = vld [vmem:[%s2655 + $0x28] sm:$0xf]
      %v2667 = vld [vmem:[%s2655 + $0x2c] sm:$0xf]
      %v2668 = vld [vmem:[%s2655 + $0x30] sm:$0xf]
      %v2669 = vld [vmem:[%s2655 + $0x34] sm:$0xf]
      %v2670 = vld [vmem:[%s2655 + $0x38] sm:$0xf]
      %v2671 = vld [vmem:[%s2655 + $0x3c] sm:$0xf]
      %v2672 = vld [vmem:[%s2655 + $0x40] sm:$0xf]
      %v2673 = vld [vmem:[%s2655 + $0x44] sm:$0xf]
      %v2674 = vld [vmem:[%s2655 + $0x48] sm:$0xf]
      %v2675 = vld [vmem:[%s2655 + $0x4c] sm:$0xf]
      %v2696 = vunpack.c.l.b16 %v2656
      %v2697 = vunpack.c.l.b16 %v2657
      %v2698 = vunpack.c.l.b16 %v2658
      %v2699 = vunpack.c.l.b16 %v2659
      %v2700 = vunpack.c.l.b16 %v2660
      %v2701 = vunpack.c.l.b16 %v2661
      %v2702 = vunpack.c.l.b16 %v2662
      %v2703 = vunpack.c.l.b16 %v2663
      %v2704 = vunpack.c.l.b16 %v2664
      %v2705 = vunpack.c.l.b16 %v2665
      %v2706 = vunpack.c.l.b16 %v2666
      %v2707 = vunpack.c.l.b16 %v2667
      %v2708 = vunpack.c.l.b16 %v2668
      %v2709 = vunpack.c.l.b16 %v2669
      %v2710 = vunpack.c.l.b16 %v2670
      %v2711 = vunpack.c.l.b16 %v2671
      %v2712 = vunpack.c.l.b16 %v2672
      %v2713 = vunpack.c.l.b16 %v2673
      %v2714 = vunpack.c.l.b16 %v2674
      %v2715 = vunpack.c.l.b16 %v2675
      %v2716 = vpack.c.b16 %v2697, %v2696
      %v2717 = vpack.c.b16 %v2699, %v2698
      %v2718 = vpack.c.b16 %v2701, %v2700
      %v2719 = vpack.c.b16 %v2703, %v2702
      %v2720 = vpack.c.b16 %v2705, %v2704
      %v2721 = vpack.c.b16 %v2707, %v2706
      %v2722 = vpack.c.b16 %v2709, %v2708
      %v2723 = vpack.c.b16 %v2711, %v2710
      %v2724 = vpack.c.b16 %v2713, %v2712
      %v2725 = vpack.c.b16 %v2715, %v2714
      %2726 = vrot.lane.b32.xlu0 %v1919, 124
      %v2727 = vpop.permute.xlu0 %2726
      %2728 = vrot.lane.b32.xlu0 %v1920, 124
      %v2729 = vpop.permute.xlu0 %2728
      %2730 = vrot.lane.b32.xlu0 %v1921, 124
      %v2731 = vpop.permute.xlu0 %2730
      %2732 = vrot.lane.b32.xlu0 %v1922, 124
      %v2733 = vpop.permute.xlu0 %2732
      %2734 = vrot.lane.b32.xlu0 %v1923, 124
      %v2735 = vpop.permute.xlu0 %2734
      %2736 = vrot.lane.b32.xlu0 %v1924, 124
      %v2737 = vpop.permute.xlu0 %2736
      %v2744 = vsel %vm2019, %v2716, 0
      %v2747 = vsel %vm2019, %v2717, 0
      %v2750 = vsel %vm2019, %v2718, 0
      %v2753 = vsel %vm2019, %v2719, 0
      %v2756 = vsel %vm2019, %v2720, 0
      %v2759 = vsel %vm2019, %v2721, 0
      %v2762 = vsel %vm2019, %v2722, 0
      %v2765 = vsel %vm2019, %v2723, 0
      %v2768 = vsel %vm2019, %v2724, 0
      %v2771 = vsel %vm2019, %v2725, 0
      %v2774 = vsel %vm2050, %v2737, 0
      %2776 = vmatpush.bf16.msra.mxu0 0
      %2777 = vmatpush.bf16.msra.mxu0 0
      %2778 = vmatpush.bf16.msra.mxu0 %v2774
      %2779 = vmatpush.bf16.msra.mxu0 %v2735
      %2780 = vmatpush.bf16.msra.mxu0 %v2733
      %2781 = vmatpush.bf16.msra.mxu0 %v2731
      %2782 = vmatpush.bf16.msra.mxu0 %v2729
      %2783 = vmatpush.bf16.msra.mxu0 %v2727
      %2784 = vmatmul.bf16.gmra.mxu0 %v2744
      %v2785 = vpop.f32.mrf.mxu0
      %v2786 = vadd.f32 0.0, %v2785
      %v2787 = vpop.f32.mrf.mxu0
      %v2788 = vadd.f32 0.0, %v2787
      %2789 = vmatmul.bf16.gmra.mxu0 %v2747
      %v2790 = vpop.f32.mrf.mxu0
      %v2791 = vadd.f32 0.0, %v2790
      %v2792 = vpop.f32.mrf.mxu0
      %v2793 = vadd.f32 0.0, %v2792
      %2794 = vmatmul.bf16.gmra.mxu0 %v2750
      %v2795 = vpop.f32.mrf.mxu0
      %v2796 = vadd.f32 0.0, %v2795
      %v2797 = vpop.f32.mrf.mxu0
      %v2798 = vadd.f32 0.0, %v2797
      %2799 = vmatmul.bf16.gmra.mxu0 %v2753
      %v2800 = vpop.f32.mrf.mxu0
      %v2801 = vadd.f32 0.0, %v2800
      %v2802 = vpop.f32.mrf.mxu0
      %v2803 = vadd.f32 0.0, %v2802
      %2804 = vmatmul.bf16.gmra.mxu0 %v2756
      %v2805 = vpop.f32.mrf.mxu0
      %v2806 = vadd.f32 0.0, %v2805
      %v2807 = vpop.f32.mrf.mxu0
      %v2808 = vadd.f32 0.0, %v2807
      %2809 = vmatmul.bf16.gmra.mxu0 %v2759
      %v2810 = vpop.f32.mrf.mxu0
      %v2811 = vadd.f32 0.0, %v2810
      %v2812 = vpop.f32.mrf.mxu0
      %v2813 = vadd.f32 0.0, %v2812
      %2814 = vmatmul.bf16.gmra.mxu0 %v2762
      %v2815 = vpop.f32.mrf.mxu0
      %v2816 = vadd.f32 0.0, %v2815
      %v2817 = vpop.f32.mrf.mxu0
      %v2818 = vadd.f32 0.0, %v2817
      %2819 = vmatmul.bf16.gmra.mxu0 %v2765
      %v2820 = vpop.f32.mrf.mxu0
      %v2821 = vadd.f32 0.0, %v2820
      %v2822 = vpop.f32.mrf.mxu0
      %v2823 = vadd.f32 0.0, %v2822
      %2824 = vmatmul.bf16.gmra.mxu0 %v2768
      %v2825 = vpop.f32.mrf.mxu0
      %v2826 = vadd.f32 0.0, %v2825
      %v2827 = vpop.f32.mrf.mxu0
      %v2828 = vadd.f32 0.0, %v2827
      %2829 = vmatmul.bf16.gmra.mxu0 %v2771
      %v2830 = vpop.f32.mrf.mxu0
      %v2831 = vadd.f32 0.0, %v2830
      %v2832 = vpop.f32.mrf.mxu0
      %v2833 = vadd.f32 0.0, %v2832
      %2834 = vdwg.mxu0
      %v2835 = vadd.f32 %v2635, %v2786
      %v2836 = vadd.f32 %v2636, %v2788
      %v2837 = vadd.f32 %v2637, %v2791
      %v2838 = vadd.f32 %v2638, %v2793
      %v2839 = vadd.f32 %v2639, %v2796
      %v2840 = vadd.f32 %v2640, %v2798
      %v2841 = vadd.f32 %v2641, %v2801
      %v2842 = vadd.f32 %v2642, %v2803
      %v2843 = vadd.f32 %v2643, %v2806
      %v2844 = vadd.f32 %v2644, %v2808
      %v2845 = vadd.f32 %v2645, %v2811
      %v2846 = vadd.f32 %v2646, %v2813
      %v2847 = vadd.f32 %v2647, %v2816
      %v2848 = vadd.f32 %v2648, %v2818
      %v2849 = vadd.f32 %v2649, %v2821
      %v2850 = vadd.f32 %v2650, %v2823
      %v2851 = vadd.f32 %v2651, %v2826
      %v2852 = vadd.f32 %v2652, %v2828
      %v2853 = vadd.f32 %v2653, %v2831
      %v2854 = vadd.f32 %v2654, %v2833
      %2856 = vset.pattern.permute.xlu0 0
      %2857 = vperm.xlu0 %2856, %v1879
      %v2858 = vpop.permute.xlu0 %2857
      %2861 = vset.pattern.permute.xlu0 0
      %2862 = vperm.xlu0 %2861, %v1880
      %v2863 = vpop.permute.xlu0 %2862
      %2866 = vset.pattern.permute.xlu0 0
      %2867 = vperm.xlu0 %2866, %v1881
      %v2868 = vpop.permute.xlu0 %2867
      %2871 = vset.pattern.permute.xlu0 0
      %2872 = vperm.xlu0 %2871, %v1882
      %v2873 = vpop.permute.xlu0 %2872
      %2876 = vset.pattern.permute.xlu0 0
      %2877 = vperm.xlu0 %2876, %v1883
      %v2878 = vpop.permute.xlu0 %2877
      %2881 = vset.pattern.permute.xlu0 0
      %2882 = vperm.xlu0 %2881, %v1884
      %v2883 = vpop.permute.xlu0 %2882
      %2886 = vset.pattern.permute.xlu0 0
      %2887 = vperm.xlu0 %2886, %v1885
      %v2888 = vpop.permute.xlu0 %2887
      %2891 = vset.pattern.permute.xlu0 0
      %2892 = vperm.xlu0 %2891, %v1886
      %v2893 = vpop.permute.xlu0 %2892
      %2896 = vset.pattern.permute.xlu0 0
      %2897 = vperm.xlu0 %2896, %v1887
      %v2898 = vpop.permute.xlu0 %2897
      %2901 = vset.pattern.permute.xlu0 0
      %2902 = vperm.xlu0 %2901, %v1888
      %v2903 = vpop.permute.xlu0 %2902
      %2906 = vset.pattern.permute.xlu0 0
      %2907 = vperm.xlu0 %2906, %v1889
      %v2908 = vpop.permute.xlu0 %2907
      %2911 = vset.pattern.permute.xlu0 0
      %2912 = vperm.xlu0 %2911, %v1890
      %v2913 = vpop.permute.xlu0 %2912
      %2916 = vset.pattern.permute.xlu0 0
      %2917 = vperm.xlu0 %2916, %v1891
      %v2918 = vpop.permute.xlu0 %2917
      %2921 = vset.pattern.permute.xlu0 0
      %2922 = vperm.xlu0 %2921, %v1892
      %v2923 = vpop.permute.xlu0 %2922
      %2926 = vset.pattern.permute.xlu0 0
      %2927 = vperm.xlu0 %2926, %v1893
      %v2928 = vpop.permute.xlu0 %2927
      %2931 = vset.pattern.permute.xlu0 0
      %2932 = vperm.xlu0 %2931, %v1894
      %v2933 = vpop.permute.xlu0 %2932
      %2936 = vset.pattern.permute.xlu0 0
      %2937 = vperm.xlu0 %2936, %v1895
      %v2938 = vpop.permute.xlu0 %2937
      %2941 = vset.pattern.permute.xlu0 0
      %2942 = vperm.xlu0 %2941, %v1896
      %v2943 = vpop.permute.xlu0 %2942
      %2946 = vset.pattern.permute.xlu0 0
      %2947 = vperm.xlu0 %2946, %v1897
      %v2948 = vpop.permute.xlu0 %2947
      %2951 = vset.pattern.permute.xlu0 0
      %2952 = vperm.xlu0 %2951, %v1898
      %v2953 = vpop.permute.xlu0 %2952
      %v2955 = vadd.f32 %v2835, %v2858
      %v2956 = vadd.f32 %v2836, %v2863
      %v2957 = vadd.f32 %v2837, %v2868
      %v2958 = vadd.f32 %v2838, %v2873
      %v2959 = vadd.f32 %v2839, %v2878
      %v2960 = vadd.f32 %v2840, %v2883
      %v2961 = vadd.f32 %v2841, %v2888
      %v2962 = vadd.f32 %v2842, %v2893
      %v2963 = vadd.f32 %v2843, %v2898
      %v2964 = vadd.f32 %v2844, %v2903
      %v2965 = vadd.f32 %v2845, %v2908
      %v2966 = vadd.f32 %v2846, %v2913
      %v2967 = vadd.f32 %v2847, %v2918
      %v2968 = vadd.f32 %v2848, %v2923
      %v2969 = vadd.f32 %v2849, %v2928
      %v2970 = vadd.f32 %v2850, %v2933
      %v2971 = vadd.f32 %v2851, %v2938
      %v2972 = vadd.f32 %v2852, %v2943
      %v2973 = vadd.f32 %v2853, %v2948
      %v2974 = vadd.f32 %v2854, %v2953
      %v2975 = vtanh.pop %v2955
      %v2976 = vtanh.pop %v2956
      %v2977 = vtanh.pop %v2957
      %v2978 = vtanh.pop %v2958
      %v2979 = vtanh.pop %v2959
      %v2980 = vtanh.pop %v2960
      %v2981 = vtanh.pop %v2961
      %v2982 = vtanh.pop %v2962
      %v2983 = vtanh.pop %v2963
      %v2984 = vtanh.pop %v2964
      %v2985 = vtanh.pop %v2965
      %v2986 = vtanh.pop %v2966
      %v2987 = vtanh.pop %v2967
      %v2988 = vtanh.pop %v2968
      %v2989 = vtanh.pop %v2969
      %v2990 = vtanh.pop %v2970
      %v2991 = vtanh.pop %v2971
      %v2992 = vtanh.pop %v2972
      %v2993 = vtanh.pop %v2973
      %v2994 = vtanh.pop %v2974
      %v2995 = vld [vmem:[%s6] sm:$0xff]
      %v2996 = vld [vmem:[%s6 + $0x8] sm:$0xff]
      %v2997 = vld [vmem:[%s6 + $0x10] sm:$0xff]
      %v2998 = vld [vmem:[%s6 + $0x18] sm:$0xff]
      %v2999 = vld [vmem:[%s6 + $0x20] sm:$0xff]
      %v3000 = vld [vmem:[%s6 + $0x28] sm:$0xff]
      %v3001 = vld [vmem:[%s6 + $0x30] sm:$0xff]
      %v3002 = vld [vmem:[%s6 + $0x38] sm:$0xff]
      %v3003 = vld [vmem:[%s6 + $0x40] sm:$0xff]
      %v3004 = vld [vmem:[%s6 + $0x48] sm:$0xff]
      %v3005 = vpack.c.bf16 %v2976, %v2975
      %v3006 = vpack.c.bf16 %v2978, %v2977
      %v3007 = vpack.c.bf16 %v2980, %v2979
      %v3008 = vpack.c.bf16 %v2982, %v2981
      %v3009 = vpack.c.bf16 %v2984, %v2983
      %v3010 = vpack.c.bf16 %v2986, %v2985
      %v3011 = vpack.c.bf16 %v2988, %v2987
      %v3012 = vpack.c.bf16 %v2990, %v2989
      %v3013 = vpack.c.bf16 %v2992, %v2991
      %v3014 = vpack.c.bf16 %v2994, %v2993
      %v3025 = vunpack.c.l.b16 %v2995
      %v3026 = vunpack.c.h.b16 %v2995
      %v3027 = vunpack.c.l.b16 %v2996
      %v3028 = vunpack.c.h.b16 %v2996
      %v3029 = vunpack.c.l.b16 %v2997
      %v3030 = vunpack.c.h.b16 %v2997
      %v3031 = vunpack.c.l.b16 %v2998
      %v3032 = vunpack.c.h.b16 %v2998
      %v3033 = vunpack.c.l.b16 %v2999
      %v3034 = vunpack.c.h.b16 %v2999
      %v3035 = vunpack.c.l.b16 %v3000
      %v3036 = vunpack.c.h.b16 %v3000
      %v3037 = vunpack.c.l.b16 %v3001
      %v3038 = vunpack.c.h.b16 %v3001
      %v3039 = vunpack.c.l.b16 %v3002
      %v3040 = vunpack.c.h.b16 %v3002
      %v3041 = vunpack.c.l.b16 %v3003
      %v3042 = vunpack.c.h.b16 %v3003
      %v3043 = vunpack.c.l.b16 %v3004
      %v3044 = vunpack.c.h.b16 %v3004
      %v3045 = vpack.c.b16 %v3027, %v3025
      %v3046 = vpack.c.b16 %v3028, %v3026
      %v3047 = vpack.c.b16 %v3031, %v3029
      %v3048 = vpack.c.b16 %v3032, %v3030
      %v3049 = vpack.c.b16 %v3035, %v3033
      %v3050 = vpack.c.b16 %v3036, %v3034
      %v3051 = vpack.c.b16 %v3039, %v3037
      %v3052 = vpack.c.b16 %v3040, %v3038
      %v3053 = vpack.c.b16 %v3043, %v3041
      %v3054 = vpack.c.b16 %v3044, %v3042
      %v3061 = vsel %vm627, %v3046, 0
      %v3064 = vsel %vm627, %v3048, 0
      %v3067 = vsel %vm627, %v3050, 0
      %v3070 = vsel %vm627, %v3052, 0
      %v3073 = vsel %vm627, %v3054, 0
      %3075 = vmatpush.bf16.msra.mxu0 %v3012
      %3076 = vmatpush.bf16.msra.mxu0 %v3011
      %3077 = vmatpush.bf16.msra.mxu0 %v3010
      %3078 = vmatpush.bf16.msra.mxu0 %v3009
      %3079 = vmatpush.bf16.msra.mxu0 %v3008
      %3080 = vmatpush.bf16.msra.mxu0 %v3007
      %3081 = vmatpush.bf16.msra.mxu0 %v3006
      %3082 = vmatpush.bf16.msra.mxu0 %v3005
      %3083 = vmatmul.bf16.gmra.mxu0 %v3045
      %v3084 = vpop.f32.mrf.mxu0
      %v3085 = vadd.f32 0.0, %v3084
      %v3086 = vpop.f32.mrf.mxu0
      %v3087 = vadd.f32 0.0, %v3086
      %3088 = vmatmul.bf16.gmra.mxu0 %v3047
      %v3089 = vpop.f32.mrf.mxu0
      %v3090 = vadd.f32 0.0, %v3089
      %v3091 = vpop.f32.mrf.mxu0
      %v3092 = vadd.f32 0.0, %v3091
      %3093 = vmatmul.bf16.gmra.mxu0 %v3049
      %v3094 = vpop.f32.mrf.mxu0
      %v3095 = vadd.f32 0.0, %v3094
      %v3096 = vpop.f32.mrf.mxu0
      %v3097 = vadd.f32 0.0, %v3096
      %3098 = vmatmul.bf16.gmra.mxu0 %v3051
      %v3099 = vpop.f32.mrf.mxu0
      %v3100 = vadd.f32 0.0, %v3099
      %v3101 = vpop.f32.mrf.mxu0
      %v3102 = vadd.f32 0.0, %v3101
      %3103 = vmatmul.bf16.gmra.mxu0 %v3053
      %v3104 = vpop.f32.mrf.mxu0
      %v3105 = vadd.f32 0.0, %v3104
      %v3106 = vpop.f32.mrf.mxu0
      %v3107 = vadd.f32 0.0, %v3106
      %3108 = vdwg.mxu0
      %3109 = vmatpush.bf16.msra.mxu0 0
      %3110 = vmatpush.bf16.msra.mxu0 0
      %3111 = vmatpush.bf16.msra.mxu0 0
      %3112 = vmatpush.bf16.msra.mxu0 0
      %3113 = vmatpush.bf16.msra.mxu0 0
      %3114 = vmatpush.bf16.msra.mxu0 0
      %3115 = vmatpush.bf16.msra.mxu0 %v3014
      %3116 = vmatpush.bf16.msra.mxu0 %v3013
      %3117 = vmatmul.bf16.gmra.mxu0 %v3061
      %v3118 = vpop.f32.mrf.mxu0
      %v3119 = vadd.f32 %v3085, %v3118
      %v3120 = vpop.f32.mrf.mxu0
      %v3121 = vadd.f32 %v3087, %v3120
      %3122 = vmatmul.bf16.gmra.mxu0 %v3064
      %v3123 = vpop.f32.mrf.mxu0
      %v3124 = vadd.f32 %v3090, %v3123
      %v3125 = vpop.f32.mrf.mxu0
      %v3126 = vadd.f32 %v3092, %v3125
      %3127 = vmatmul.bf16.gmra.mxu0 %v3067
      %v3128 = vpop.f32.mrf.mxu0
      %v3129 = vadd.f32 %v3095, %v3128
      %v3130 = vpop.f32.mrf.mxu0
      %v3131 = vadd.f32 %v3097, %v3130
      %3132 = vmatmul.bf16.gmra.mxu0 %v3070
      %v3133 = vpop.f32.mrf.mxu0
      %v3134 = vadd.f32 %v3100, %v3133
      %v3135 = vpop.f32.mrf.mxu0
      %v3136 = vadd.f32 %v3102, %v3135
      %3137 = vmatmul.bf16.gmra.mxu0 %v3073
      %v3138 = vpop.f32.mrf.mxu0
      %v3139 = vadd.f32 %v3105, %v3138
      %v3140 = vpop.f32.mrf.mxu0
      %v3141 = vadd.f32 %v3107, %v3140
      %3142 = vdwg.mxu0
      %v3143 = vld [vmem:[%s7] sm:$0xf]
      %v3144 = vld [vmem:[%s7 + $0x4] sm:$0x1]
      %v3145 = vpack.c.bf16 %v3121, %v3119
      %v3146 = vpack.c.bf16 %v3126, %v3124
      %v3147 = vpack.c.bf16 %v3131, %v3129
      %v3148 = vpack.c.bf16 %v3136, %v3134
      %v3149 = vpack.c.bf16 %v3141, %v3139
      %v3152 = vunpack.c.l.b16 %v3143
      %v3153 = vunpack.c.l.b16 %v3144
      %v3154 = vpack.c.b16 %v3153, %v3152
      %vm3155 = vcmask 80896
      %v3157 = vsel %vm3155, %v3145, 0
      %v3160 = vsel %vm3155, %v3146, 0
      %v3163 = vsel %vm3155, %v3147, 0
      %v3166 = vsel %vm3155, %v3148, 0
      %v3169 = vsel %vm3155, %v3149, 0
      %vm3171 = vcmask 1044480
      %v3173 = vsel %vm3171, %v3154, 0
      %3175 = vmatpush.bf16.msra.mxu0 0
      %3176 = vmatpush.bf16.msra.mxu0 0
      %3177 = vmatpush.bf16.msra.mxu0 0
      %3178 = vmatpush.bf16.msra.mxu0 0
      %3179 = vmatpush.bf16.msra.mxu0 0
      %3180 = vmatpush.bf16.msra.mxu0 0
      %3181 = vmatpush.bf16.msra.mxu0 0
      %3182 = vmatpush.bf16.msra.mxu0 %v3173
      %3183 = vmatmul.bf16.gmra.mxu0 %v3157
      %v3184 = vpop.f32.mrf.mxu0
      %v3185 = vadd.f32 0.0, %v3184
      %v3186 = vpop.f32.mrf.mxu0
      %v3187 = vadd.f32 0.0, %v3186
      %3188 = vmatmul.bf16.gmra.mxu0 %v3160
      %v3189 = vpop.f32.mrf.mxu0
      %v3190 = vadd.f32 0.0, %v3189
      %v3191 = vpop.f32.mrf.mxu0
      %v3192 = vadd.f32 0.0, %v3191
      %3193 = vmatmul.bf16.gmra.mxu0 %v3163
      %v3194 = vpop.f32.mrf.mxu0
      %v3195 = vadd.f32 0.0, %v3194
      %v3196 = vpop.f32.mrf.mxu0
      %v3197 = vadd.f32 0.0, %v3196
      %3198 = vmatmul.bf16.gmra.mxu0 %v3166
      %v3199 = vpop.f32.mrf.mxu0
      %v3200 = vadd.f32 0.0, %v3199
      %v3201 = vpop.f32.mrf.mxu0
      %v3202 = vadd.f32 0.0, %v3201
      %3203 = vmatmul.bf16.gmra.mxu0 %v3169
      %v3204 = vpop.f32.mrf.mxu0
      %v3205 = vadd.f32 0.0, %v3204
      %v3206 = vpop.f32.mrf.mxu0
      %v3207 = vadd.f32 0.0, %v3206
      %3208 = vdwg.mxu0
      %v3209 = vtanh.pop %v3185
      %v3210 = vtanh.pop %v3187
      %v3211 = vtanh.pop %v3190
      %v3212 = vtanh.pop %v3192
      %v3213 = vtanh.pop %v3195
      %v3214 = vtanh.pop %v3197
      %v3215 = vtanh.pop %v3200
      %v3216 = vtanh.pop %v3202
      %v3217 = vtanh.pop %v3205
      %v3218 = vtanh.pop %v3207
      %v3219 = vld [vmem:[%s12] sm:$0xff]
      %v3220 = vld [vmem:[%s12 + $0x8] sm:$0xff]
      %v3221 = vld [vmem:[%s12 + $0x10] sm:$0xff]
      %v3222 = vld [vmem:[%s12 + $0x18] sm:$0xff]
      %v3223 = vld [vmem:[%s12 + $0x20] sm:$0xff]
      %v3224 = vld [vmem:[%s12 + $0x28] sm:$0xff]
      %v3225 = vld [vmem:[%s12 + $0x30] sm:$0xff]
      %v3226 = vld [vmem:[%s12 + $0x38] sm:$0xff]
      %v3227 = vld [vmem:[%s12 + $0x40] sm:$0xff]
      %v3228 = vld [vmem:[%s12 + $0x48] sm:$0xff]
      %v3229 = vld [vmem:[%s12 + $0x50] sm:$0xff]
      %v3230 = vld [vmem:[%s12 + $0x58] sm:$0xff]
      %v3231 = vld [vmem:[%s12 + $0x60] sm:$0xff]
      %v3232 = vld [vmem:[%s12 + $0x68] sm:$0xff]
      %v3233 = vld [vmem:[%s12 + $0x70] sm:$0xff]
      %v3234 = vld [vmem:[%s3] sm:$0xf]
      %v3235 = vld [vmem:[%s3 + $0x4] sm:$0xf]
      %v3236 = vld [vmem:[%s3 + $0x8] sm:$0xf]
      %v3237 = vld [vmem:[%s3 + $0xc] sm:$0xf]
      %v3238 = vld [vmem:[%s3 + $0x10] sm:$0xf]
      %v3239 = vld [vmem:[%s3 + $0x14] sm:$0xf]
      %v3240 = vld [vmem:[%s3 + $0x18] sm:$0xf]
      %v3241 = vld [vmem:[%s3 + $0x1c] sm:$0xf]
      %v3242 = vld [vmem:[%s3 + $0x20] sm:$0xf]
      %v3243 = vld [vmem:[%s3 + $0x24] sm:$0xf]
      %v3244 = vld [vmem:[%s3 + $0x28] sm:$0xf]
      %v3245 = vld [vmem:[%s3 + $0x2c] sm:$0xf]
      %v3246 = vld [vmem:[%s3 + $0x30] sm:$0xf]
      %v3247 = vld [vmem:[%s3 + $0x34] sm:$0xf]
      %v3248 = vld [vmem:[%s3 + $0x38] sm:$0xf]
      %v3249 = vpack.c.bf16 %v3210, %v3209
      %v3250 = vpack.c.bf16 %v3212, %v3211
      %v3251 = vpack.c.bf16 %v3214, %v3213
      %v3252 = vpack.c.bf16 %v3216, %v3215
      %v3253 = vpack.c.bf16 %v3218, %v3217
      %s3254 = scalar_lea.vmem %s3, 60
      %v3255 = vld [vmem:[%s3254] sm:$0xf]
      %v3256 = vld [vmem:[%s3254 + $0x4] sm:$0xf]
      %v3257 = vld [vmem:[%s3254 + $0x8] sm:$0xf]
      %v3258 = vld [vmem:[%s3254 + $0xc] sm:$0xf]
      %v3259 = vld [vmem:[%s3254 + $0x10] sm:$0xf]
      %v3260 = vld [vmem:[%s3254 + $0x14] sm:$0xf]
      %v3261 = vld [vmem:[%s3254 + $0x18] sm:$0xf]
      %v3262 = vld [vmem:[%s3254 + $0x1c] sm:$0xf]
      %v3263 = vld [vmem:[%s3254 + $0x20] sm:$0xf]
      %v3264 = vld [vmem:[%s3254 + $0x24] sm:$0xf]
      %v3265 = vld [vmem:[%s3254 + $0x28] sm:$0xf]
      %v3266 = vld [vmem:[%s3254 + $0x2c] sm:$0xf]
      %v3267 = vld [vmem:[%s3254 + $0x30] sm:$0xf]
      %v3268 = vld [vmem:[%s3254 + $0x34] sm:$0xf]
      %v3269 = vld [vmem:[%s3254 + $0x38] sm:$0xf]
      %v3285 = vunpack.c.l.b16 %v3255
      %v3286 = vunpack.c.l.b16 %v3256
      %v3287 = vunpack.c.l.b16 %v3257
      %v3288 = vunpack.c.l.b16 %v3258
      %v3289 = vunpack.c.l.b16 %v3259
      %v3290 = vunpack.c.l.b16 %v3260
      %v3291 = vunpack.c.l.b16 %v3261
      %v3292 = vunpack.c.l.b16 %v3262
      %v3293 = vunpack.c.l.b16 %v3263
      %v3294 = vunpack.c.l.b16 %v3264
      %v3295 = vunpack.c.l.b16 %v3265
      %v3296 = vunpack.c.l.b16 %v3266
      %v3297 = vunpack.c.l.b16 %v3267
      %v3298 = vunpack.c.l.b16 %v3268
      %v3299 = vunpack.c.l.b16 %v3269
      %v3300 = vpack.c.b16 %v3286, %v3285
      %v3301 = vpack.c.b16 %v3288, %v3287
      %v3302 = vpack.c.b16 %v3290, %v3289
      %v3303 = vpack.c.b16 %v3292, %v3291
      %v3304 = vpack.c.b16 %v3294, %v3293
      %v3305 = vpack.c.b16 %v3296, %v3295
      %v3306 = vpack.c.b16 %v3298, %v3297
      %v3307 = vpack.c.b16 %v3299, %v3299
      %3313 = vrot.lane.b32.xlu0 %v3249, 127
      %v3314 = vpop.permute.xlu0 %3313
      %3315 = vrot.lane.b32.xlu0 %v3250, 127
      %v3316 = vpop.permute.xlu0 %3315
      %3317 = vrot.lane.b32.xlu0 %v3251, 127
      %v3318 = vpop.permute.xlu0 %3317
      %3319 = vrot.lane.b32.xlu0 %v3252, 127
      %v3320 = vpop.permute.xlu0 %3319
      %3321 = vrot.lane.b32.xlu0 %v3253, 127
      %v3322 = vpop.permute.xlu0 %3321
      %vm3328 = vcmask 654336
      %v3330 = vsel %vm3328, %v3300, 0
      %v3333 = vsel %vm3328, %v3301, 0
      %v3336 = vsel %vm3328, %v3302, 0
      %v3339 = vsel %vm3328, %v3303, 0
      %v3342 = vsel %vm3328, %v3304, 0
      %v3345 = vsel %vm3328, %v3305, 0
      %v3348 = vsel %vm3328, %v3306, 0
      %v3351 = vsel %vm3328, %v3307, 0
      %3353 = vmatpush.bf16.msra.mxu0 0
      %3354 = vmatpush.bf16.msra.mxu0 0
      %3355 = vmatpush.bf16.msra.mxu0 0
      %3356 = vmatpush.bf16.msra.mxu0 %v3322
      %3357 = vmatpush.bf16.msra.mxu0 %v3320
      %3358 = vmatpush.bf16.msra.mxu0 %v3318
      %3359 = vmatpush.bf16.msra.mxu0 %v3316
      %3360 = vmatpush.bf16.msra.mxu0 %v3314
      %3361 = vmatmul.bf16.gmra.mxu0 %v3330
      %v3362 = vpop.f32.mrf.mxu0
      %v3363 = vadd.f32 0.0, %v3362
      %v3364 = vpop.f32.mrf.mxu0
      %v3365 = vadd.f32 0.0, %v3364
      %3366 = vmatmul.bf16.gmra.mxu0 %v3333
      %v3367 = vpop.f32.mrf.mxu0
      %v3368 = vadd.f32 0.0, %v3367
      %v3369 = vpop.f32.mrf.mxu0
      %v3370 = vadd.f32 0.0, %v3369
      %3371 = vmatmul.bf16.gmra.mxu0 %v3336
      %v3372 = vpop.f32.mrf.mxu0
      %v3373 = vadd.f32 0.0, %v3372
      %v3374 = vpop.f32.mrf.mxu0
      %v3375 = vadd.f32 0.0, %v3374
      %3376 = vmatmul.bf16.gmra.mxu0 %v3339
      %v3377 = vpop.f32.mrf.mxu0
      %v3378 = vadd.f32 0.0, %v3377
      %v3379 = vpop.f32.mrf.mxu0
      %v3380 = vadd.f32 0.0, %v3379
      %3381 = vmatmul.bf16.gmra.mxu0 %v3342
      %v3382 = vpop.f32.mrf.mxu0
      %v3383 = vadd.f32 0.0, %v3382
      %v3384 = vpop.f32.mrf.mxu0
      %v3385 = vadd.f32 0.0, %v3384
      %3386 = vmatmul.bf16.gmra.mxu0 %v3345
      %v3387 = vpop.f32.mrf.mxu0
      %v3388 = vadd.f32 0.0, %v3387
      %v3389 = vpop.f32.mrf.mxu0
      %v3390 = vadd.f32 0.0, %v3389
      %3391 = vmatmul.bf16.gmra.mxu0 %v3348
      %v3392 = vpop.f32.mrf.mxu0
      %v3393 = vadd.f32 0.0, %v3392
      %v3394 = vpop.f32.mrf.mxu0
      %v3395 = vadd.f32 0.0, %v3394
      %3396 = vmatmul.bf16.gmra.mxu0 %v3351
      %v3397 = vpop.f32.mrf.mxu0
      %v3398 = vadd.f32 0.0, %v3397
      %v3399 = vpop.f32.mrf.mxu0
      %3400 = vdwg.mxu0
      %v3416 = vunpack.c.l.b16 %v3234
      %v3417 = vunpack.c.l.b16 %v3235
      %v3418 = vunpack.c.l.b16 %v3236
      %v3419 = vunpack.c.l.b16 %v3237
      %v3420 = vunpack.c.l.b16 %v3238
      %v3421 = vunpack.c.l.b16 %v3239
      %v3422 = vunpack.c.l.b16 %v3240
      %v3423 = vunpack.c.l.b16 %v3241
      %v3424 = vunpack.c.l.b16 %v3242
      %v3425 = vunpack.c.l.b16 %v3243
      %v3426 = vunpack.c.l.b16 %v3244
      %v3427 = vunpack.c.l.b16 %v3245
      %v3428 = vunpack.c.l.b16 %v3246
      %v3429 = vunpack.c.l.b16 %v3247
      %v3430 = vunpack.c.l.b16 %v3248
      %v3431 = vpack.c.b16 %v3417, %v3416
      %v3432 = vpack.c.b16 %v3419, %v3418
      %v3433 = vpack.c.b16 %v3421, %v3420
      %v3434 = vpack.c.b16 %v3423, %v3422
      %v3435 = vpack.c.b16 %v3425, %v3424
      %v3436 = vpack.c.b16 %v3427, %v3426
      %v3437 = vpack.c.b16 %v3429, %v3428
      %v3438 = vpack.c.b16 %v3430, %v3430
      %v3440 = vsel %vm3328, %v3431, 0
      %v3443 = vsel %vm3328, %v3432, 0
      %v3446 = vsel %vm3328, %v3433, 0
      %v3449 = vsel %vm3328, %v3434, 0
      %v3452 = vsel %vm3328, %v3435, 0
      %v3455 = vsel %vm3328, %v3436, 0
      %v3458 = vsel %vm3328, %v3437, 0
      %v3461 = vsel %vm3328, %v3438, 0
      %3463 = vmatpush.bf16.msra.mxu0 0
      %3464 = vmatpush.bf16.msra.mxu0 0
      %3465 = vmatpush.bf16.msra.mxu0 0
      %3466 = vmatpush.bf16.msra.mxu0 %v3253
      %3467 = vmatpush.bf16.msra.mxu0 %v3252
      %3468 = vmatpush.bf16.msra.mxu0 %v3251
      %3469 = vmatpush.bf16.msra.mxu0 %v3250
      %3470 = vmatpush.bf16.msra.mxu0 %v3249
      %3471 = vmatmul.bf16.gmra.mxu0 %v3440
      %v3472 = vpop.f32.mrf.mxu0
      %v3473 = vadd.f32 %v3363, %v3472
      %v3474 = vpop.f32.mrf.mxu0
      %v3475 = vadd.f32 %v3365, %v3474
      %3476 = vmatmul.bf16.gmra.mxu0 %v3443
      %v3477 = vpop.f32.mrf.mxu0
      %v3478 = vadd.f32 %v3368, %v3477
      %v3479 = vpop.f32.mrf.mxu0
      %v3480 = vadd.f32 %v3370, %v3479
      %3481 = vmatmul.bf16.gmra.mxu0 %v3446
      %v3482 = vpop.f32.mrf.mxu0
      %v3483 = vadd.f32 %v3373, %v3482
      %v3484 = vpop.f32.mrf.mxu0
      %v3485 = vadd.f32 %v3375, %v3484
      %3486 = vmatmul.bf16.gmra.mxu0 %v3449
      %v3487 = vpop.f32.mrf.mxu0
      %v3488 = vadd.f32 %v3378, %v3487
      %v3489 = vpop.f32.mrf.mxu0
      %v3490 = vadd.f32 %v3380, %v3489
      %3491 = vmatmul.bf16.gmra.mxu0 %v3452
      %v3492 = vpop.f32.mrf.mxu0
      %v3493 = vadd.f32 %v3383, %v3492
      %v3494 = vpop.f32.mrf.mxu0
      %v3495 = vadd.f32 %v3385, %v3494
      %3496 = vmatmul.bf16.gmra.mxu0 %v3455
      %v3497 = vpop.f32.mrf.mxu0
      %v3498 = vadd.f32 %v3388, %v3497
      %v3499 = vpop.f32.mrf.mxu0
      %v3500 = vadd.f32 %v3390, %v3499
      %3501 = vmatmul.bf16.gmra.mxu0 %v3458
      %v3502 = vpop.f32.mrf.mxu0
      %v3503 = vadd.f32 %v3393, %v3502
      %v3504 = vpop.f32.mrf.mxu0
      %v3505 = vadd.f32 %v3395, %v3504
      %3506 = vmatmul.bf16.gmra.mxu0 %v3461
      %v3507 = vpop.f32.mrf.mxu0
      %v3508 = vadd.f32 %v3398, %v3507
      %v3509 = vpop.f32.mrf.mxu0
      %3510 = vdwg.mxu0
      %s3511 = scalar_lea.vmem %s3, 120
      %v3512 = vld [vmem:[%s3511] sm:$0xf]
      %v3513 = vld [vmem:[%s3511 + $0x4] sm:$0xf]
      %v3514 = vld [vmem:[%s3511 + $0x8] sm:$0xf]
      %v3515 = vld [vmem:[%s3511 + $0xc] sm:$0xf]
      %v3516 = vld [vmem:[%s3511 + $0x10] sm:$0xf]
      %v3517 = vld [vmem:[%s3511 + $0x14] sm:$0xf]
      %v3518 = vld [vmem:[%s3511 + $0x18] sm:$0xf]
      %v3519 = vld [vmem:[%s3511 + $0x1c] sm:$0xf]
      %v3520 = vld [vmem:[%s3511 + $0x20] sm:$0xf]
      %v3521 = vld [vmem:[%s3511 + $0x24] sm:$0xf]
      %v3522 = vld [vmem:[%s3511 + $0x28] sm:$0xf]
      %v3523 = vld [vmem:[%s3511 + $0x2c] sm:$0xf]
      %v3524 = vld [vmem:[%s3511 + $0x30] sm:$0xf]
      %v3525 = vld [vmem:[%s3511 + $0x34] sm:$0xf]
      %v3526 = vld [vmem:[%s3511 + $0x38] sm:$0xf]
      %v3542 = vunpack.c.l.b16 %v3512
      %v3543 = vunpack.c.l.b16 %v3513
      %v3544 = vunpack.c.l.b16 %v3514
      %v3545 = vunpack.c.l.b16 %v3515
      %v3546 = vunpack.c.l.b16 %v3516
      %v3547 = vunpack.c.l.b16 %v3517
      %v3548 = vunpack.c.l.b16 %v3518
      %v3549 = vunpack.c.l.b16 %v3519
      %v3550 = vunpack.c.l.b16 %v3520
      %v3551 = vunpack.c.l.b16 %v3521
      %v3552 = vunpack.c.l.b16 %v3522
      %v3553 = vunpack.c.l.b16 %v3523
      %v3554 = vunpack.c.l.b16 %v3524
      %v3555 = vunpack.c.l.b16 %v3525
      %v3556 = vunpack.c.l.b16 %v3526
      %v3557 = vpack.c.b16 %v3543, %v3542
      %v3558 = vpack.c.b16 %v3545, %v3544
      %v3559 = vpack.c.b16 %v3547, %v3546
      %v3560 = vpack.c.b16 %v3549, %v3548
      %v3561 = vpack.c.b16 %v3551, %v3550
      %v3562 = vpack.c.b16 %v3553, %v3552
      %v3563 = vpack.c.b16 %v3555, %v3554
      %v3564 = vpack.c.b16 %v3556, %v3556
      %3565 = vrot.lane.b32.xlu0 %v3249, 126
      %v3566 = vpop.permute.xlu0 %3565
      %3567 = vrot.lane.b32.xlu0 %v3250, 126
      %v3568 = vpop.permute.xlu0 %3567
      %3569 = vrot.lane.b32.xlu0 %v3251, 126
      %v3570 = vpop.permute.xlu0 %3569
      %3571 = vrot.lane.b32.xlu0 %v3252, 126
      %v3572 = vpop.permute.xlu0 %3571
      %3573 = vrot.lane.b32.xlu0 %v3253, 126
      %v3574 = vpop.permute.xlu0 %3573
      %v3581 = vsel %vm3328, %v3557, 0
      %v3584 = vsel %vm3328, %v3558, 0
      %v3587 = vsel %vm3328, %v3559, 0
      %v3590 = vsel %vm3328, %v3560, 0
      %v3593 = vsel %vm3328, %v3561, 0
      %v3596 = vsel %vm3328, %v3562, 0
      %v3599 = vsel %vm3328, %v3563, 0
      %v3602 = vsel %vm3328, %v3564, 0
      %3604 = vmatpush.bf16.msra.mxu0 0
      %3605 = vmatpush.bf16.msra.mxu0 0
      %3606 = vmatpush.bf16.msra.mxu0 0
      %3607 = vmatpush.bf16.msra.mxu0 %v3574
      %3608 = vmatpush.bf16.msra.mxu0 %v3572
      %3609 = vmatpush.bf16.msra.mxu0 %v3570
      %3610 = vmatpush.bf16.msra.mxu0 %v3568
      %3611 = vmatpush.bf16.msra.mxu0 %v3566
      %3612 = vmatmul.bf16.gmra.mxu0 %v3581
      %v3613 = vpop.f32.mrf.mxu0
      %v3614 = vadd.f32 0.0, %v3613
      %v3615 = vpop.f32.mrf.mxu0
      %v3616 = vadd.f32 0.0, %v3615
      %3617 = vmatmul.bf16.gmra.mxu0 %v3584
      %v3618 = vpop.f32.mrf.mxu0
      %v3619 = vadd.f32 0.0, %v3618
      %v3620 = vpop.f32.mrf.mxu0
      %v3621 = vadd.f32 0.0, %v3620
      %3622 = vmatmul.bf16.gmra.mxu0 %v3587
      %v3623 = vpop.f32.mrf.mxu0
      %v3624 = vadd.f32 0.0, %v3623
      %v3625 = vpop.f32.mrf.mxu0
      %v3626 = vadd.f32 0.0, %v3625
      %3627 = vmatmul.bf16.gmra.mxu0 %v3590
      %v3628 = vpop.f32.mrf.mxu0
      %v3629 = vadd.f32 0.0, %v3628
      %v3630 = vpop.f32.mrf.mxu0
      %v3631 = vadd.f32 0.0, %v3630
      %3632 = vmatmul.bf16.gmra.mxu0 %v3593
      %v3633 = vpop.f32.mrf.mxu0
      %v3634 = vadd.f32 0.0, %v3633
      %v3635 = vpop.f32.mrf.mxu0
      %v3636 = vadd.f32 0.0, %v3635
      %3637 = vmatmul.bf16.gmra.mxu0 %v3596
      %v3638 = vpop.f32.mrf.mxu0
      %v3639 = vadd.f32 0.0, %v3638
      %v3640 = vpop.f32.mrf.mxu0
      %v3641 = vadd.f32 0.0, %v3640
      %3642 = vmatmul.bf16.gmra.mxu0 %v3599
      %v3643 = vpop.f32.mrf.mxu0
      %v3644 = vadd.f32 0.0, %v3643
      %v3645 = vpop.f32.mrf.mxu0
      %v3646 = vadd.f32 0.0, %v3645
      %3647 = vmatmul.bf16.gmra.mxu0 %v3602
      %v3648 = vpop.f32.mrf.mxu0
      %v3649 = vadd.f32 0.0, %v3648
      %v3650 = vpop.f32.mrf.mxu0
      %3651 = vdwg.mxu0
      %v3652 = vadd.f32 %v3473, %v3614
      %v3653 = vadd.f32 %v3475, %v3616
      %v3654 = vadd.f32 %v3478, %v3619
      %v3655 = vadd.f32 %v3480, %v3621
      %v3656 = vadd.f32 %v3483, %v3624
      %v3657 = vadd.f32 %v3485, %v3626
      %v3658 = vadd.f32 %v3488, %v3629
      %v3659 = vadd.f32 %v3490, %v3631
      %v3660 = vadd.f32 %v3493, %v3634
      %v3661 = vadd.f32 %v3495, %v3636
      %v3662 = vadd.f32 %v3498, %v3639
      %v3663 = vadd.f32 %v3500, %v3641
      %v3664 = vadd.f32 %v3503, %v3644
      %v3665 = vadd.f32 %v3505, %v3646
      %v3666 = vadd.f32 %v3508, %v3649
      %s3667 = scalar_lea.vmem %s3, 180
      %v3668 = vld [vmem:[%s3667] sm:$0xf]
      %v3669 = vld [vmem:[%s3667 + $0x4] sm:$0xf]
      %v3670 = vld [vmem:[%s3667 + $0x8] sm:$0xf]
      %v3671 = vld [vmem:[%s3667 + $0xc] sm:$0xf]
      %v3672 = vld [vmem:[%s3667 + $0x10] sm:$0xf]
      %v3673 = vld [vmem:[%s3667 + $0x14] sm:$0xf]
      %v3674 = vld [vmem:[%s3667 + $0x18] sm:$0xf]
      %v3675 = vld [vmem:[%s3667 + $0x1c] sm:$0xf]
      %v3676 = vld [vmem:[%s3667 + $0x20] sm:$0xf]
      %v3677 = vld [vmem:[%s3667 + $0x24] sm:$0xf]
      %v3678 = vld [vmem:[%s3667 + $0x28] sm:$0xf]
      %v3679 = vld [vmem:[%s3667 + $0x2c] sm:$0xf]
      %v3680 = vld [vmem:[%s3667 + $0x30] sm:$0xf]
      %v3681 = vld [vmem:[%s3667 + $0x34] sm:$0xf]
      %v3682 = vld [vmem:[%s3667 + $0x38] sm:$0xf]
      %v3698 = vunpack.c.l.b16 %v3668
      %v3699 = vunpack.c.l.b16 %v3669
      %v3700 = vunpack.c.l.b16 %v3670
      %v3701 = vunpack.c.l.b16 %v3671
      %v3702 = vunpack.c.l.b16 %v3672
      %v3703 = vunpack.c.l.b16 %v3673
      %v3704 = vunpack.c.l.b16 %v3674
      %v3705 = vunpack.c.l.b16 %v3675
      %v3706 = vunpack.c.l.b16 %v3676
      %v3707 = vunpack.c.l.b16 %v3677
      %v3708 = vunpack.c.l.b16 %v3678
      %v3709 = vunpack.c.l.b16 %v3679
      %v3710 = vunpack.c.l.b16 %v3680
      %v3711 = vunpack.c.l.b16 %v3681
      %v3712 = vunpack.c.l.b16 %v3682
      %v3713 = vpack.c.b16 %v3699, %v3698
      %v3714 = vpack.c.b16 %v3701, %v3700
      %v3715 = vpack.c.b16 %v3703, %v3702
      %v3716 = vpack.c.b16 %v3705, %v3704
      %v3717 = vpack.c.b16 %v3707, %v3706
      %v3718 = vpack.c.b16 %v3709, %v3708
      %v3719 = vpack.c.b16 %v3711, %v3710
      %v3720 = vpack.c.b16 %v3712, %v3712
      %3721 = vrot.lane.b32.xlu0 %v3249, 125
      %v3722 = vpop.permute.xlu0 %3721
      %3723 = vrot.lane.b32.xlu0 %v3250, 125
      %v3724 = vpop.permute.xlu0 %3723
      %3725 = vrot.lane.b32.xlu0 %v3251, 125
      %v3726 = vpop.permute.xlu0 %3725
      %3727 = vrot.lane.b32.xlu0 %v3252, 125
      %v3728 = vpop.permute.xlu0 %3727
      %3729 = vrot.lane.b32.xlu0 %v3253, 125
      %v3730 = vpop.permute.xlu0 %3729
      %v3737 = vsel %vm3328, %v3713, 0
      %v3740 = vsel %vm3328, %v3714, 0
      %v3743 = vsel %vm3328, %v3715, 0
      %v3746 = vsel %vm3328, %v3716, 0
      %v3749 = vsel %vm3328, %v3717, 0
      %v3752 = vsel %vm3328, %v3718, 0
      %v3755 = vsel %vm3328, %v3719, 0
      %v3758 = vsel %vm3328, %v3720, 0
      %3760 = vmatpush.bf16.msra.mxu0 0
      %3761 = vmatpush.bf16.msra.mxu0 0
      %3762 = vmatpush.bf16.msra.mxu0 0
      %3763 = vmatpush.bf16.msra.mxu0 %v3730
      %3764 = vmatpush.bf16.msra.mxu0 %v3728
      %3765 = vmatpush.bf16.msra.mxu0 %v3726
      %3766 = vmatpush.bf16.msra.mxu0 %v3724
      %3767 = vmatpush.bf16.msra.mxu0 %v3722
      %3768 = vmatmul.bf16.gmra.mxu0 %v3737
      %v3769 = vpop.f32.mrf.mxu0
      %v3770 = vadd.f32 0.0, %v3769
      %v3771 = vpop.f32.mrf.mxu0
      %v3772 = vadd.f32 0.0, %v3771
      %3773 = vmatmul.bf16.gmra.mxu0 %v3740
      %v3774 = vpop.f32.mrf.mxu0
      %v3775 = vadd.f32 0.0, %v3774
      %v3776 = vpop.f32.mrf.mxu0
      %v3777 = vadd.f32 0.0, %v3776
      %3778 = vmatmul.bf16.gmra.mxu0 %v3743
      %v3779 = vpop.f32.mrf.mxu0
      %v3780 = vadd.f32 0.0, %v3779
      %v3781 = vpop.f32.mrf.mxu0
      %v3782 = vadd.f32 0.0, %v3781
      %3783 = vmatmul.bf16.gmra.mxu0 %v3746
      %v3784 = vpop.f32.mrf.mxu0
      %v3785 = vadd.f32 0.0, %v3784
      %v3786 = vpop.f32.mrf.mxu0
      %v3787 = vadd.f32 0.0, %v3786
      %3788 = vmatmul.bf16.gmra.mxu0 %v3749
      %v3789 = vpop.f32.mrf.mxu0
      %v3790 = vadd.f32 0.0, %v3789
      %v3791 = vpop.f32.mrf.mxu0
      %v3792 = vadd.f32 0.0, %v3791
      %3793 = vmatmul.bf16.gmra.mxu0 %v3752
      %v3794 = vpop.f32.mrf.mxu0
      %v3795 = vadd.f32 0.0, %v3794
      %v3796 = vpop.f32.mrf.mxu0
      %v3797 = vadd.f32 0.0, %v3796
      %3798 = vmatmul.bf16.gmra.mxu0 %v3755
      %v3799 = vpop.f32.mrf.mxu0
      %v3800 = vadd.f32 0.0, %v3799
      %v3801 = vpop.f32.mrf.mxu0
      %v3802 = vadd.f32 0.0, %v3801
      %3803 = vmatmul.bf16.gmra.mxu0 %v3758
      %v3804 = vpop.f32.mrf.mxu0
      %v3805 = vadd.f32 0.0, %v3804
      %v3806 = vpop.f32.mrf.mxu0
      %3807 = vdwg.mxu0
      %v3808 = vadd.f32 %v3652, %v3770
      %v3809 = vadd.f32 %v3653, %v3772
      %v3810 = vadd.f32 %v3654, %v3775
      %v3811 = vadd.f32 %v3655, %v3777
      %v3812 = vadd.f32 %v3656, %v3780
      %v3813 = vadd.f32 %v3657, %v3782
      %v3814 = vadd.f32 %v3658, %v3785
      %v3815 = vadd.f32 %v3659, %v3787
      %v3816 = vadd.f32 %v3660, %v3790
      %v3817 = vadd.f32 %v3661, %v3792
      %v3818 = vadd.f32 %v3662, %v3795
      %v3819 = vadd.f32 %v3663, %v3797
      %v3820 = vadd.f32 %v3664, %v3800
      %v3821 = vadd.f32 %v3665, %v3802
      %v3822 = vadd.f32 %v3666, %v3805
      %s3823 = scalar_lea.vmem %s3, 240
      %v3824 = vld [vmem:[%s3823] sm:$0xf]
      %v3825 = vld [vmem:[%s3823 + $0x4] sm:$0xf]
      %v3826 = vld [vmem:[%s3823 + $0x8] sm:$0xf]
      %v3827 = vld [vmem:[%s3823 + $0xc] sm:$0xf]
      %v3828 = vld [vmem:[%s3823 + $0x10] sm:$0xf]
      %v3829 = vld [vmem:[%s3823 + $0x14] sm:$0xf]
      %v3830 = vld [vmem:[%s3823 + $0x18] sm:$0xf]
      %v3831 = vld [vmem:[%s3823 + $0x1c] sm:$0xf]
      %v3832 = vld [vmem:[%s3823 + $0x20] sm:$0xf]
      %v3833 = vld [vmem:[%s3823 + $0x24] sm:$0xf]
      %v3834 = vld [vmem:[%s3823 + $0x28] sm:$0xf]
      %v3835 = vld [vmem:[%s3823 + $0x2c] sm:$0xf]
      %v3836 = vld [vmem:[%s3823 + $0x30] sm:$0xf]
      %v3837 = vld [vmem:[%s3823 + $0x34] sm:$0xf]
      %v3838 = vld [vmem:[%s3823 + $0x38] sm:$0xf]
      %v3854 = vunpack.c.l.b16 %v3824
      %v3855 = vunpack.c.l.b16 %v3825
      %v3856 = vunpack.c.l.b16 %v3826
      %v3857 = vunpack.c.l.b16 %v3827
      %v3858 = vunpack.c.l.b16 %v3828
      %v3859 = vunpack.c.l.b16 %v3829
      %v3860 = vunpack.c.l.b16 %v3830
      %v3861 = vunpack.c.l.b16 %v3831
      %v3862 = vunpack.c.l.b16 %v3832
      %v3863 = vunpack.c.l.b16 %v3833
      %v3864 = vunpack.c.l.b16 %v3834
      %v3865 = vunpack.c.l.b16 %v3835
      %v3866 = vunpack.c.l.b16 %v3836
      %v3867 = vunpack.c.l.b16 %v3837
      %v3868 = vunpack.c.l.b16 %v3838
      %v3869 = vpack.c.b16 %v3855, %v3854
      %v3870 = vpack.c.b16 %v3857, %v3856
      %v3871 = vpack.c.b16 %v3859, %v3858
      %v3872 = vpack.c.b16 %v3861, %v3860
      %v3873 = vpack.c.b16 %v3863, %v3862
      %v3874 = vpack.c.b16 %v3865, %v3864
      %v3875 = vpack.c.b16 %v3867, %v3866
      %v3876 = vpack.c.b16 %v3868, %v3868
      %3877 = vrot.lane.b32.xlu0 %v3249, 124
      %v3878 = vpop.permute.xlu0 %3877
      %3879 = vrot.lane.b32.xlu0 %v3250, 124
      %v3880 = vpop.permute.xlu0 %3879
      %3881 = vrot.lane.b32.xlu0 %v3251, 124
      %v3882 = vpop.permute.xlu0 %3881
      %3883 = vrot.lane.b32.xlu0 %v3252, 124
      %v3884 = vpop.permute.xlu0 %3883
      %3885 = vrot.lane.b32.xlu0 %v3253, 124
      %v3886 = vpop.permute.xlu0 %3885
      %v3893 = vsel %vm3328, %v3869, 0
      %v3896 = vsel %vm3328, %v3870, 0
      %v3899 = vsel %vm3328, %v3871, 0
      %v3902 = vsel %vm3328, %v3872, 0
      %v3905 = vsel %vm3328, %v3873, 0
      %v3908 = vsel %vm3328, %v3874, 0
      %v3911 = vsel %vm3328, %v3875, 0
      %v3914 = vsel %vm3328, %v3876, 0
      %3916 = vmatpush.bf16.msra.mxu0 0
      %3917 = vmatpush.bf16.msra.mxu0 0
      %3918 = vmatpush.bf16.msra.mxu0 0
      %3919 = vmatpush.bf16.msra.mxu0 %v3886
      %3920 = vmatpush.bf16.msra.mxu0 %v3884
      %3921 = vmatpush.bf16.msra.mxu0 %v3882
      %3922 = vmatpush.bf16.msra.mxu0 %v3880
      %3923 = vmatpush.bf16.msra.mxu0 %v3878
      %3924 = vmatmul.bf16.gmra.mxu0 %v3893
      %v3925 = vpop.f32.mrf.mxu0
      %v3926 = vadd.f32 0.0, %v3925
      %v3927 = vpop.f32.mrf.mxu0
      %v3928 = vadd.f32 0.0, %v3927
      %3929 = vmatmul.bf16.gmra.mxu0 %v3896
      %v3930 = vpop.f32.mrf.mxu0
      %v3931 = vadd.f32 0.0, %v3930
      %v3932 = vpop.f32.mrf.mxu0
      %v3933 = vadd.f32 0.0, %v3932
      %3934 = vmatmul.bf16.gmra.mxu0 %v3899
      %v3935 = vpop.f32.mrf.mxu0
      %v3936 = vadd.f32 0.0, %v3935
      %v3937 = vpop.f32.mrf.mxu0
      %v3938 = vadd.f32 0.0, %v3937
      %3939 = vmatmul.bf16.gmra.mxu0 %v3902
      %v3940 = vpop.f32.mrf.mxu0
      %v3941 = vadd.f32 0.0, %v3940
      %v3942 = vpop.f32.mrf.mxu0
      %v3943 = vadd.f32 0.0, %v3942
      %3944 = vmatmul.bf16.gmra.mxu0 %v3905
      %v3945 = vpop.f32.mrf.mxu0
      %v3946 = vadd.f32 0.0, %v3945
      %v3947 = vpop.f32.mrf.mxu0
      %v3948 = vadd.f32 0.0, %v3947
      %3949 = vmatmul.bf16.gmra.mxu0 %v3908
      %v3950 = vpop.f32.mrf.mxu0
      %v3951 = vadd.f32 0.0, %v3950
      %v3952 = vpop.f32.mrf.mxu0
      %v3953 = vadd.f32 0.0, %v3952
      %3954 = vmatmul.bf16.gmra.mxu0 %v3911
      %v3955 = vpop.f32.mrf.mxu0
      %v3956 = vadd.f32 0.0, %v3955
      %v3957 = vpop.f32.mrf.mxu0
      %v3958 = vadd.f32 0.0, %v3957
      %3959 = vmatmul.bf16.gmra.mxu0 %v3914
      %v3960 = vpop.f32.mrf.mxu0
      %v3961 = vadd.f32 0.0, %v3960
      %v3962 = vpop.f32.mrf.mxu0
      %3963 = vdwg.mxu0
      %v3964 = vadd.f32 %v3808, %v3926
      %v3965 = vadd.f32 %v3809, %v3928
      %v3966 = vadd.f32 %v3810, %v3931
      %v3967 = vadd.f32 %v3811, %v3933
      %v3968 = vadd.f32 %v3812, %v3936
      %v3969 = vadd.f32 %v3813, %v3938
      %v3970 = vadd.f32 %v3814, %v3941
      %v3971 = vadd.f32 %v3815, %v3943
      %v3972 = vadd.f32 %v3816, %v3946
      %v3973 = vadd.f32 %v3817, %v3948
      %v3974 = vadd.f32 %v3818, %v3951
      %v3975 = vadd.f32 %v3819, %v3953
      %v3976 = vadd.f32 %v3820, %v3956
      %v3977 = vadd.f32 %v3821, %v3958
      %v3978 = vadd.f32 %v3822, %v3961
      %v3979 = vadd.f32 %v3964, %v3219
      %v3980 = vadd.f32 %v3965, %v3220
      %v3981 = vadd.f32 %v3966, %v3221
      %v3982 = vadd.f32 %v3967, %v3222
      %v3983 = vadd.f32 %v3968, %v3223
      %v3984 = vadd.f32 %v3969, %v3224
      %v3985 = vadd.f32 %v3970, %v3225
      %v3986 = vadd.f32 %v3971, %v3226
      %v3987 = vadd.f32 %v3972, %v3227
      %v3988 = vadd.f32 %v3973, %v3228
      %v3989 = vadd.f32 %v3974, %v3229
      %v3990 = vadd.f32 %v3975, %v3230
      %v3991 = vadd.f32 %v3976, %v3231
      %v3992 = vadd.f32 %v3977, %v3232
      %v3993 = vadd.f32 %v3978, %v3233
      %v3994 = vtanh.pop %v3979
      %v3995 = vtanh.pop %v3980
      %v3996 = vtanh.pop %v3981
      %v3997 = vtanh.pop %v3982
      %v3998 = vtanh.pop %v3983
      %v3999 = vtanh.pop %v3984
      %v4000 = vtanh.pop %v3985
      %v4001 = vtanh.pop %v3986
      %v4002 = vtanh.pop %v3987
      %v4003 = vtanh.pop %v3988
      %v4004 = vtanh.pop %v3989
      %v4005 = vtanh.pop %v3990
      %v4006 = vtanh.pop %v3991
      %v4007 = vtanh.pop %v3992
      %v4008 = vtanh.pop %v3993
      %v4009 = vld [vmem:[%s8] sm:$0xf]
      %v4010 = vld [vmem:[%s8 + $0x4] sm:$0xf]
      %v4011 = vld [vmem:[%s8 + $0x8] sm:$0xf]
      %v4012 = vld [vmem:[%s8 + $0xc] sm:$0xf]
      %v4013 = vld [vmem:[%s8 + $0x10] sm:$0xf]
      %v4014 = vld [vmem:[%s8 + $0x14] sm:$0xf]
      %v4015 = vld [vmem:[%s8 + $0x18] sm:$0xf]
      %v4016 = vld [vmem:[%s8 + $0x1c] sm:$0xf]
      %v4017 = vld [vmem:[%s8 + $0x20] sm:$0xf]
      %v4018 = vld [vmem:[%s8 + $0x24] sm:$0xf]
      %v4019 = vld [vmem:[%s8 + $0x28] sm:$0x3]
      %v4020 = vpack.c.bf16 %v3995, %v3994
      %v4021 = vpack.c.bf16 %v3997, %v3996
      %v4022 = vpack.c.bf16 %v3999, %v3998
      %v4023 = vpack.c.bf16 %v4001, %v4000
      %v4024 = vpack.c.bf16 %v4003, %v4002
      %v4025 = vpack.c.bf16 %v4005, %v4004
      %v4026 = vpack.c.bf16 %v4007, %v4006
      %v4027 = vpack.c.bf16 %v4008, %v4008
      %v4028 = vld [vmem:[%s13] sm:$0xff]
      %v4029 = vld [vmem:[%s13 + $0x8] sm:$0xff]
      %v4030 = vld [vmem:[%s13 + $0x10] sm:$0xff]
      %v4031 = vld [vmem:[%s13 + $0x18] sm:$0xff]
      %v4032 = vld [vmem:[%s13 + $0x20] sm:$0xff]
      %v4033 = vld [vmem:[%s13 + $0x28] sm:$0xff]
      %v4034 = vld [vmem:[%s13 + $0x30] sm:$0xff]
      %v4035 = vld [vmem:[%s13 + $0x38] sm:$0xff]
      %v4036 = vld [vmem:[%s13 + $0x40] sm:$0xff]
      %v4037 = vld [vmem:[%s13 + $0x48] sm:$0xff]
      %v4038 = vld [vmem:[%s13 + $0x50] sm:$0xf]
      %v4050 = vunpack.c.l.b16 %v4009
      %v4051 = vunpack.c.l.b16 %v4010
      %v4052 = vunpack.c.l.b16 %v4011
      %v4053 = vunpack.c.l.b16 %v4012
      %v4054 = vunpack.c.l.b16 %v4013
      %v4055 = vunpack.c.l.b16 %v4014
      %v4056 = vunpack.c.l.b16 %v4015
      %v4057 = vunpack.c.l.b16 %v4016
      %v4058 = vunpack.c.l.b16 %v4017
      %v4059 = vunpack.c.l.b16 %v4018
      %v4060 = vunpack.c.l.b16 %v4019
      %v4061 = vpack.c.b16 %v4051, %v4050
      %v4062 = vpack.c.b16 %v4053, %v4052
      %v4063 = vpack.c.b16 %v4055, %v4054
      %v4064 = vpack.c.b16 %v4057, %v4056
      %v4065 = vpack.c.b16 %v4059, %v4058
      %v4066 = vpack.c.b16 %v4060, %v4060
      %vm4067 = vcmask 982016
      %v4069 = vsel %vm4067, %v4061, 0
      %v4072 = vsel %vm4067, %v4062, 0
      %v4075 = vsel %vm4067, %v4063, 0
      %v4078 = vsel %vm4067, %v4064, 0
      %v4081 = vsel %vm4067, %v4065, 0
      %v4084 = vsel %vm4067, %v4066, 0
      %v4087 = vsel %vm1706, %v4027, 0
      %4089 = vmatpush.bf16.msra.mxu0 %v4087
      %4090 = vmatpush.bf16.msra.mxu0 %v4026
      %4091 = vmatpush.bf16.msra.mxu0 %v4025
      %4092 = vmatpush.bf16.msra.mxu0 %v4024
      %4093 = vmatpush.bf16.msra.mxu0 %v4023
      %4094 = vmatpush.bf16.msra.mxu0 %v4022
      %4095 = vmatpush.bf16.msra.mxu0 %v4021
      %4096 = vmatpush.bf16.msra.mxu0 %v4020
      %4097 = vmatmul.bf16.gmra.mxu0 %v4069
      %v4098 = vpop.f32.mrf.mxu0
      %v4099 = vadd.f32 %v4028, %v4098
      %v4100 = vpop.f32.mrf.mxu0
      %v4101 = vadd.f32 %v4029, %v4100
      %4102 = vmatmul.bf16.gmra.mxu0 %v4072
      %v4103 = vpop.f32.mrf.mxu0
      %v4104 = vadd.f32 %v4030, %v4103
      %v4105 = vpop.f32.mrf.mxu0
      %v4106 = vadd.f32 %v4031, %v4105
      %4107 = vmatmul.bf16.gmra.mxu0 %v4075
      %v4108 = vpop.f32.mrf.mxu0
      %v4109 = vadd.f32 %v4032, %v4108
      %v4110 = vpop.f32.mrf.mxu0
      %v4111 = vadd.f32 %v4033, %v4110
      %4112 = vmatmul.bf16.gmra.mxu0 %v4078
      %v4113 = vpop.f32.mrf.mxu0
      %v4114 = vadd.f32 %v4034, %v4113
      %v4115 = vpop.f32.mrf.mxu0
      %v4116 = vadd.f32 %v4035, %v4115
      %4117 = vmatmul.bf16.gmra.mxu0 %v4081
      %v4118 = vpop.f32.mrf.mxu0
      %v4119 = vadd.f32 %v4036, %v4118
      %v4120 = vpop.f32.mrf.mxu0
      %v4121 = vadd.f32 %v4037, %v4120
      %4122 = vmatmul.bf16.gmra.mxu0 %v4084
      %v4123 = vpop.f32.mrf.mxu0
      %v4124 = vadd.f32 %v4038, %v4123
      %v4125 = vpop.f32.mrf.mxu0
      %4126 = vdwg.mxu0
      %v4127 = vtanh.pop %v4099
      %v4128 = vtanh.pop %v4101
      %v4129 = vtanh.pop %v4104
      %v4130 = vtanh.pop %v4106
      %v4131 = vtanh.pop %v4109
      %v4132 = vtanh.pop %v4111
      %v4133 = vtanh.pop %v4114
      %v4134 = vtanh.pop %v4116
      %v4135 = vtanh.pop %v4119
      %v4136 = vtanh.pop %v4121
      %v4137 = vtanh.pop %v4124
      %v4138 = vld [vmem:[%s9] sm:$0xf]
      %v4139 = vld [vmem:[%s9 + $0x4] sm:$0x1]
      %v4140 = vpack.c.bf16 %v4128, %v4127
      %v4141 = vpack.c.bf16 %v4130, %v4129
      %v4142 = vpack.c.bf16 %v4132, %v4131
      %v4143 = vpack.c.bf16 %v4134, %v4133
      %v4144 = vpack.c.bf16 %v4136, %v4135
      %v4145 = vpack.c.bf16 %v4137, %v4137
      %v4146 = vld [vmem:[%s14] sm:$0xff]
      %v4147 = vld [vmem:[%s14 + $0x8] sm:$0x3]
      %v4150 = vunpack.c.l.b16 %v4138
      %v4151 = vunpack.c.l.b16 %v4139
      %v4152 = vpack.c.b16 %v4151, %v4150
      %v4154 = vsel %vm2019, %v4152, 0
      %v4157 = vsel %vm2050, %v4145, 0
      %4159 = vmatpush.bf16.msra.mxu0 0
      %4160 = vmatpush.bf16.msra.mxu0 0
      %4161 = vmatpush.bf16.msra.mxu0 %v4157
      %4162 = vmatpush.bf16.msra.mxu0 %v4144
      %4163 = vmatpush.bf16.msra.mxu0 %v4143
      %4164 = vmatpush.bf16.msra.mxu0 %v4142
      %4165 = vmatpush.bf16.msra.mxu0 %v4141
      %4166 = vmatpush.bf16.msra.mxu0 %v4140
      %4167 = vmatmul.bf16.gmra.mxu0 %v4154
      %v4168 = vpop.f32.mrf.mxu0
      %v4169 = vadd.f32 %v4146, %v4168
      %v4170 = vpop.f32.mrf.mxu0
      %v4171 = vadd.f32 %v4147, %v4170
      %4172 = vdwg.mxu0
      %vm4173 = vcmask 7168
      %4174 = vst.msk [vmem:[%s494] sm:$0xff] %vm4173, %v4169
      %vm4175 = vcmask 1024
      %4176 = vst.msk [vmem:[%s494 + $0x8] sm:$0x3] %vm4175, %v4171
      %p4177 = scmp.lt.s32.totalorder %s26, 1
      %s4178 = scalar_select %p4177, %s26, 1
      %s4179 = smul.addr %s4178, 2
      %s4180 = smul.addr %s4179, 8
      %s4181 = scalar_lea.vmem %s15, %s4180
      // Predicated region
      $region81: #{lenet5_forward.1} parent=79 // pred_check
        %p4182 = pneg %p364
      $region82: #{lenet5_forward.1} parent=79 // pred_check_branch
        %4184 = sbr.rel (%p4182) target = $region84
      $region83: #{lenet5_forward.1} parent=79 // pred_region
        _
      $region84: #{lenet5_forward.1} parent=79 // pred_fallthru
        _
    $region80: #{lenet5_forward.1} parent=5 // pred_fallthru
      _
    %p4185 = scmp.le.s32.totalorder 2, %s21
    // Predicated region
    $region85: #{lenet5_forward.1} parent=5 // pred_check
      %p4186 = pneg %p4185
    $region86: #{lenet5_forward.1} parent=5 // pred_check_branch
      %4188 = sbr.rel (%p4186) target = $region88
    $region87: #{lenet5_forward.1} parent=5 // pred_region
      %s4189 = ssub.s32 %s21, 2
      // Predicated region
      $region89: #{lenet5_forward.1} parent=87 // pred_check
        %p4190 = pneg %p370
      $region90: #{lenet5_forward.1} parent=87 // pred_check_branch
        %4192 = sbr.rel (%p4190) target = $region92
      $region91: #{lenet5_forward.1} parent=87 // pred_region
        %p4193 = scmp.lt.s32.totalorder %s27, 1
        %s4194 = scalar_select %p4193, %s27, 1
        %s4195 = smul.addr %s4194, 2
        %s4196 = smul.addr %s4195, 8
        %s4197 = scalar_lea.vmem %s15, %s4196
      $region92: #{lenet5_forward.1} parent=87 // pred_fallthru
        _
    $region88: #{lenet5_forward.1} parent=5 // pred_fallthru
      _
  $region6: #{lenet5_forward.1} parent=0 // loop_footer
    %s25 = sadd.s32 1, %s21
  $region7: #{lenet5_forward.1} parent=0 // loop_footer_branch
    %20 = sbr.rel target = $region3
  $region8: #{lenet5_forward.1} parent=0 // loop_exit
    _

</llo_original>
